<compile_context>
chip_gen: v7x
topology: tpu7x:2x2x1
jax: 0.10.0
libtpu: 0.0.40
codegen_flags: <defaults>
</compile_context>

<pallas_src>
import jax
import jax.numpy as jnp
from jax.experimental import pallas as pl
from jax.experimental.pallas import tpu as pltpu


# ----------------------------------------------------------------------------
# Wrapper + fused kernel (single grid-less pallas_call, everything in VMEM)
# ----------------------------------------------------------------------------
def lstm_model_forward(x_btd, params, hidden):
    """x_btd: (B, T, D) batch-first -> (B, 1)."""
    w_ih0 = params["w_ih0"]            # (D, 4H)   layer-0 input weights
    w_ih_rest = params["w_ih_rest"]    # (L-1, H, 4H)
    w_hh = params["w_hh"]              # (L, H, 4H)
    b_all = params["b_all"]            # (L, 1, 4H)  b_ih + b_hh
    fc_w = params["fc_w"]              # (1, H)
    fc_b = params["fc_b"]              # (1, 1)

    B, T, D = x_btd.shape
    H = hidden
    L = w_hh.shape[0]

    # Time-major flatten: row index = t*B + b.  ~1 KB; the D->H zero-pad and
    # padded weight rows of the previous version are gone.
    x_flat = jnp.transpose(x_btd, (1, 0, 2)).reshape(T * B, D).astype(jnp.float32)

    def kernel(x_ref, wih0_ref, wih_ref, whh_ref, b_ref, wfc_ref, bfc_ref,
               out_ref, seq_sc):
        # Layer 0 batched input projection (one MXU matmul, off the chain).
        gates_in = (
            jnp.dot(x_ref[...], wih0_ref[...],
                    preferred_element_type=jnp.float32)
            + b_ref[0]
        )                                                       # (T*B, 4H)

        h_last = None
        for l in range(L):
            w_hh_l = whh_ref[l]                                 # (H, 4H), resident
            h = jnp.zeros((B, H), jnp.float32)
            c = jnp.zeros((B, H), jnp.float32)
            for t in range(T):
                # Serial chain: one (B,H)x(H,4H) matmul + VPU/EUP ops.
                g = gates_in[t * B:(t + 1) * B, :] + jnp.dot(
                    h, w_hh_l, preferred_element_type=jnp.float32)   # (B, 4H)
                sig = jax.nn.sigmoid(g)                         # 1 EUP pass
                th = jnp.tanh(g)                                # 1 EUP pass
                i_g = sig[:, 0 * H:1 * H]
                f_g = sig[:, 1 * H:2 * H]
                o_g = sig[:, 3 * H:4 * H]
                g_g = th[:, 2 * H:3 * H]
                c = f_g * c + i_g * g_g
                h = o_g * jnp.tanh(c)
                if l < L - 1:
                    # Off-chain store of the layer output sequence.
                    seq_sc[t * B:(t + 1) * B, :] = h
            if l < L - 1:
                # Next layer's batched input projection (one MXU matmul).
                gates_in = (
                    jnp.dot(seq_sc[...], wih_ref[l],
                            preferred_element_type=jnp.float32)
                    + b_ref[l + 1]
                )                                               # (T*B, 4H)
            h_last = h

        # Final Linear(H, 1) on the top layer's last hidden state (VPU only).
        out_ref[...] = (
            jnp.sum(h_last * wfc_ref[...], axis=-1, keepdims=True)
            + bfc_ref[...]
        )

    return pl.pallas_call(
        kernel,
        out_shape=jax.ShapeDtypeStruct((B, 1), jnp.float32),
        in_specs=[
            pl.BlockSpec((T * B, D), lambda: (0, 0)),
            pl.BlockSpec((D, 4 * H), lambda: (0, 0)),
            pl.BlockSpec((L - 1, H, 4 * H), lambda: (0, 0, 0)),
            pl.BlockSpec((L, H, 4 * H), lambda: (0, 0, 0)),
            pl.BlockSpec((L, 1, 4 * H), lambda: (0, 0, 0)),
            pl.BlockSpec((1, H), lambda: (0, 0)),
            pl.BlockSpec((1, 1), lambda: (0, 0)),
        ],
        out_specs=pl.BlockSpec((B, 1), lambda: (0, 0)),
        scratch_shapes=[
            pltpu.VMEM((T * B, H), jnp.float32),   # layer output sequence
        ],
        # TODO(synk): if the caller ever batches to large B, add a grid over
        # batch with dimension_semantics=("parallel",) to use both v7x cores.
    )(x_flat, w_ih0, w_ih_rest, w_hh, b_all, fc_w, fc_b)


# ----------------------------------------------------------------------------
# Deterministic parameter init (PyTorch LSTM/Linear shapes, gate order ifgo)
# ----------------------------------------------------------------------------
def init_params(key, input_size, hidden_size, num_layers):
    H = hidden_size
    bound = 1.0 / jnp.sqrt(H)

    raw = []  # per-layer (w_ih (D_in,4H), w_hh (H,4H), fused bias (4H,))
    for layer in range(num_layers):
        d_in = input_size if layer == 0 else H
        key, k1, k2, k3, k4 = jax.random.split(key, 5)
        w_ih = jax.random.uniform(k1, (d_in, 4 * H), minval=-bound,
                                  maxval=bound, dtype=jnp.float32)
        w_hh = jax.random.uniform(k2, (H, 4 * H), minval=-bound,
                                  maxval=bound, dtype=jnp.float32)
        b_ih = jax.random.uniform(k3, (4 * H,), minval=-bound,
                                  maxval=bound, dtype=jnp.float32)
        b_hh = jax.random.uniform(k4, (4 * H,), minval=-bound,
                                  maxval=bound, dtype=jnp.float32)
        raw.append((w_ih, w_hh, b_ih + b_hh))

    key, k5, k6 = jax.random.split(key, 3)
    fc_w = jax.random.uniform(k5, (1, H), minval=-bound, maxval=bound,
                              dtype=jnp.float32)
    fc_b = jax.random.uniform(k6, (1, 1), minval=-bound, maxval=bound,
                              dtype=jnp.float32)

    return {
        "raw": raw,
        "w_ih0": raw[0][0],                                        # (D, 4H)
        "w_ih_rest": jnp.stack([w for (w, _, _) in raw[1:]], 0),   # (L-1,H,4H)
        "w_hh": jnp.stack([w for (_, w, _) in raw], 0),            # (L, H, 4H)
        "b_all": jnp.stack([b[None, :] for (_, _, b) in raw], 0),  # (L, 1, 4H)
        "fc_w": fc_w,
        "fc_b": fc_b,
    }


# ----------------------------------------------------------------------------
# Pure-JAX reference (for correctness check)
# ----------------------------------------------------------------------------
def reference_forward(x_btd, params, hidden):
    H = hidden
    x = jnp.transpose(x_btd, (1, 0, 2)).astype(jnp.float32)  # (T, B, D)
    B = x.shape[1]
    for (w_ih, w_hh, b) in params["raw"]:
        def step(carry, x_t):
            h, c = carry
            gates = x_t @ w_ih + h @ w_hh + b
            i = jax.nn.sigmoid(gates[:, 0 * H:1 * H])
            f = jax.nn.sigmoid(gates[:, 1 * H:2 * H])
            g = jnp.tanh(gates[:, 2 * H:3 * H])
            o = jax.nn.sigmoid(gates[:, 3 * H:4 * H])
            c_new = f * c + i * g
            h_new = o * jnp.tanh(c_new)
            return (h_new, c_new), h_new
        init = (jnp.zeros((B, H), jnp.float32),
                jnp.zeros((B, H), jnp.float32))
        _, x = jax.lax.scan(step, init, x)
    return x[-1] @ params["fc_w"].T + params["fc_b"]


# ----------------------------------------------------------------------------
if __name__ == "__main__":
    BATCH, SEQ, INPUT_SIZE, HIDDEN, NUM_LAYERS = 2, 8, 16, 32, 4
    # NOTE: B=2 fills 2 of 8 sublanes; batching to B>=8 upstream is free speedup.

    key = jax.random.PRNGKey(0)
    key, kx = jax.random.split(key)
    x = jax.random.normal(kx, (BATCH, SEQ, INPUT_SIZE), dtype=jnp.float32)

    params = init_params(key, INPUT_SIZE, HIDDEN, NUM_LAYERS)

    out = jax.block_until_ready(lstm_model_forward(x, params, HIDDEN))
    ref = jax.block_until_ready(reference_forward(x, params, HIDDEN))

    assert out.shape == (BATCH, 1)
    assert jnp.allclose(out, ref, atol=1e-5, rtol=1e-5), (out, ref)

    print("KERNEL_OK")
</pallas_src>

<mosaic_0001>
module attributes {stable_mosaic.version = 11 : i64} {
  func.func @kernel(%arg0: memref<16x16xf32, #tpu.memory_space<vmem>>, %arg1: memref<16x128xf32, #tpu.memory_space<vmem>>, %arg2: memref<3x32x128xf32, #tpu.memory_space<vmem>>, %arg3: memref<4x32x128xf32, #tpu.memory_space<vmem>>, %arg4: memref<4x1x128xf32, #tpu.memory_space<vmem>>, %arg5: memref<1x32xf32, #tpu.memory_space<vmem>>, %arg6: memref<1x1xf32, #tpu.memory_space<vmem>>, %arg7: memref<2x1xf32, #tpu.memory_space<vmem>>, %arg8: memref<16x32xf32, #tpu.memory_space<vmem>>) attributes {dimension_semantics = [], scalar_prefetch = 0 : i64, scratch_operands = 1 : i64, tpu.core_type = #tpu.core_type<tc>} {
    %c0 = arith.constant 0 : index
    %c0_0 = arith.constant 0 : index
    %0 = vector.load %arg0[%c0, %c0_0] : memref<16x16xf32, #tpu.memory_space<vmem>>, vector<16x16xf32>
    %c0_1 = arith.constant 0 : index
    %c0_2 = arith.constant 0 : index
    %1 = vector.load %arg1[%c0_1, %c0_2] : memref<16x128xf32, #tpu.memory_space<vmem>>, vector<16x128xf32>
    %cst = arith.constant dense<0.000000e+00> : vector<16x128xf32>
    %2 = tpu.matmul %0, %1, %cst {dimension_numbers = #tpu.dot_dimension_numbers<[1], [0], [0], [1], [0, 0, 1, 1], [], []>} : vector<16x16xf32>, vector<16x128xf32>, vector<16x128xf32> -> vector<16x128xf32>
    %c0_3 = arith.constant 0 : index
    %c0_4 = arith.constant 0 : index
    %c0_5 = arith.constant 0 : index
    %3 = vector.load %arg4[%c0_3, %c0_4, %c0_5] : memref<4x1x128xf32, #tpu.memory_space<vmem>>, vector<1x1x128xf32>
    %4 = vector.shape_cast %3 : vector<1x1x128xf32> to vector<1x128xf32>
    %5 = vector.broadcast %4 : vector<1x128xf32> to vector<16x128xf32>
    %6 = arith.addf %2, %5 : vector<16x128xf32>
    %c0_6 = arith.constant 0 : index
    %c0_7 = arith.constant 0 : index
    %c0_8 = arith.constant 0 : index
    %7 = vector.load %arg3[%c0_6, %c0_7, %c0_8] : memref<4x32x128xf32, #tpu.memory_space<vmem>>, vector<1x32x128xf32>
    %8 = vector.shape_cast %7 : vector<1x32x128xf32> to vector<32x128xf32>
    %cst_9 = arith.constant 0.000000e+00 : f32
    %9 = vector.broadcast %cst_9 : f32 to vector<2x32xf32>
    %cst_10 = arith.constant 0.000000e+00 : f32
    %10 = vector.broadcast %cst_10 : f32 to vector<2x32xf32>
    %11 = vector.extract_strided_slice %6 {offsets = [0, 0], sizes = [2, 128], strides = [1, 1]} : vector<16x128xf32> to vector<2x128xf32>
    %cst_11 = arith.constant dense<0.000000e+00> : vector<2x128xf32>
    %12 = tpu.matmul %9, %8, %cst_11 {dimension_numbers = #tpu.dot_dimension_numbers<[1], [0], [0], [1], [0, 0, 1, 1], [], []>} : vector<2x32xf32>, vector<32x128xf32>, vector<2x128xf32> -> vector<2x128xf32>
    %13 = arith.addf %11, %12 : vector<2x128xf32>
    %14 = arith.negf %13 : vector<2x128xf32>
    %15 = math.exp %14 : vector<2x128xf32>
    %cst_12 = arith.constant 1.000000e+00 : f32
    %16 = vector.broadcast %cst_12 : f32 to vector<2x128xf32>
    %17 = arith.addf %16, %15 : vector<2x128xf32>
    %18 = arith.divf %16, %17 : vector<2x128xf32>
    %19 = math.tanh %13 : vector<2x128xf32>
    %20 = vector.extract_strided_slice %18 {offsets = [0, 0], sizes = [2, 32], strides = [1, 1]} : vector<2x128xf32> to vector<2x32xf32>
    %21 = vector.extract_strided_slice %18 {offsets = [0, 32], sizes = [2, 32], strides = [1, 1]} : vector<2x128xf32> to vector<2x32xf32>
    %22 = vector.extract_strided_slice %18 {offsets = [0, 96], sizes = [2, 32], strides = [1, 1]} : vector<2x128xf32> to vector<2x32xf32>
    %23 = vector.extract_strided_slice %19 {offsets = [0, 64], sizes = [2, 32], strides = [1, 1]} : vector<2x128xf32> to vector<2x32xf32>
    %24 = arith.mulf %21, %10 : vector<2x32xf32>
    %25 = arith.mulf %20, %23 : vector<2x32xf32>
    %26 = arith.addf %24, %25 : vector<2x32xf32>
    %27 = math.tanh %26 : vector<2x32xf32>
    %28 = arith.mulf %22, %27 : vector<2x32xf32>
    %c0_13 = arith.constant 0 : index
    %c0_14 = arith.constant 0 : index
    %29 = vector.load %arg8[%c0_13, %c0_14] : memref<16x32xf32, #tpu.memory_space<vmem>>, vector<2x32xf32>
    tpu.vector_store %arg8[%c0_13, %c0_14], %28 {strides = array<i32>} : memref<16x32xf32, #tpu.memory_space<vmem>>, vector<2x32xf32>,
    %30 = vector.extract_strided_slice %6 {offsets = [2, 0], sizes = [2, 128], strides = [1, 1]} : vector<16x128xf32> to vector<2x128xf32>
    %cst_15 = arith.constant dense<0.000000e+00> : vector<2x128xf32>
    %31 = tpu.matmul %28, %8, %cst_15 {dimension_numbers = #tpu.dot_dimension_numbers<[1], [0], [0], [1], [0, 0, 1, 1], [], []>} : vector<2x32xf32>, vector<32x128xf32>, vector<2x128xf32> -> vector<2x128xf32>
    %32 = arith.addf %30, %31 : vector<2x128xf32>
    %33 = arith.negf %32 : vector<2x128xf32>
    %34 = math.exp %33 : vector<2x128xf32>
    %cst_16 = arith.constant 1.000000e+00 : f32
    %35 = vector.broadcast %cst_16 : f32 to vector<2x128xf32>
    %36 = arith.addf %35, %34 : vector<2x128xf32>
    %37 = arith.divf %35, %36 : vector<2x128xf32>
    %38 = math.tanh %32 : vector<2x128xf32>
    %39 = vector.extract_strided_slice %37 {offsets = [0, 0], sizes = [2, 32], strides = [1, 1]} : vector<2x128xf32> to vector<2x32xf32>
    %40 = vector.extract_strided_slice %37 {offsets = [0, 32], sizes = [2, 32], strides = [1, 1]} : vector<2x128xf32> to vector<2x32xf32>
    %41 = vector.extract_strided_slice %37 {offsets = [0, 96], sizes = [2, 32], strides = [1, 1]} : vector<2x128xf32> to vector<2x32xf32>
    %42 = vector.extract_strided_slice %38 {offsets = [0, 64], sizes = [2, 32], strides = [1, 1]} : vector<2x128xf32> to vector<2x32xf32>
    %43 = arith.mulf %40, %26 : vector<2x32xf32>
    %44 = arith.mulf %39, %42 : vector<2x32xf32>
    %45 = arith.addf %43, %44 : vector<2x32xf32>
    %46 = math.tanh %45 : vector<2x32xf32>
    %47 = arith.mulf %41, %46 : vector<2x32xf32>
    %c2 = arith.constant 2 : index
    %c0_17 = arith.constant 0 : index
    %48 = vector.load %arg8[%c2, %c0_17] : memref<16x32xf32, #tpu.memory_space<vmem>>, vector<2x32xf32>
    tpu.vector_store %arg8[%c2, %c0_17], %47 {strides = array<i32>} : memref<16x32xf32, #tpu.memory_space<vmem>>, vector<2x32xf32>,
    %49 = vector.extract_strided_slice %6 {offsets = [4, 0], sizes = [2, 128], strides = [1, 1]} : vector<16x128xf32> to vector<2x128xf32>
    %cst_18 = arith.constant dense<0.000000e+00> : vector<2x128xf32>
    %50 = tpu.matmul %47, %8, %cst_18 {dimension_numbers = #tpu.dot_dimension_numbers<[1], [0], [0], [1], [0, 0, 1, 1], [], []>} : vector<2x32xf32>, vector<32x128xf32>, vector<2x128xf32> -> vector<2x128xf32>
    %51 = arith.addf %49, %50 : vector<2x128xf32>
    %52 = arith.negf %51 : vector<2x128xf32>
    %53 = math.exp %52 : vector<2x128xf32>
    %cst_19 = arith.constant 1.000000e+00 : f32
    %54 = vector.broadcast %cst_19 : f32 to vector<2x128xf32>
    %55 = arith.addf %54, %53 : vector<2x128xf32>
    %56 = arith.divf %54, %55 : vector<2x128xf32>
    %57 = math.tanh %51 : vector<2x128xf32>
    %58 = vector.extract_strided_slice %56 {offsets = [0, 0], sizes = [2, 32], strides = [1, 1]} : vector<2x128xf32> to vector<2x32xf32>
    %59 = vector.extract_strided_slice %56 {offsets = [0, 32], sizes = [2, 32], strides = [1, 1]} : vector<2x128xf32> to vector<2x32xf32>
    %60 = vector.extract_strided_slice %56 {offsets = [0, 96], sizes = [2, 32], strides = [1, 1]} : vector<2x128xf32> to vector<2x32xf32>
    %61 = vector.extract_strided_slice %57 {offsets = [0, 64], sizes = [2, 32], strides = [1, 1]} : vector<2x128xf32> to vector<2x32xf32>
    %62 = arith.mulf %59, %45 : vector<2x32xf32>
    %63 = arith.mulf %58, %61 : vector<2x32xf32>
    %64 = arith.addf %62, %63 : vector<2x32xf32>
    %65 = math.tanh %64 : vector<2x32xf32>
    %66 = arith.mulf %60, %65 : vector<2x32xf32>
    %c4 = arith.constant 4 : index
    %c0_20 = arith.constant 0 : index
    %67 = vector.load %arg8[%c4, %c0_20] : memref<16x32xf32, #tpu.memory_space<vmem>>, vector<2x32xf32>
    tpu.vector_store %arg8[%c4, %c0_20], %66 {strides = array<i32>} : memref<16x32xf32, #tpu.memory_space<vmem>>, vector<2x32xf32>,
    %68 = vector.extract_strided_slice %6 {offsets = [6, 0], sizes = [2, 128], strides = [1, 1]} : vector<16x128xf32> to vector<2x128xf32>
    %cst_21 = arith.constant dense<0.000000e+00> : vector<2x128xf32>
    %69 = tpu.matmul %66, %8, %cst_21 {dimension_numbers = #tpu.dot_dimension_numbers<[1], [0], [0], [1], [0, 0, 1, 1], [], []>} : vector<2x32xf32>, vector<32x128xf32>, vector<2x128xf32> -> vector<2x128xf32>
    %70 = arith.addf %68, %69 : vector<2x128xf32>
    %71 = arith.negf %70 : vector<2x128xf32>
    %72 = math.exp %71 : vector<2x128xf32>
    %cst_22 = arith.constant 1.000000e+00 : f32
    %73 = vector.broadcast %cst_22 : f32 to vector<2x128xf32>
    %74 = arith.addf %73, %72 : vector<2x128xf32>
    %75 = arith.divf %73, %74 : vector<2x128xf32>
    %76 = math.tanh %70 : vector<2x128xf32>
    %77 = vector.extract_strided_slice %75 {offsets = [0, 0], sizes = [2, 32], strides = [1, 1]} : vector<2x128xf32> to vector<2x32xf32>
    %78 = vector.extract_strided_slice %75 {offsets = [0, 32], sizes = [2, 32], strides = [1, 1]} : vector<2x128xf32> to vector<2x32xf32>
    %79 = vector.extract_strided_slice %75 {offsets = [0, 96], sizes = [2, 32], strides = [1, 1]} : vector<2x128xf32> to vector<2x32xf32>
    %80 = vector.extract_strided_slice %76 {offsets = [0, 64], sizes = [2, 32], strides = [1, 1]} : vector<2x128xf32> to vector<2x32xf32>
    %81 = arith.mulf %78, %64 : vector<2x32xf32>
    %82 = arith.mulf %77, %80 : vector<2x32xf32>
    %83 = arith.addf %81, %82 : vector<2x32xf32>
    %84 = math.tanh %83 : vector<2x32xf32>
    %85 = arith.mulf %79, %84 : vector<2x32xf32>
    %c6 = arith.constant 6 : index
    %c0_23 = arith.constant 0 : index
    %86 = vector.load %arg8[%c6, %c0_23] : memref<16x32xf32, #tpu.memory_space<vmem>>, vector<2x32xf32>
    tpu.vector_store %arg8[%c6, %c0_23], %85 {strides = array<i32>} : memref<16x32xf32, #tpu.memory_space<vmem>>, vector<2x32xf32>,
    %87 = vector.extract_strided_slice %6 {offsets = [8, 0], sizes = [2, 128], strides = [1, 1]} : vector<16x128xf32> to vector<2x128xf32>
    %cst_24 = arith.constant dense<0.000000e+00> : vector<2x128xf32>
    %88 = tpu.matmul %85, %8, %cst_24 {dimension_numbers = #tpu.dot_dimension_numbers<[1], [0], [0], [1], [0, 0, 1, 1], [], []>} : vector<2x32xf32>, vector<32x128xf32>, vector<2x128xf32> -> vector<2x128xf32>
    %89 = arith.addf %87, %88 : vector<2x128xf32>
    %90 = arith.negf %89 : vector<2x128xf32>
    %91 = math.exp %90 : vector<2x128xf32>
    %cst_25 = arith.constant 1.000000e+00 : f32
    %92 = vector.broadcast %cst_25 : f32 to vector<2x128xf32>
    %93 = arith.addf %92, %91 : vector<2x128xf32>
    %94 = arith.divf %92, %93 : vector<2x128xf32>
    %95 = math.tanh %89 : vector<2x128xf32>
    %96 = vector.extract_strided_slice %94 {offsets = [0, 0], sizes = [2, 32], strides = [1, 1]} : vector<2x128xf32> to vector<2x32xf32>
    %97 = vector.extract_strided_slice %94 {offsets = [0, 32], sizes = [2, 32], strides = [1, 1]} : vector<2x128xf32> to vector<2x32xf32>
    %98 = vector.extract_strided_slice %94 {offsets = [0, 96], sizes = [2, 32], strides = [1, 1]} : vector<2x128xf32> to vector<2x32xf32>
    %99 = vector.extract_strided_slice %95 {offsets = [0, 64], sizes = [2, 32], strides = [1, 1]} : vector<2x128xf32> to vector<2x32xf32>
    %100 = arith.mulf %97, %83 : vector<2x32xf32>
    %101 = arith.mulf %96, %99 : vector<2x32xf32>
    %102 = arith.addf %100, %101 : vector<2x32xf32>
    %103 = math.tanh %102 : vector<2x32xf32>
    %104 = arith.mulf %98, %103 : vector<2x32xf32>
    %c8 = arith.constant 8 : index
    %c0_26 = arith.constant 0 : index
    %105 = vector.load %arg8[%c8, %c0_26] : memref<16x32xf32, #tpu.memory_space<vmem>>, vector<2x32xf32>
    tpu.vector_store %arg8[%c8, %c0_26], %104 {strides = array<i32>} : memref<16x32xf32, #tpu.memory_space<vmem>>, vector<2x32xf32>,
    %106 = vector.extract_strided_slice %6 {offsets = [10, 0], sizes = [2, 128], strides = [1, 1]} : vector<16x128xf32> to vector<2x128xf32>
    %cst_27 = arith.constant dense<0.000000e+00> : vector<2x128xf32>
    %107 = tpu.matmul %104, %8, %cst_27 {dimension_numbers = #tpu.dot_dimension_numbers<[1], [0], [0], [1], [0, 0, 1, 1], [], []>} : vector<2x32xf32>, vector<32x128xf32>, vector<2x128xf32> -> vector<2x128xf32>
    %108 = arith.addf %106, %107 : vector<2x128xf32>
    %109 = arith.negf %108 : vector<2x128xf32>
    %110 = math.exp %109 : vector<2x128xf32>
    %cst_28 = arith.constant 1.000000e+00 : f32
    %111 = vector.broadcast %cst_28 : f32 to vector<2x128xf32>
    %112 = arith.addf %111, %110 : vector<2x128xf32>
    %113 = arith.divf %111, %112 : vector<2x128xf32>
    %114 = math.tanh %108 : vector<2x128xf32>
    %115 = vector.extract_strided_slice %113 {offsets = [0, 0], sizes = [2, 32], strides = [1, 1]} : vector<2x128xf32> to vector<2x32xf32>
    %116 = vector.extract_strided_slice %113 {offsets = [0, 32], sizes = [2, 32], strides = [1, 1]} : vector<2x128xf32> to vector<2x32xf32>
    %117 = vector.extract_strided_slice %113 {offsets = [0, 96], sizes = [2, 32], strides = [1, 1]} : vector<2x128xf32> to vector<2x32xf32>
    %118 = vector.extract_strided_slice %114 {offsets = [0, 64], sizes = [2, 32], strides = [1, 1]} : vector<2x128xf32> to vector<2x32xf32>
    %119 = arith.mulf %116, %102 : vector<2x32xf32>
    %120 = arith.mulf %115, %118 : vector<2x32xf32>
    %121 = arith.addf %119, %120 : vector<2x32xf32>
    %122 = math.tanh %121 : vector<2x32xf32>
    %123 = arith.mulf %117, %122 : vector<2x32xf32>
    %c10 = arith.constant 10 : index
    %c0_29 = arith.constant 0 : index
    %124 = vector.load %arg8[%c10, %c0_29] : memref<16x32xf32, #tpu.memory_space<vmem>>, vector<2x32xf32>
    tpu.vector_store %arg8[%c10, %c0_29], %123 {strides = array<i32>} : memref<16x32xf32, #tpu.memory_space<vmem>>, vector<2x32xf32>,
    %125 = vector.extract_strided_slice %6 {offsets = [12, 0], sizes = [2, 128], strides = [1, 1]} : vector<16x128xf32> to vector<2x128xf32>
    %cst_30 = arith.constant dense<0.000000e+00> : vector<2x128xf32>
    %126 = tpu.matmul %123, %8, %cst_30 {dimension_numbers = #tpu.dot_dimension_numbers<[1], [0], [0], [1], [0, 0, 1, 1], [], []>} : vector<2x32xf32>, vector<32x128xf32>, vector<2x128xf32> -> vector<2x128xf32>
    %127 = arith.addf %125, %126 : vector<2x128xf32>
    %128 = arith.negf %127 : vector<2x128xf32>
    %129 = math.exp %128 : vector<2x128xf32>
    %cst_31 = arith.constant 1.000000e+00 : f32
    %130 = vector.broadcast %cst_31 : f32 to vector<2x128xf32>
    %131 = arith.addf %130, %129 : vector<2x128xf32>
    %132 = arith.divf %130, %131 : vector<2x128xf32>
    %133 = math.tanh %127 : vector<2x128xf32>
    %134 = vector.extract_strided_slice %132 {offsets = [0, 0], sizes = [2, 32], strides = [1, 1]} : vector<2x128xf32> to vector<2x32xf32>
    %135 = vector.extract_strided_slice %132 {offsets = [0, 32], sizes = [2, 32], strides = [1, 1]} : vector<2x128xf32> to vector<2x32xf32>
    %136 = vector.extract_strided_slice %132 {offsets = [0, 96], sizes = [2, 32], strides = [1, 1]} : vector<2x128xf32> to vector<2x32xf32>
    %137 = vector.extract_strided_slice %133 {offsets = [0, 64], sizes = [2, 32], strides = [1, 1]} : vector<2x128xf32> to vector<2x32xf32>
    %138 = arith.mulf %135, %121 : vector<2x32xf32>
    %139 = arith.mulf %134, %137 : vector<2x32xf32>
    %140 = arith.addf %138, %139 : vector<2x32xf32>
    %141 = math.tanh %140 : vector<2x32xf32>
    %142 = arith.mulf %136, %141 : vector<2x32xf32>
    %c12 = arith.constant 12 : index
    %c0_32 = arith.constant 0 : index
    %143 = vector.load %arg8[%c12, %c0_32] : memref<16x32xf32, #tpu.memory_space<vmem>>, vector<2x32xf32>
    tpu.vector_store %arg8[%c12, %c0_32], %142 {strides = array<i32>} : memref<16x32xf32, #tpu.memory_space<vmem>>, vector<2x32xf32>,
    %144 = vector.extract_strided_slice %6 {offsets = [14, 0], sizes = [2, 128], strides = [1, 1]} : vector<16x128xf32> to vector<2x128xf32>
    %cst_33 = arith.constant dense<0.000000e+00> : vector<2x128xf32>
    %145 = tpu.matmul %142, %8, %cst_33 {dimension_numbers = #tpu.dot_dimension_numbers<[1], [0], [0], [1], [0, 0, 1, 1], [], []>} : vector<2x32xf32>, vector<32x128xf32>, vector<2x128xf32> -> vector<2x128xf32>
    %146 = arith.addf %144, %145 : vector<2x128xf32>
    %147 = arith.negf %146 : vector<2x128xf32>
    %148 = math.exp %147 : vector<2x128xf32>
    %cst_34 = arith.constant 1.000000e+00 : f32
    %149 = vector.broadcast %cst_34 : f32 to vector<2x128xf32>
    %150 = arith.addf %149, %148 : vector<2x128xf32>
    %151 = arith.divf %149, %150 : vector<2x128xf32>
    %152 = math.tanh %146 : vector<2x128xf32>
    %153 = vector.extract_strided_slice %151 {offsets = [0, 0], sizes = [2, 32], strides = [1, 1]} : vector<2x128xf32> to vector<2x32xf32>
    %154 = vector.extract_strided_slice %151 {offsets = [0, 32], sizes = [2, 32], strides = [1, 1]} : vector<2x128xf32> to vector<2x32xf32>
    %155 = vector.extract_strided_slice %151 {offsets = [0, 96], sizes = [2, 32], strides = [1, 1]} : vector<2x128xf32> to vector<2x32xf32>
    %156 = vector.extract_strided_slice %152 {offsets = [0, 64], sizes = [2, 32], strides = [1, 1]} : vector<2x128xf32> to vector<2x32xf32>
    %157 = arith.mulf %154, %140 : vector<2x32xf32>
    %158 = arith.mulf %153, %156 : vector<2x32xf32>
    %159 = arith.addf %157, %158 : vector<2x32xf32>
    %160 = math.tanh %159 : vector<2x32xf32>
    %161 = arith.mulf %155, %160 : vector<2x32xf32>
    %c14 = arith.constant 14 : index
    %c0_35 = arith.constant 0 : index
    %162 = vector.load %arg8[%c14, %c0_35] : memref<16x32xf32, #tpu.memory_space<vmem>>, vector<2x32xf32>
    tpu.vector_store %arg8[%c14, %c0_35], %161 {strides = array<i32>} : memref<16x32xf32, #tpu.memory_space<vmem>>, vector<2x32xf32>,
    %c0_36 = arith.constant 0 : index
    %c0_37 = arith.constant 0 : index
    %163 = vector.load %arg8[%c0_36, %c0_37] : memref<16x32xf32, #tpu.memory_space<vmem>>, vector<16x32xf32>
    %c0_38 = arith.constant 0 : index
    %c0_39 = arith.constant 0 : index
    %c0_40 = arith.constant 0 : index
    %164 = vector.load %arg2[%c0_38, %c0_39, %c0_40] : memref<3x32x128xf32, #tpu.memory_space<vmem>>, vector<1x32x128xf32>
    %165 = vector.shape_cast %164 : vector<1x32x128xf32> to vector<32x128xf32>
    %cst_41 = arith.constant dense<0.000000e+00> : vector<16x128xf32>
    %166 = tpu.matmul %163, %165, %cst_41 {dimension_numbers = #tpu.dot_dimension_numbers<[1], [0], [0], [1], [0, 0, 1, 1], [], []>} : vector<16x32xf32>, vector<32x128xf32>, vector<16x128xf32> -> vector<16x128xf32>
    %c1 = arith.constant 1 : index
    %c0_42 = arith.constant 0 : index
    %c0_43 = arith.constant 0 : index
    %167 = vector.load %arg4[%c1, %c0_42, %c0_43] : memref<4x1x128xf32, #tpu.memory_space<vmem>>, vector<1x1x128xf32>
    %168 = vector.shape_cast %167 : vector<1x1x128xf32> to vector<1x128xf32>
    %169 = vector.broadcast %168 : vector<1x128xf32> to vector<16x128xf32>
    %170 = arith.addf %166, %169 : vector<16x128xf32>
    %c1_44 = arith.constant 1 : index
    %c0_45 = arith.constant 0 : index
    %c0_46 = arith.constant 0 : index
    %171 = vector.load %arg3[%c1_44, %c0_45, %c0_46] : memref<4x32x128xf32, #tpu.memory_space<vmem>>, vector<1x32x128xf32>
    %172 = vector.shape_cast %171 : vector<1x32x128xf32> to vector<32x128xf32>
    %cst_47 = arith.constant 0.000000e+00 : f32
    %173 = vector.broadcast %cst_47 : f32 to vector<2x32xf32>
    %cst_48 = arith.constant 0.000000e+00 : f32
    %174 = vector.broadcast %cst_48 : f32 to vector<2x32xf32>
    %175 = vector.extract_strided_slice %170 {offsets = [0, 0], sizes = [2, 128], strides = [1, 1]} : vector<16x128xf32> to vector<2x128xf32>
    %cst_49 = arith.constant dense<0.000000e+00> : vector<2x128xf32>
    %176 = tpu.matmul %173, %172, %cst_49 {dimension_numbers = #tpu.dot_dimension_numbers<[1], [0], [0], [1], [0, 0, 1, 1], [], []>} : vector<2x32xf32>, vector<32x128xf32>, vector<2x128xf32> -> vector<2x128xf32>
    %177 = arith.addf %175, %176 : vector<2x128xf32>
    %178 = arith.negf %177 : vector<2x128xf32>
    %179 = math.exp %178 : vector<2x128xf32>
    %cst_50 = arith.constant 1.000000e+00 : f32
    %180 = vector.broadcast %cst_50 : f32 to vector<2x128xf32>
    %181 = arith.addf %180, %179 : vector<2x128xf32>
    %182 = arith.divf %180, %181 : vector<2x128xf32>
    %183 = math.tanh %177 : vector<2x128xf32>
    %184 = vector.extract_strided_slice %182 {offsets = [0, 0], sizes = [2, 32], strides = [1, 1]} : vector<2x128xf32> to vector<2x32xf32>
    %185 = vector.extract_strided_slice %182 {offsets = [0, 32], sizes = [2, 32], strides = [1, 1]} : vector<2x128xf32> to vector<2x32xf32>
    %186 = vector.extract_strided_slice %182 {offsets = [0, 96], sizes = [2, 32], strides = [1, 1]} : vector<2x128xf32> to vector<2x32xf32>
    %187 = vector.extract_strided_slice %183 {offsets = [0, 64], sizes = [2, 32], strides = [1, 1]} : vector<2x128xf32> to vector<2x32xf32>
    %188 = arith.mulf %185, %174 : vector<2x32xf32>
    %189 = arith.mulf %184, %187 : vector<2x32xf32>
    %190 = arith.addf %188, %189 : vector<2x32xf32>
    %191 = math.tanh %190 : vector<2x32xf32>
    %192 = arith.mulf %186, %191 : vector<2x32xf32>
    %c0_51 = arith.constant 0 : index
    %c0_52 = arith.constant 0 : index
    %193 = vector.load %arg8[%c0_51, %c0_52] : memref<16x32xf32, #tpu.memory_space<vmem>>, vector<2x32xf32>
    tpu.vector_store %arg8[%c0_51, %c0_52], %192 {strides = array<i32>} : memref<16x32xf32, #tpu.memory_space<vmem>>, vector<2x32xf32>,
    %194 = vector.extract_strided_slice %170 {offsets = [2, 0], sizes = [2, 128], strides = [1, 1]} : vector<16x128xf32> to vector<2x128xf32>
    %cst_53 = arith.constant dense<0.000000e+00> : vector<2x128xf32>
    %195 = tpu.matmul %192, %172, %cst_53 {dimension_numbers = #tpu.dot_dimension_numbers<[1], [0], [0], [1], [0, 0, 1, 1], [], []>} : vector<2x32xf32>, vector<32x128xf32>, vector<2x128xf32> -> vector<2x128xf32>
    %196 = arith.addf %194, %195 : vector<2x128xf32>
    %197 = arith.negf %196 : vector<2x128xf32>
    %198 = math.exp %197 : vector<2x128xf32>
    %cst_54 = arith.constant 1.000000e+00 : f32
    %199 = vector.broadcast %cst_54 : f32 to vector<2x128xf32>
    %200 = arith.addf %199, %198 : vector<2x128xf32>
    %201 = arith.divf %199, %200 : vector<2x128xf32>
    %202 = math.tanh %196 : vector<2x128xf32>
    %203 = vector.extract_strided_slice %201 {offsets = [0, 0], sizes = [2, 32], strides = [1, 1]} : vector<2x128xf32> to vector<2x32xf32>
    %204 = vector.extract_strided_slice %201 {offsets = [0, 32], sizes = [2, 32], strides = [1, 1]} : vector<2x128xf32> to vector<2x32xf32>
    %205 = vector.extract_strided_slice %201 {offsets = [0, 96], sizes = [2, 32], strides = [1, 1]} : vector<2x128xf32> to vector<2x32xf32>
    %206 = vector.extract_strided_slice %202 {offsets = [0, 64], sizes = [2, 32], strides = [1, 1]} : vector<2x128xf32> to vector<2x32xf32>
    %207 = arith.mulf %204, %190 : vector<2x32xf32>
    %208 = arith.mulf %203, %206 : vector<2x32xf32>
    %209 = arith.addf %207, %208 : vector<2x32xf32>
    %210 = math.tanh %209 : vector<2x32xf32>
    %211 = arith.mulf %205, %210 : vector<2x32xf32>
    %c2_55 = arith.constant 2 : index
    %c0_56 = arith.constant 0 : index
    %212 = vector.load %arg8[%c2_55, %c0_56] : memref<16x32xf32, #tpu.memory_space<vmem>>, vector<2x32xf32>
    tpu.vector_store %arg8[%c2_55, %c0_56], %211 {strides = array<i32>} : memref<16x32xf32, #tpu.memory_space<vmem>>, vector<2x32xf32>,
    %213 = vector.extract_strided_slice %170 {offsets = [4, 0], sizes = [2, 128], strides = [1, 1]} : vector<16x128xf32> to vector<2x128xf32>
    %cst_57 = arith.constant dense<0.000000e+00> : vector<2x128xf32>
    %214 = tpu.matmul %211, %172, %cst_57 {dimension_numbers = #tpu.dot_dimension_numbers<[1], [0], [0], [1], [0, 0, 1, 1], [], []>} : vector<2x32xf32>, vector<32x128xf32>, vector<2x128xf32> -> vector<2x128xf32>
    %215 = arith.addf %213, %214 : vector<2x128xf32>
    %216 = arith.negf %215 : vector<2x128xf32>
    %217 = math.exp %216 : vector<2x128xf32>
    %cst_58 = arith.constant 1.000000e+00 : f32
    %218 = vector.broadcast %cst_58 : f32 to vector<2x128xf32>
    %219 = arith.addf %218, %217 : vector<2x128xf32>
    %220 = arith.divf %218, %219 : vector<2x128xf32>
    %221 = math.tanh %215 : vector<2x128xf32>
    %222 = vector.extract_strided_slice %220 {offsets = [0, 0], sizes = [2, 32], strides = [1, 1]} : vector<2x128xf32> to vector<2x32xf32>
    %223 = vector.extract_strided_slice %220 {offsets = [0, 32], sizes = [2, 32], strides = [1, 1]} : vector<2x128xf32> to vector<2x32xf32>
    %224 = vector.extract_strided_slice %220 {offsets = [0, 96], sizes = [2, 32], strides = [1, 1]} : vector<2x128xf32> to vector<2x32xf32>
    %225 = vector.extract_strided_slice %221 {offsets = [0, 64], sizes = [2, 32], strides = [1, 1]} : vector<2x128xf32> to vector<2x32xf32>
    %226 = arith.mulf %223, %209 : vector<2x32xf32>
    %227 = arith.mulf %222, %225 : vector<2x32xf32>
    %228 = arith.addf %226, %227 : vector<2x32xf32>
    %229 = math.tanh %228 : vector<2x32xf32>
    %230 = arith.mulf %224, %229 : vector<2x32xf32>
    %c4_59 = arith.constant 4 : index
    %c0_60 = arith.constant 0 : index
    %231 = vector.load %arg8[%c4_59, %c0_60] : memref<16x32xf32, #tpu.memory_space<vmem>>, vector<2x32xf32>
    tpu.vector_store %arg8[%c4_59, %c0_60], %230 {strides = array<i32>} : memref<16x32xf32, #tpu.memory_space<vmem>>, vector<2x32xf32>,
    %232 = vector.extract_strided_slice %170 {offsets = [6, 0], sizes = [2, 128], strides = [1, 1]} : vector<16x128xf32> to vector<2x128xf32>
    %cst_61 = arith.constant dense<0.000000e+00> : vector<2x128xf32>
    %233 = tpu.matmul %230, %172, %cst_61 {dimension_numbers = #tpu.dot_dimension_numbers<[1], [0], [0], [1], [0, 0, 1, 1], [], []>} : vector<2x32xf32>, vector<32x128xf32>, vector<2x128xf32> -> vector<2x128xf32>
    %234 = arith.addf %232, %233 : vector<2x128xf32>
    %235 = arith.negf %234 : vector<2x128xf32>
    %236 = math.exp %235 : vector<2x128xf32>
    %cst_62 = arith.constant 1.000000e+00 : f32
    %237 = vector.broadcast %cst_62 : f32 to vector<2x128xf32>
    %238 = arith.addf %237, %236 : vector<2x128xf32>
    %239 = arith.divf %237, %238 : vector<2x128xf32>
    %240 = math.tanh %234 : vector<2x128xf32>
    %241 = vector.extract_strided_slice %239 {offsets = [0, 0], sizes = [2, 32], strides = [1, 1]} : vector<2x128xf32> to vector<2x32xf32>
    %242 = vector.extract_strided_slice %239 {offsets = [0, 32], sizes = [2, 32], strides = [1, 1]} : vector<2x128xf32> to vector<2x32xf32>
    %243 = vector.extract_strided_slice %239 {offsets = [0, 96], sizes = [2, 32], strides = [1, 1]} : vector<2x128xf32> to vector<2x32xf32>
    %244 = vector.extract_strided_slice %240 {offsets = [0, 64], sizes = [2, 32], strides = [1, 1]} : vector<2x128xf32> to vector<2x32xf32>
    %245 = arith.mulf %242, %228 : vector<2x32xf32>
    %246 = arith.mulf %241, %244 : vector<2x32xf32>
    %247 = arith.addf %245, %246 : vector<2x32xf32>
    %248 = math.tanh %247 : vector<2x32xf32>
    %249 = arith.mulf %243, %248 : vector<2x32xf32>
    %c6_63 = arith.constant 6 : index
    %c0_64 = arith.constant 0 : index
    %250 = vector.load %arg8[%c6_63, %c0_64] : memref<16x32xf32, #tpu.memory_space<vmem>>, vector<2x32xf32>
    tpu.vector_store %arg8[%c6_63, %c0_64], %249 {strides = array<i32>} : memref<16x32xf32, #tpu.memory_space<vmem>>, vector<2x32xf32>,
    %251 = vector.extract_strided_slice %170 {offsets = [8, 0], sizes = [2, 128], strides = [1, 1]} : vector<16x128xf32> to vector<2x128xf32>
    %cst_65 = arith.constant dense<0.000000e+00> : vector<2x128xf32>
    %252 = tpu.matmul %249, %172, %cst_65 {dimension_numbers = #tpu.dot_dimension_numbers<[1], [0], [0], [1], [0, 0, 1, 1], [], []>} : vector<2x32xf32>, vector<32x128xf32>, vector<2x128xf32> -> vector<2x128xf32>
    %253 = arith.addf %251, %252 : vector<2x128xf32>
    %254 = arith.negf %253 : vector<2x128xf32>
    %255 = math.exp %254 : vector<2x128xf32>
    %cst_66 = arith.constant 1.000000e+00 : f32
    %256 = vector.broadcast %cst_66 : f32 to vector<2x128xf32>
    %257 = arith.addf %256, %255 : vector<2x128xf32>
    %258 = arith.divf %256, %257 : vector<2x128xf32>
    %259 = math.tanh %253 : vector<2x128xf32>
    %260 = vector.extract_strided_slice %258 {offsets = [0, 0], sizes = [2, 32], strides = [1, 1]} : vector<2x128xf32> to vector<2x32xf32>
    %261 = vector.extract_strided_slice %258 {offsets = [0, 32], sizes = [2, 32], strides = [1, 1]} : vector<2x128xf32> to vector<2x32xf32>
    %262 = vector.extract_strided_slice %258 {offsets = [0, 96], sizes = [2, 32], strides = [1, 1]} : vector<2x128xf32> to vector<2x32xf32>
    %263 = vector.extract_strided_slice %259 {offsets = [0, 64], sizes = [2, 32], strides = [1, 1]} : vector<2x128xf32> to vector<2x32xf32>
    %264 = arith.mulf %261, %247 : vector<2x32xf32>
    %265 = arith.mulf %260, %263 : vector<2x32xf32>
    %266 = arith.addf %264, %265 : vector<2x32xf32>
    %267 = math.tanh %266 : vector<2x32xf32>
    %268 = arith.mulf %262, %267 : vector<2x32xf32>
    %c8_67 = arith.constant 8 : index
    %c0_68 = arith.constant 0 : index
    %269 = vector.load %arg8[%c8_67, %c0_68] : memref<16x32xf32, #tpu.memory_space<vmem>>, vector<2x32xf32>
    tpu.vector_store %arg8[%c8_67, %c0_68], %268 {strides = array<i32>} : memref<16x32xf32, #tpu.memory_space<vmem>>, vector<2x32xf32>,
    %270 = vector.extract_strided_slice %170 {offsets = [10, 0], sizes = [2, 128], strides = [1, 1]} : vector<16x128xf32> to vector<2x128xf32>
    %cst_69 = arith.constant dense<0.000000e+00> : vector<2x128xf32>
    %271 = tpu.matmul %268, %172, %cst_69 {dimension_numbers = #tpu.dot_dimension_numbers<[1], [0], [0], [1], [0, 0, 1, 1], [], []>} : vector<2x32xf32>, vector<32x128xf32>, vector<2x128xf32> -> vector<2x128xf32>
    %272 = arith.addf %270, %271 : vector<2x128xf32>
    %273 = arith.negf %272 : vector<2x128xf32>
    %274 = math.exp %273 : vector<2x128xf32>
    %cst_70 = arith.constant 1.000000e+00 : f32
    %275 = vector.broadcast %cst_70 : f32 to vector<2x128xf32>
    %276 = arith.addf %275, %274 : vector<2x128xf32>
    %277 = arith.divf %275, %276 : vector<2x128xf32>
    %278 = math.tanh %272 : vector<2x128xf32>
    %279 = vector.extract_strided_slice %277 {offsets = [0, 0], sizes = [2, 32], strides = [1, 1]} : vector<2x128xf32> to vector<2x32xf32>
    %280 = vector.extract_strided_slice %277 {offsets = [0, 32], sizes = [2, 32], strides = [1, 1]} : vector<2x128xf32> to vector<2x32xf32>
    %281 = vector.extract_strided_slice %277 {offsets = [0, 96], sizes = [2, 32], strides = [1, 1]} : vector<2x128xf32> to vector<2x32xf32>
    %282 = vector.extract_strided_slice %278 {offsets = [0, 64], sizes = [2, 32], strides = [1, 1]} : vector<2x128xf32> to vector<2x32xf32>
    %283 = arith.mulf %280, %266 : vector<2x32xf32>
    %284 = arith.mulf %279, %282 : vector<2x32xf32>
    %285 = arith.addf %283, %284 : vector<2x32xf32>
    %286 = math.tanh %285 : vector<2x32xf32>
    %287 = arith.mulf %281, %286 : vector<2x32xf32>
    %c10_71 = arith.constant 10 : index
    %c0_72 = arith.constant 0 : index
    %288 = vector.load %arg8[%c10_71, %c0_72] : memref<16x32xf32, #tpu.memory_space<vmem>>, vector<2x32xf32>
    tpu.vector_store %arg8[%c10_71, %c0_72], %287 {strides = array<i32>} : memref<16x32xf32, #tpu.memory_space<vmem>>, vector<2x32xf32>,
    %289 = vector.extract_strided_slice %170 {offsets = [12, 0], sizes = [2, 128], strides = [1, 1]} : vector<16x128xf32> to vector<2x128xf32>
    %cst_73 = arith.constant dense<0.000000e+00> : vector<2x128xf32>
    %290 = tpu.matmul %287, %172, %cst_73 {dimension_numbers = #tpu.dot_dimension_numbers<[1], [0], [0], [1], [0, 0, 1, 1], [], []>} : vector<2x32xf32>, vector<32x128xf32>, vector<2x128xf32> -> vector<2x128xf32>
    %291 = arith.addf %289, %290 : vector<2x128xf32>
    %292 = arith.negf %291 : vector<2x128xf32>
    %293 = math.exp %292 : vector<2x128xf32>
    %cst_74 = arith.constant 1.000000e+00 : f32
    %294 = vector.broadcast %cst_74 : f32 to vector<2x128xf32>
    %295 = arith.addf %294, %293 : vector<2x128xf32>
    %296 = arith.divf %294, %295 : vector<2x128xf32>
    %297 = math.tanh %291 : vector<2x128xf32>
    %298 = vector.extract_strided_slice %296 {offsets = [0, 0], sizes = [2, 32], strides = [1, 1]} : vector<2x128xf32> to vector<2x32xf32>
    %299 = vector.extract_strided_slice %296 {offsets = [0, 32], sizes = [2, 32], strides = [1, 1]} : vector<2x128xf32> to vector<2x32xf32>
    %300 = vector.extract_strided_slice %296 {offsets = [0, 96], sizes = [2, 32], strides = [1, 1]} : vector<2x128xf32> to vector<2x32xf32>
    %301 = vector.extract_strided_slice %297 {offsets = [0, 64], sizes = [2, 32], strides = [1, 1]} : vector<2x128xf32> to vector<2x32xf32>
    %302 = arith.mulf %299, %285 : vector<2x32xf32>
    %303 = arith.mulf %298, %301 : vector<2x32xf32>
    %304 = arith.addf %302, %303 : vector<2x32xf32>
    %305 = math.tanh %304 : vector<2x32xf32>
    %306 = arith.mulf %300, %305 : vector<2x32xf32>
    %c12_75 = arith.constant 12 : index
    %c0_76 = arith.constant 0 : index
    %307 = vector.load %arg8[%c12_75, %c0_76] : memref<16x32xf32, #tpu.memory_space<vmem>>, vector<2x32xf32>
    tpu.vector_store %arg8[%c12_75, %c0_76], %306 {strides = array<i32>} : memref<16x32xf32, #tpu.memory_space<vmem>>, vector<2x32xf32>,
    %308 = vector.extract_strided_slice %170 {offsets = [14, 0], sizes = [2, 128], strides = [1, 1]} : vector<16x128xf32> to vector<2x128xf32>
    %cst_77 = arith.constant dense<0.000000e+00> : vector<2x128xf32>
    %309 = tpu.matmul %306, %172, %cst_77 {dimension_numbers = #tpu.dot_dimension_numbers<[1], [0], [0], [1], [0, 0, 1, 1], [], []>} : vector<2x32xf32>, vector<32x128xf32>, vector<2x128xf32> -> vector<2x128xf32>
    %310 = arith.addf %308, %309 : vector<2x128xf32>
    %311 = arith.negf %310 : vector<2x128xf32>
    %312 = math.exp %311 : vector<2x128xf32>
    %cst_78 = arith.constant 1.000000e+00 : f32
    %313 = vector.broadcast %cst_78 : f32 to vector<2x128xf32>
    %314 = arith.addf %313, %312 : vector<2x128xf32>
    %315 = arith.divf %313, %314 : vector<2x128xf32>
    %316 = math.tanh %310 : vector<2x128xf32>
    %317 = vector.extract_strided_slice %315 {offsets = [0, 0], sizes = [2, 32], strides = [1, 1]} : vector<2x128xf32> to vector<2x32xf32>
    %318 = vector.extract_strided_slice %315 {offsets = [0, 32], sizes = [2, 32], strides = [1, 1]} : vector<2x128xf32> to vector<2x32xf32>
    %319 = vector.extract_strided_slice %315 {offsets = [0, 96], sizes = [2, 32], strides = [1, 1]} : vector<2x128xf32> to vector<2x32xf32>
    %320 = vector.extract_strided_slice %316 {offsets = [0, 64], sizes = [2, 32], strides = [1, 1]} : vector<2x128xf32> to vector<2x32xf32>
    %321 = arith.mulf %318, %304 : vector<2x32xf32>
    %322 = arith.mulf %317, %320 : vector<2x32xf32>
    %323 = arith.addf %321, %322 : vector<2x32xf32>
    %324 = math.tanh %323 : vector<2x32xf32>
    %325 = arith.mulf %319, %324 : vector<2x32xf32>
    %c14_79 = arith.constant 14 : index
    %c0_80 = arith.constant 0 : index
    %326 = vector.load %arg8[%c14_79, %c0_80] : memref<16x32xf32, #tpu.memory_space<vmem>>, vector<2x32xf32>
    tpu.vector_store %arg8[%c14_79, %c0_80], %325 {strides = array<i32>} : memref<16x32xf32, #tpu.memory_space<vmem>>, vector<2x32xf32>,
    %c0_81 = arith.constant 0 : index
    %c0_82 = arith.constant 0 : index
    %327 = vector.load %arg8[%c0_81, %c0_82] : memref<16x32xf32, #tpu.memory_space<vmem>>, vector<16x32xf32>
    %c1_83 = arith.constant 1 : index
    %c0_84 = arith.constant 0 : index
    %c0_85 = arith.constant 0 : index
    %328 = vector.load %arg2[%c1_83, %c0_84, %c0_85] : memref<3x32x128xf32, #tpu.memory_space<vmem>>, vector<1x32x128xf32>
    %329 = vector.shape_cast %328 : vector<1x32x128xf32> to vector<32x128xf32>
    %cst_86 = arith.constant dense<0.000000e+00> : vector<16x128xf32>
    %330 = tpu.matmul %327, %329, %cst_86 {dimension_numbers = #tpu.dot_dimension_numbers<[1], [0], [0], [1], [0, 0, 1, 1], [], []>} : vector<16x32xf32>, vector<32x128xf32>, vector<16x128xf32> -> vector<16x128xf32>
    %c2_87 = arith.constant 2 : index
    %c0_88 = arith.constant 0 : index
    %c0_89 = arith.constant 0 : index
    %331 = vector.load %arg4[%c2_87, %c0_88, %c0_89] : memref<4x1x128xf32, #tpu.memory_space<vmem>>, vector<1x1x128xf32>
    %332 = vector.shape_cast %331 : vector<1x1x128xf32> to vector<1x128xf32>
    %333 = vector.broadcast %332 : vector<1x128xf32> to vector<16x128xf32>
    %334 = arith.addf %330, %333 : vector<16x128xf32>
    %c2_90 = arith.constant 2 : index
    %c0_91 = arith.constant 0 : index
    %c0_92 = arith.constant 0 : index
    %335 = vector.load %arg3[%c2_90, %c0_91, %c0_92] : memref<4x32x128xf32, #tpu.memory_space<vmem>>, vector<1x32x128xf32>
    %336 = vector.shape_cast %335 : vector<1x32x128xf32> to vector<32x128xf32>
    %cst_93 = arith.constant 0.000000e+00 : f32
    %337 = vector.broadcast %cst_93 : f32 to vector<2x32xf32>
    %cst_94 = arith.constant 0.000000e+00 : f32
    %338 = vector.broadcast %cst_94 : f32 to vector<2x32xf32>
    %339 = vector.extract_strided_slice %334 {offsets = [0, 0], sizes = [2, 128], strides = [1, 1]} : vector<16x128xf32> to vector<2x128xf32>
    %cst_95 = arith.constant dense<0.000000e+00> : vector<2x128xf32>
    %340 = tpu.matmul %337, %336, %cst_95 {dimension_numbers = #tpu.dot_dimension_numbers<[1], [0], [0], [1], [0, 0, 1, 1], [], []>} : vector<2x32xf32>, vector<32x128xf32>, vector<2x128xf32> -> vector<2x128xf32>
    %341 = arith.addf %339, %340 : vector<2x128xf32>
    %342 = arith.negf %341 : vector<2x128xf32>
    %343 = math.exp %342 : vector<2x128xf32>
    %cst_96 = arith.constant 1.000000e+00 : f32
    %344 = vector.broadcast %cst_96 : f32 to vector<2x128xf32>
    %345 = arith.addf %344, %343 : vector<2x128xf32>
    %346 = arith.divf %344, %345 : vector<2x128xf32>
    %347 = math.tanh %341 : vector<2x128xf32>
    %348 = vector.extract_strided_slice %346 {offsets = [0, 0], sizes = [2, 32], strides = [1, 1]} : vector<2x128xf32> to vector<2x32xf32>
    %349 = vector.extract_strided_slice %346 {offsets = [0, 32], sizes = [2, 32], strides = [1, 1]} : vector<2x128xf32> to vector<2x32xf32>
    %350 = vector.extract_strided_slice %346 {offsets = [0, 96], sizes = [2, 32], strides = [1, 1]} : vector<2x128xf32> to vector<2x32xf32>
    %351 = vector.extract_strided_slice %347 {offsets = [0, 64], sizes = [2, 32], strides = [1, 1]} : vector<2x128xf32> to vector<2x32xf32>
    %352 = arith.mulf %349, %338 : vector<2x32xf32>
    %353 = arith.mulf %348, %351 : vector<2x32xf32>
    %354 = arith.addf %352, %353 : vector<2x32xf32>
    %355 = math.tanh %354 : vector<2x32xf32>
    %356 = arith.mulf %350, %355 : vector<2x32xf32>
    %c0_97 = arith.constant 0 : index
    %c0_98 = arith.constant 0 : index
    %357 = vector.load %arg8[%c0_97, %c0_98] : memref<16x32xf32, #tpu.memory_space<vmem>>, vector<2x32xf32>
    tpu.vector_store %arg8[%c0_97, %c0_98], %356 {strides = array<i32>} : memref<16x32xf32, #tpu.memory_space<vmem>>, vector<2x32xf32>,
    %358 = vector.extract_strided_slice %334 {offsets = [2, 0], sizes = [2, 128], strides = [1, 1]} : vector<16x128xf32> to vector<2x128xf32>
    %cst_99 = arith.constant dense<0.000000e+00> : vector<2x128xf32>
    %359 = tpu.matmul %356, %336, %cst_99 {dimension_numbers = #tpu.dot_dimension_numbers<[1], [0], [0], [1], [0, 0, 1, 1], [], []>} : vector<2x32xf32>, vector<32x128xf32>, vector<2x128xf32> -> vector<2x128xf32>
    %360 = arith.addf %358, %359 : vector<2x128xf32>
    %361 = arith.negf %360 : vector<2x128xf32>
    %362 = math.exp %361 : vector<2x128xf32>
    %cst_100 = arith.constant 1.000000e+00 : f32
    %363 = vector.broadcast %cst_100 : f32 to vector<2x128xf32>
    %364 = arith.addf %363, %362 : vector<2x128xf32>
    %365 = arith.divf %363, %364 : vector<2x128xf32>
    %366 = math.tanh %360 : vector<2x128xf32>
    %367 = vector.extract_strided_slice %365 {offsets = [0, 0], sizes = [2, 32], strides = [1, 1]} : vector<2x128xf32> to vector<2x32xf32>
    %368 = vector.extract_strided_slice %365 {offsets = [0, 32], sizes = [2, 32], strides = [1, 1]} : vector<2x128xf32> to vector<2x32xf32>
    %369 = vector.extract_strided_slice %365 {offsets = [0, 96], sizes = [2, 32], strides = [1, 1]} : vector<2x128xf32> to vector<2x32xf32>
    %370 = vector.extract_strided_slice %366 {offsets = [0, 64], sizes = [2, 32], strides = [1, 1]} : vector<2x128xf32> to vector<2x32xf32>
    %371 = arith.mulf %368, %354 : vector<2x32xf32>
    %372 = arith.mulf %367, %370 : vector<2x32xf32>
    %373 = arith.addf %371, %372 : vector<2x32xf32>
    %374 = math.tanh %373 : vector<2x32xf32>
    %375 = arith.mulf %369, %374 : vector<2x32xf32>
    %c2_101 = arith.constant 2 : index
    %c0_102 = arith.constant 0 : index
    %376 = vector.load %arg8[%c2_101, %c0_102] : memref<16x32xf32, #tpu.memory_space<vmem>>, vector<2x32xf32>
    tpu.vector_store %arg8[%c2_101, %c0_102], %375 {strides = array<i32>} : memref<16x32xf32, #tpu.memory_space<vmem>>, vector<2x32xf32>,
    %377 = vector.extract_strided_slice %334 {offsets = [4, 0], sizes = [2, 128], strides = [1, 1]} : vector<16x128xf32> to vector<2x128xf32>
    %cst_103 = arith.constant dense<0.000000e+00> : vector<2x128xf32>
    %378 = tpu.matmul %375, %336, %cst_103 {dimension_numbers = #tpu.dot_dimension_numbers<[1], [0], [0], [1], [0, 0, 1, 1], [], []>} : vector<2x32xf32>, vector<32x128xf32>, vector<2x128xf32> -> vector<2x128xf32>
    %379 = arith.addf %377, %378 : vector<2x128xf32>
    %380 = arith.negf %379 : vector<2x128xf32>
    %381 = math.exp %380 : vector<2x128xf32>
    %cst_104 = arith.constant 1.000000e+00 : f32
    %382 = vector.broadcast %cst_104 : f32 to vector<2x128xf32>
    %383 = arith.addf %382, %381 : vector<2x128xf32>
    %384 = arith.divf %382, %383 : vector<2x128xf32>
    %385 = math.tanh %379 : vector<2x128xf32>
    %386 = vector.extract_strided_slice %384 {offsets = [0, 0], sizes = [2, 32], strides = [1, 1]} : vector<2x128xf32> to vector<2x32xf32>
    %387 = vector.extract_strided_slice %384 {offsets = [0, 32], sizes = [2, 32], strides = [1, 1]} : vector<2x128xf32> to vector<2x32xf32>
    %388 = vector.extract_strided_slice %384 {offsets = [0, 96], sizes = [2, 32], strides = [1, 1]} : vector<2x128xf32> to vector<2x32xf32>
    %389 = vector.extract_strided_slice %385 {offsets = [0, 64], sizes = [2, 32], strides = [1, 1]} : vector<2x128xf32> to vector<2x32xf32>
    %390 = arith.mulf %387, %373 : vector<2x32xf32>
    %391 = arith.mulf %386, %389 : vector<2x32xf32>
    %392 = arith.addf %390, %391 : vector<2x32xf32>
    %393 = math.tanh %392 : vector<2x32xf32>
    %394 = arith.mulf %388, %393 : vector<2x32xf32>
    %c4_105 = arith.constant 4 : index
    %c0_106 = arith.constant 0 : index
    %395 = vector.load %arg8[%c4_105, %c0_106] : memref<16x32xf32, #tpu.memory_space<vmem>>, vector<2x32xf32>
    tpu.vector_store %arg8[%c4_105, %c0_106], %394 {strides = array<i32>} : memref<16x32xf32, #tpu.memory_space<vmem>>, vector<2x32xf32>,
    %396 = vector.extract_strided_slice %334 {offsets = [6, 0], sizes = [2, 128], strides = [1, 1]} : vector<16x128xf32> to vector<2x128xf32>
    %cst_107 = arith.constant dense<0.000000e+00> : vector<2x128xf32>
    %397 = tpu.matmul %394, %336, %cst_107 {dimension_numbers = #tpu.dot_dimension_numbers<[1], [0], [0], [1], [0, 0, 1, 1], [], []>} : vector<2x32xf32>, vector<32x128xf32>, vector<2x128xf32> -> vector<2x128xf32>
    %398 = arith.addf %396, %397 : vector<2x128xf32>
    %399 = arith.negf %398 : vector<2x128xf32>
    %400 = math.exp %399 : vector<2x128xf32>
    %cst_108 = arith.constant 1.000000e+00 : f32
    %401 = vector.broadcast %cst_108 : f32 to vector<2x128xf32>
    %402 = arith.addf %401, %400 : vector<2x128xf32>
    %403 = arith.divf %401, %402 : vector<2x128xf32>
    %404 = math.tanh %398 : vector<2x128xf32>
    %405 = vector.extract_strided_slice %403 {offsets = [0, 0], sizes = [2, 32], strides = [1, 1]} : vector<2x128xf32> to vector<2x32xf32>
    %406 = vector.extract_strided_slice %403 {offsets = [0, 32], sizes = [2, 32], strides = [1, 1]} : vector<2x128xf32> to vector<2x32xf32>
    %407 = vector.extract_strided_slice %403 {offsets = [0, 96], sizes = [2, 32], strides = [1, 1]} : vector<2x128xf32> to vector<2x32xf32>
    %408 = vector.extract_strided_slice %404 {offsets = [0, 64], sizes = [2, 32], strides = [1, 1]} : vector<2x128xf32> to vector<2x32xf32>
    %409 = arith.mulf %406, %392 : vector<2x32xf32>
    %410 = arith.mulf %405, %408 : vector<2x32xf32>
    %411 = arith.addf %409, %410 : vector<2x32xf32>
    %412 = math.tanh %411 : vector<2x32xf32>
    %413 = arith.mulf %407, %412 : vector<2x32xf32>
    %c6_109 = arith.constant 6 : index
    %c0_110 = arith.constant 0 : index
    %414 = vector.load %arg8[%c6_109, %c0_110] : memref<16x32xf32, #tpu.memory_space<vmem>>, vector<2x32xf32>
    tpu.vector_store %arg8[%c6_109, %c0_110], %413 {strides = array<i32>} : memref<16x32xf32, #tpu.memory_space<vmem>>, vector<2x32xf32>,
    %415 = vector.extract_strided_slice %334 {offsets = [8, 0], sizes = [2, 128], strides = [1, 1]} : vector<16x128xf32> to vector<2x128xf32>
    %cst_111 = arith.constant dense<0.000000e+00> : vector<2x128xf32>
    %416 = tpu.matmul %413, %336, %cst_111 {dimension_numbers = #tpu.dot_dimension_numbers<[1], [0], [0], [1], [0, 0, 1, 1], [], []>} : vector<2x32xf32>, vector<32x128xf32>, vector<2x128xf32> -> vector<2x128xf32>
    %417 = arith.addf %415, %416 : vector<2x128xf32>
    %418 = arith.negf %417 : vector<2x128xf32>
    %419 = math.exp %418 : vector<2x128xf32>
    %cst_112 = arith.constant 1.000000e+00 : f32
    %420 = vector.broadcast %cst_112 : f32 to vector<2x128xf32>
    %421 = arith.addf %420, %419 : vector<2x128xf32>
    %422 = arith.divf %420, %421 : vector<2x128xf32>
    %423 = math.tanh %417 : vector<2x128xf32>
    %424 = vector.extract_strided_slice %422 {offsets = [0, 0], sizes = [2, 32], strides = [1, 1]} : vector<2x128xf32> to vector<2x32xf32>
    %425 = vector.extract_strided_slice %422 {offsets = [0, 32], sizes = [2, 32], strides = [1, 1]} : vector<2x128xf32> to vector<2x32xf32>
    %426 = vector.extract_strided_slice %422 {offsets = [0, 96], sizes = [2, 32], strides = [1, 1]} : vector<2x128xf32> to vector<2x32xf32>
    %427 = vector.extract_strided_slice %423 {offsets = [0, 64], sizes = [2, 32], strides = [1, 1]} : vector<2x128xf32> to vector<2x32xf32>
    %428 = arith.mulf %425, %411 : vector<2x32xf32>
    %429 = arith.mulf %424, %427 : vector<2x32xf32>
    %430 = arith.addf %428, %429 : vector<2x32xf32>
    %431 = math.tanh %430 : vector<2x32xf32>
    %432 = arith.mulf %426, %431 : vector<2x32xf32>
    %c8_113 = arith.constant 8 : index
    %c0_114 = arith.constant 0 : index
    %433 = vector.load %arg8[%c8_113, %c0_114] : memref<16x32xf32, #tpu.memory_space<vmem>>, vector<2x32xf32>
    tpu.vector_store %arg8[%c8_113, %c0_114], %432 {strides = array<i32>} : memref<16x32xf32, #tpu.memory_space<vmem>>, vector<2x32xf32>,
    %434 = vector.extract_strided_slice %334 {offsets = [10, 0], sizes = [2, 128], strides = [1, 1]} : vector<16x128xf32> to vector<2x128xf32>
    %cst_115 = arith.constant dense<0.000000e+00> : vector<2x128xf32>
    %435 = tpu.matmul %432, %336, %cst_115 {dimension_numbers = #tpu.dot_dimension_numbers<[1], [0], [0], [1], [0, 0, 1, 1], [], []>} : vector<2x32xf32>, vector<32x128xf32>, vector<2x128xf32> -> vector<2x128xf32>
    %436 = arith.addf %434, %435 : vector<2x128xf32>
    %437 = arith.negf %436 : vector<2x128xf32>
    %438 = math.exp %437 : vector<2x128xf32>
    %cst_116 = arith.constant 1.000000e+00 : f32
    %439 = vector.broadcast %cst_116 : f32 to vector<2x128xf32>
    %440 = arith.addf %439, %438 : vector<2x128xf32>
    %441 = arith.divf %439, %440 : vector<2x128xf32>
    %442 = math.tanh %436 : vector<2x128xf32>
    %443 = vector.extract_strided_slice %441 {offsets = [0, 0], sizes = [2, 32], strides = [1, 1]} : vector<2x128xf32> to vector<2x32xf32>
    %444 = vector.extract_strided_slice %441 {offsets = [0, 32], sizes = [2, 32], strides = [1, 1]} : vector<2x128xf32> to vector<2x32xf32>
    %445 = vector.extract_strided_slice %441 {offsets = [0, 96], sizes = [2, 32], strides = [1, 1]} : vector<2x128xf32> to vector<2x32xf32>
    %446 = vector.extract_strided_slice %442 {offsets = [0, 64], sizes = [2, 32], strides = [1, 1]} : vector<2x128xf32> to vector<2x32xf32>
    %447 = arith.mulf %444, %430 : vector<2x32xf32>
    %448 = arith.mulf %443, %446 : vector<2x32xf32>
    %449 = arith.addf %447, %448 : vector<2x32xf32>
    %450 = math.tanh %449 : vector<2x32xf32>
    %451 = arith.mulf %445, %450 : vector<2x32xf32>
    %c10_117 = arith.constant 10 : index
    %c0_118 = arith.constant 0 : index
    %452 = vector.load %arg8[%c10_117, %c0_118] : memref<16x32xf32, #tpu.memory_space<vmem>>, vector<2x32xf32>
    tpu.vector_store %arg8[%c10_117, %c0_118], %451 {strides = array<i32>} : memref<16x32xf32, #tpu.memory_space<vmem>>, vector<2x32xf32>,
    %453 = vector.extract_strided_slice %334 {offsets = [12, 0], sizes = [2, 128], strides = [1, 1]} : vector<16x128xf32> to vector<2x128xf32>
    %cst_119 = arith.constant dense<0.000000e+00> : vector<2x128xf32>
    %454 = tpu.matmul %451, %336, %cst_119 {dimension_numbers = #tpu.dot_dimension_numbers<[1], [0], [0], [1], [0, 0, 1, 1], [], []>} : vector<2x32xf32>, vector<32x128xf32>, vector<2x128xf32> -> vector<2x128xf32>
    %455 = arith.addf %453, %454 : vector<2x128xf32>
    %456 = arith.negf %455 : vector<2x128xf32>
    %457 = math.exp %456 : vector<2x128xf32>
    %cst_120 = arith.constant 1.000000e+00 : f32
    %458 = vector.broadcast %cst_120 : f32 to vector<2x128xf32>
    %459 = arith.addf %458, %457 : vector<2x128xf32>
    %460 = arith.divf %458, %459 : vector<2x128xf32>
    %461 = math.tanh %455 : vector<2x128xf32>
    %462 = vector.extract_strided_slice %460 {offsets = [0, 0], sizes = [2, 32], strides = [1, 1]} : vector<2x128xf32> to vector<2x32xf32>
    %463 = vector.extract_strided_slice %460 {offsets = [0, 32], sizes = [2, 32], strides = [1, 1]} : vector<2x128xf32> to vector<2x32xf32>
    %464 = vector.extract_strided_slice %460 {offsets = [0, 96], sizes = [2, 32], strides = [1, 1]} : vector<2x128xf32> to vector<2x32xf32>
    %465 = vector.extract_strided_slice %461 {offsets = [0, 64], sizes = [2, 32], strides = [1, 1]} : vector<2x128xf32> to vector<2x32xf32>
    %466 = arith.mulf %463, %449 : vector<2x32xf32>
    %467 = arith.mulf %462, %465 : vector<2x32xf32>
    %468 = arith.addf %466, %467 : vector<2x32xf32>
    %469 = math.tanh %468 : vector<2x32xf32>
    %470 = arith.mulf %464, %469 : vector<2x32xf32>
    %c12_121 = arith.constant 12 : index
    %c0_122 = arith.constant 0 : index
    %471 = vector.load %arg8[%c12_121, %c0_122] : memref<16x32xf32, #tpu.memory_space<vmem>>, vector<2x32xf32>
    tpu.vector_store %arg8[%c12_121, %c0_122], %470 {strides = array<i32>} : memref<16x32xf32, #tpu.memory_space<vmem>>, vector<2x32xf32>,
    %472 = vector.extract_strided_slice %334 {offsets = [14, 0], sizes = [2, 128], strides = [1, 1]} : vector<16x128xf32> to vector<2x128xf32>
    %cst_123 = arith.constant dense<0.000000e+00> : vector<2x128xf32>
    %473 = tpu.matmul %470, %336, %cst_123 {dimension_numbers = #tpu.dot_dimension_numbers<[1], [0], [0], [1], [0, 0, 1, 1], [], []>} : vector<2x32xf32>, vector<32x128xf32>, vector<2x128xf32> -> vector<2x128xf32>
    %474 = arith.addf %472, %473 : vector<2x128xf32>
    %475 = arith.negf %474 : vector<2x128xf32>
    %476 = math.exp %475 : vector<2x128xf32>
    %cst_124 = arith.constant 1.000000e+00 : f32
    %477 = vector.broadcast %cst_124 : f32 to vector<2x128xf32>
    %478 = arith.addf %477, %476 : vector<2x128xf32>
    %479 = arith.divf %477, %478 : vector<2x128xf32>
    %480 = math.tanh %474 : vector<2x128xf32>
    %481 = vector.extract_strided_slice %479 {offsets = [0, 0], sizes = [2, 32], strides = [1, 1]} : vector<2x128xf32> to vector<2x32xf32>
    %482 = vector.extract_strided_slice %479 {offsets = [0, 32], sizes = [2, 32], strides = [1, 1]} : vector<2x128xf32> to vector<2x32xf32>
    %483 = vector.extract_strided_slice %479 {offsets = [0, 96], sizes = [2, 32], strides = [1, 1]} : vector<2x128xf32> to vector<2x32xf32>
    %484 = vector.extract_strided_slice %480 {offsets = [0, 64], sizes = [2, 32], strides = [1, 1]} : vector<2x128xf32> to vector<2x32xf32>
    %485 = arith.mulf %482, %468 : vector<2x32xf32>
    %486 = arith.mulf %481, %484 : vector<2x32xf32>
    %487 = arith.addf %485, %486 : vector<2x32xf32>
    %488 = math.tanh %487 : vector<2x32xf32>
    %489 = arith.mulf %483, %488 : vector<2x32xf32>
    %c14_125 = arith.constant 14 : index
    %c0_126 = arith.constant 0 : index
    %490 = vector.load %arg8[%c14_125, %c0_126] : memref<16x32xf32, #tpu.memory_space<vmem>>, vector<2x32xf32>
    tpu.vector_store %arg8[%c14_125, %c0_126], %489 {strides = array<i32>} : memref<16x32xf32, #tpu.memory_space<vmem>>, vector<2x32xf32>,
    %c0_127 = arith.constant 0 : index
    %c0_128 = arith.constant 0 : index
    %491 = vector.load %arg8[%c0_127, %c0_128] : memref<16x32xf32, #tpu.memory_space<vmem>>, vector<16x32xf32>
    %c2_129 = arith.constant 2 : index
    %c0_130 = arith.constant 0 : index
    %c0_131 = arith.constant 0 : index
    %492 = vector.load %arg2[%c2_129, %c0_130, %c0_131] : memref<3x32x128xf32, #tpu.memory_space<vmem>>, vector<1x32x128xf32>
    %493 = vector.shape_cast %492 : vector<1x32x128xf32> to vector<32x128xf32>
    %cst_132 = arith.constant dense<0.000000e+00> : vector<16x128xf32>
    %494 = tpu.matmul %491, %493, %cst_132 {dimension_numbers = #tpu.dot_dimension_numbers<[1], [0], [0], [1], [0, 0, 1, 1], [], []>} : vector<16x32xf32>, vector<32x128xf32>, vector<16x128xf32> -> vector<16x128xf32>
    %c3 = arith.constant 3 : index
    %c0_133 = arith.constant 0 : index
    %c0_134 = arith.constant 0 : index
    %495 = vector.load %arg4[%c3, %c0_133, %c0_134] : memref<4x1x128xf32, #tpu.memory_space<vmem>>, vector<1x1x128xf32>
    %496 = vector.shape_cast %495 : vector<1x1x128xf32> to vector<1x128xf32>
    %497 = vector.broadcast %496 : vector<1x128xf32> to vector<16x128xf32>
    %498 = arith.addf %494, %497 : vector<16x128xf32>
    %c3_135 = arith.constant 3 : index
    %c0_136 = arith.constant 0 : index
    %c0_137 = arith.constant 0 : index
    %499 = vector.load %arg3[%c3_135, %c0_136, %c0_137] : memref<4x32x128xf32, #tpu.memory_space<vmem>>, vector<1x32x128xf32>
    %500 = vector.shape_cast %499 : vector<1x32x128xf32> to vector<32x128xf32>
    %cst_138 = arith.constant 0.000000e+00 : f32
    %501 = vector.broadcast %cst_138 : f32 to vector<2x32xf32>
    %cst_139 = arith.constant 0.000000e+00 : f32
    %502 = vector.broadcast %cst_139 : f32 to vector<2x32xf32>
    %503 = vector.extract_strided_slice %498 {offsets = [0, 0], sizes = [2, 128], strides = [1, 1]} : vector<16x128xf32> to vector<2x128xf32>
    %cst_140 = arith.constant dense<0.000000e+00> : vector<2x128xf32>
    %504 = tpu.matmul %501, %500, %cst_140 {dimension_numbers = #tpu.dot_dimension_numbers<[1], [0], [0], [1], [0, 0, 1, 1], [], []>} : vector<2x32xf32>, vector<32x128xf32>, vector<2x128xf32> -> vector<2x128xf32>
    %505 = arith.addf %503, %504 : vector<2x128xf32>
    %506 = arith.negf %505 : vector<2x128xf32>
    %507 = math.exp %506 : vector<2x128xf32>
    %cst_141 = arith.constant 1.000000e+00 : f32
    %508 = vector.broadcast %cst_141 : f32 to vector<2x128xf32>
    %509 = arith.addf %508, %507 : vector<2x128xf32>
    %510 = arith.divf %508, %509 : vector<2x128xf32>
    %511 = math.tanh %505 : vector<2x128xf32>
    %512 = vector.extract_strided_slice %510 {offsets = [0, 0], sizes = [2, 32], strides = [1, 1]} : vector<2x128xf32> to vector<2x32xf32>
    %513 = vector.extract_strided_slice %510 {offsets = [0, 32], sizes = [2, 32], strides = [1, 1]} : vector<2x128xf32> to vector<2x32xf32>
    %514 = vector.extract_strided_slice %510 {offsets = [0, 96], sizes = [2, 32], strides = [1, 1]} : vector<2x128xf32> to vector<2x32xf32>
    %515 = vector.extract_strided_slice %511 {offsets = [0, 64], sizes = [2, 32], strides = [1, 1]} : vector<2x128xf32> to vector<2x32xf32>
    %516 = arith.mulf %513, %502 : vector<2x32xf32>
    %517 = arith.mulf %512, %515 : vector<2x32xf32>
    %518 = arith.addf %516, %517 : vector<2x32xf32>
    %519 = math.tanh %518 : vector<2x32xf32>
    %520 = arith.mulf %514, %519 : vector<2x32xf32>
    %521 = vector.extract_strided_slice %498 {offsets = [2, 0], sizes = [2, 128], strides = [1, 1]} : vector<16x128xf32> to vector<2x128xf32>
    %cst_142 = arith.constant dense<0.000000e+00> : vector<2x128xf32>
    %522 = tpu.matmul %520, %500, %cst_142 {dimension_numbers = #tpu.dot_dimension_numbers<[1], [0], [0], [1], [0, 0, 1, 1], [], []>} : vector<2x32xf32>, vector<32x128xf32>, vector<2x128xf32> -> vector<2x128xf32>
    %523 = arith.addf %521, %522 : vector<2x128xf32>
    %524 = arith.negf %523 : vector<2x128xf32>
    %525 = math.exp %524 : vector<2x128xf32>
    %cst_143 = arith.constant 1.000000e+00 : f32
    %526 = vector.broadcast %cst_143 : f32 to vector<2x128xf32>
    %527 = arith.addf %526, %525 : vector<2x128xf32>
    %528 = arith.divf %526, %527 : vector<2x128xf32>
    %529 = math.tanh %523 : vector<2x128xf32>
    %530 = vector.extract_strided_slice %528 {offsets = [0, 0], sizes = [2, 32], strides = [1, 1]} : vector<2x128xf32> to vector<2x32xf32>
    %531 = vector.extract_strided_slice %528 {offsets = [0, 32], sizes = [2, 32], strides = [1, 1]} : vector<2x128xf32> to vector<2x32xf32>
    %532 = vector.extract_strided_slice %528 {offsets = [0, 96], sizes = [2, 32], strides = [1, 1]} : vector<2x128xf32> to vector<2x32xf32>
    %533 = vector.extract_strided_slice %529 {offsets = [0, 64], sizes = [2, 32], strides = [1, 1]} : vector<2x128xf32> to vector<2x32xf32>
    %534 = arith.mulf %531, %518 : vector<2x32xf32>
    %535 = arith.mulf %530, %533 : vector<2x32xf32>
    %536 = arith.addf %534, %535 : vector<2x32xf32>
    %537 = math.tanh %536 : vector<2x32xf32>
    %538 = arith.mulf %532, %537 : vector<2x32xf32>
    %539 = vector.extract_strided_slice %498 {offsets = [4, 0], sizes = [2, 128], strides = [1, 1]} : vector<16x128xf32> to vector<2x128xf32>
    %cst_144 = arith.constant dense<0.000000e+00> : vector<2x128xf32>
    %540 = tpu.matmul %538, %500, %cst_144 {dimension_numbers = #tpu.dot_dimension_numbers<[1], [0], [0], [1], [0, 0, 1, 1], [], []>} : vector<2x32xf32>, vector<32x128xf32>, vector<2x128xf32> -> vector<2x128xf32>
    %541 = arith.addf %539, %540 : vector<2x128xf32>
    %542 = arith.negf %541 : vector<2x128xf32>
    %543 = math.exp %542 : vector<2x128xf32>
    %cst_145 = arith.constant 1.000000e+00 : f32
    %544 = vector.broadcast %cst_145 : f32 to vector<2x128xf32>
    %545 = arith.addf %544, %543 : vector<2x128xf32>
    %546 = arith.divf %544, %545 : vector<2x128xf32>
    %547 = math.tanh %541 : vector<2x128xf32>
    %548 = vector.extract_strided_slice %546 {offsets = [0, 0], sizes = [2, 32], strides = [1, 1]} : vector<2x128xf32> to vector<2x32xf32>
    %549 = vector.extract_strided_slice %546 {offsets = [0, 32], sizes = [2, 32], strides = [1, 1]} : vector<2x128xf32> to vector<2x32xf32>
    %550 = vector.extract_strided_slice %546 {offsets = [0, 96], sizes = [2, 32], strides = [1, 1]} : vector<2x128xf32> to vector<2x32xf32>
    %551 = vector.extract_strided_slice %547 {offsets = [0, 64], sizes = [2, 32], strides = [1, 1]} : vector<2x128xf32> to vector<2x32xf32>
    %552 = arith.mulf %549, %536 : vector<2x32xf32>
    %553 = arith.mulf %548, %551 : vector<2x32xf32>
    %554 = arith.addf %552, %553 : vector<2x32xf32>
    %555 = math.tanh %554 : vector<2x32xf32>
    %556 = arith.mulf %550, %555 : vector<2x32xf32>
    %557 = vector.extract_strided_slice %498 {offsets = [6, 0], sizes = [2, 128], strides = [1, 1]} : vector<16x128xf32> to vector<2x128xf32>
    %cst_146 = arith.constant dense<0.000000e+00> : vector<2x128xf32>
    %558 = tpu.matmul %556, %500, %cst_146 {dimension_numbers = #tpu.dot_dimension_numbers<[1], [0], [0], [1], [0, 0, 1, 1], [], []>} : vector<2x32xf32>, vector<32x128xf32>, vector<2x128xf32> -> vector<2x128xf32>
    %559 = arith.addf %557, %558 : vector<2x128xf32>
    %560 = arith.negf %559 : vector<2x128xf32>
    %561 = math.exp %560 : vector<2x128xf32>
    %cst_147 = arith.constant 1.000000e+00 : f32
    %562 = vector.broadcast %cst_147 : f32 to vector<2x128xf32>
    %563 = arith.addf %562, %561 : vector<2x128xf32>
    %564 = arith.divf %562, %563 : vector<2x128xf32>
    %565 = math.tanh %559 : vector<2x128xf32>
    %566 = vector.extract_strided_slice %564 {offsets = [0, 0], sizes = [2, 32], strides = [1, 1]} : vector<2x128xf32> to vector<2x32xf32>
    %567 = vector.extract_strided_slice %564 {offsets = [0, 32], sizes = [2, 32], strides = [1, 1]} : vector<2x128xf32> to vector<2x32xf32>
    %568 = vector.extract_strided_slice %564 {offsets = [0, 96], sizes = [2, 32], strides = [1, 1]} : vector<2x128xf32> to vector<2x32xf32>
    %569 = vector.extract_strided_slice %565 {offsets = [0, 64], sizes = [2, 32], strides = [1, 1]} : vector<2x128xf32> to vector<2x32xf32>
    %570 = arith.mulf %567, %554 : vector<2x32xf32>
    %571 = arith.mulf %566, %569 : vector<2x32xf32>
    %572 = arith.addf %570, %571 : vector<2x32xf32>
    %573 = math.tanh %572 : vector<2x32xf32>
    %574 = arith.mulf %568, %573 : vector<2x32xf32>
    %575 = vector.extract_strided_slice %498 {offsets = [8, 0], sizes = [2, 128], strides = [1, 1]} : vector<16x128xf32> to vector<2x128xf32>
    %cst_148 = arith.constant dense<0.000000e+00> : vector<2x128xf32>
    %576 = tpu.matmul %574, %500, %cst_148 {dimension_numbers = #tpu.dot_dimension_numbers<[1], [0], [0], [1], [0, 0, 1, 1], [], []>} : vector<2x32xf32>, vector<32x128xf32>, vector<2x128xf32> -> vector<2x128xf32>
    %577 = arith.addf %575, %576 : vector<2x128xf32>
    %578 = arith.negf %577 : vector<2x128xf32>
    %579 = math.exp %578 : vector<2x128xf32>
    %cst_149 = arith.constant 1.000000e+00 : f32
    %580 = vector.broadcast %cst_149 : f32 to vector<2x128xf32>
    %581 = arith.addf %580, %579 : vector<2x128xf32>
    %582 = arith.divf %580, %581 : vector<2x128xf32>
    %583 = math.tanh %577 : vector<2x128xf32>
    %584 = vector.extract_strided_slice %582 {offsets = [0, 0], sizes = [2, 32], strides = [1, 1]} : vector<2x128xf32> to vector<2x32xf32>
    %585 = vector.extract_strided_slice %582 {offsets = [0, 32], sizes = [2, 32], strides = [1, 1]} : vector<2x128xf32> to vector<2x32xf32>
    %586 = vector.extract_strided_slice %582 {offsets = [0, 96], sizes = [2, 32], strides = [1, 1]} : vector<2x128xf32> to vector<2x32xf32>
    %587 = vector.extract_strided_slice %583 {offsets = [0, 64], sizes = [2, 32], strides = [1, 1]} : vector<2x128xf32> to vector<2x32xf32>
    %588 = arith.mulf %585, %572 : vector<2x32xf32>
    %589 = arith.mulf %584, %587 : vector<2x32xf32>
    %590 = arith.addf %588, %589 : vector<2x32xf32>
    %591 = math.tanh %590 : vector<2x32xf32>
    %592 = arith.mulf %586, %591 : vector<2x32xf32>
    %593 = vector.extract_strided_slice %498 {offsets = [10, 0], sizes = [2, 128], strides = [1, 1]} : vector<16x128xf32> to vector<2x128xf32>
    %cst_150 = arith.constant dense<0.000000e+00> : vector<2x128xf32>
    %594 = tpu.matmul %592, %500, %cst_150 {dimension_numbers = #tpu.dot_dimension_numbers<[1], [0], [0], [1], [0, 0, 1, 1], [], []>} : vector<2x32xf32>, vector<32x128xf32>, vector<2x128xf32> -> vector<2x128xf32>
    %595 = arith.addf %593, %594 : vector<2x128xf32>
    %596 = arith.negf %595 : vector<2x128xf32>
    %597 = math.exp %596 : vector<2x128xf32>
    %cst_151 = arith.constant 1.000000e+00 : f32
    %598 = vector.broadcast %cst_151 : f32 to vector<2x128xf32>
    %599 = arith.addf %598, %597 : vector<2x128xf32>
    %600 = arith.divf %598, %599 : vector<2x128xf32>
    %601 = math.tanh %595 : vector<2x128xf32>
    %602 = vector.extract_strided_slice %600 {offsets = [0, 0], sizes = [2, 32], strides = [1, 1]} : vector<2x128xf32> to vector<2x32xf32>
    %603 = vector.extract_strided_slice %600 {offsets = [0, 32], sizes = [2, 32], strides = [1, 1]} : vector<2x128xf32> to vector<2x32xf32>
    %604 = vector.extract_strided_slice %600 {offsets = [0, 96], sizes = [2, 32], strides = [1, 1]} : vector<2x128xf32> to vector<2x32xf32>
    %605 = vector.extract_strided_slice %601 {offsets = [0, 64], sizes = [2, 32], strides = [1, 1]} : vector<2x128xf32> to vector<2x32xf32>
    %606 = arith.mulf %603, %590 : vector<2x32xf32>
    %607 = arith.mulf %602, %605 : vector<2x32xf32>
    %608 = arith.addf %606, %607 : vector<2x32xf32>
    %609 = math.tanh %608 : vector<2x32xf32>
    %610 = arith.mulf %604, %609 : vector<2x32xf32>
    %611 = vector.extract_strided_slice %498 {offsets = [12, 0], sizes = [2, 128], strides = [1, 1]} : vector<16x128xf32> to vector<2x128xf32>
    %cst_152 = arith.constant dense<0.000000e+00> : vector<2x128xf32>
    %612 = tpu.matmul %610, %500, %cst_152 {dimension_numbers = #tpu.dot_dimension_numbers<[1], [0], [0], [1], [0, 0, 1, 1], [], []>} : vector<2x32xf32>, vector<32x128xf32>, vector<2x128xf32> -> vector<2x128xf32>
    %613 = arith.addf %611, %612 : vector<2x128xf32>
    %614 = arith.negf %613 : vector<2x128xf32>
    %615 = math.exp %614 : vector<2x128xf32>
    %cst_153 = arith.constant 1.000000e+00 : f32
    %616 = vector.broadcast %cst_153 : f32 to vector<2x128xf32>
    %617 = arith.addf %616, %615 : vector<2x128xf32>
    %618 = arith.divf %616, %617 : vector<2x128xf32>
    %619 = math.tanh %613 : vector<2x128xf32>
    %620 = vector.extract_strided_slice %618 {offsets = [0, 0], sizes = [2, 32], strides = [1, 1]} : vector<2x128xf32> to vector<2x32xf32>
    %621 = vector.extract_strided_slice %618 {offsets = [0, 32], sizes = [2, 32], strides = [1, 1]} : vector<2x128xf32> to vector<2x32xf32>
    %622 = vector.extract_strided_slice %618 {offsets = [0, 96], sizes = [2, 32], strides = [1, 1]} : vector<2x128xf32> to vector<2x32xf32>
    %623 = vector.extract_strided_slice %619 {offsets = [0, 64], sizes = [2, 32], strides = [1, 1]} : vector<2x128xf32> to vector<2x32xf32>
    %624 = arith.mulf %621, %608 : vector<2x32xf32>
    %625 = arith.mulf %620, %623 : vector<2x32xf32>
    %626 = arith.addf %624, %625 : vector<2x32xf32>
    %627 = math.tanh %626 : vector<2x32xf32>
    %628 = arith.mulf %622, %627 : vector<2x32xf32>
    %629 = vector.extract_strided_slice %498 {offsets = [14, 0], sizes = [2, 128], strides = [1, 1]} : vector<16x128xf32> to vector<2x128xf32>
    %cst_154 = arith.constant dense<0.000000e+00> : vector<2x128xf32>
    %630 = tpu.matmul %628, %500, %cst_154 {dimension_numbers = #tpu.dot_dimension_numbers<[1], [0], [0], [1], [0, 0, 1, 1], [], []>} : vector<2x32xf32>, vector<32x128xf32>, vector<2x128xf32> -> vector<2x128xf32>
    %631 = arith.addf %629, %630 : vector<2x128xf32>
    %632 = arith.negf %631 : vector<2x128xf32>
    %633 = math.exp %632 : vector<2x128xf32>
    %cst_155 = arith.constant 1.000000e+00 : f32
    %634 = vector.broadcast %cst_155 : f32 to vector<2x128xf32>
    %635 = arith.addf %634, %633 : vector<2x128xf32>
    %636 = arith.divf %634, %635 : vector<2x128xf32>
    %637 = math.tanh %631 : vector<2x128xf32>
    %638 = vector.extract_strided_slice %636 {offsets = [0, 0], sizes = [2, 32], strides = [1, 1]} : vector<2x128xf32> to vector<2x32xf32>
    %639 = vector.extract_strided_slice %636 {offsets = [0, 32], sizes = [2, 32], strides = [1, 1]} : vector<2x128xf32> to vector<2x32xf32>
    %640 = vector.extract_strided_slice %636 {offsets = [0, 96], sizes = [2, 32], strides = [1, 1]} : vector<2x128xf32> to vector<2x32xf32>
    %641 = vector.extract_strided_slice %637 {offsets = [0, 64], sizes = [2, 32], strides = [1, 1]} : vector<2x128xf32> to vector<2x32xf32>
    %642 = arith.mulf %639, %626 : vector<2x32xf32>
    %643 = arith.mulf %638, %641 : vector<2x32xf32>
    %644 = arith.addf %642, %643 : vector<2x32xf32>
    %645 = math.tanh %644 : vector<2x32xf32>
    %646 = arith.mulf %640, %645 : vector<2x32xf32>
    %c0_156 = arith.constant 0 : index
    %c0_157 = arith.constant 0 : index
    %647 = vector.load %arg5[%c0_156, %c0_157] : memref<1x32xf32, #tpu.memory_space<vmem>>, vector<1x32xf32>
    %648 = vector.broadcast %647 : vector<1x32xf32> to vector<2x32xf32>
    %649 = arith.mulf %646, %648 : vector<2x32xf32>
    %cst_158 = arith.constant dense<0.000000e+00> : vector<2xf32>
    %650 = vector.multi_reduction <add>, %649, %cst_158 [1] : vector<2x32xf32> to vector<2xf32>
    %651 = vector.shape_cast %650 : vector<2xf32> to vector<2x1xf32>
    %c0_159 = arith.constant 0 : index
    %c0_160 = arith.constant 0 : index
    %652 = vector.load %arg6[%c0_159, %c0_160] : memref<1x1xf32, #tpu.memory_space<vmem>>, vector<1x1xf32>
    %653 = vector.broadcast %652 : vector<1x1xf32> to vector<2x1xf32>
    %654 = arith.addf %651, %653 : vector<2x1xf32>
    %c0_161 = arith.constant 0 : index
    %c0_162 = arith.constant 0 : index
    %655 = vector.load %arg7[%c0_161, %c0_162] : memref<2x1xf32, #tpu.memory_space<vmem>>, vector<2x1xf32>
    tpu.vector_store %arg7[%c0_161, %c0_162], %654 {strides = array<i32>} : memref<2x1xf32, #tpu.memory_space<vmem>>, vector<2x1xf32>,
    return
  }
}

</mosaic_0001>

<llo_original>
// kernel: tpu_custom_call.1
$region0: #{tpu_custom_call.1}
  #allocation0 [shape = 'u32[]', space=smem, size = 0x4, offset = 0x4, fixed_abs, tag = 'smem constant byte address 0x4 - core index']
  #allocation1 [shape = 'u32[144,128]{1,0:T(1,128)}', space=vmem, size = 0x12000, scoped, tag = 'internal scratch']
  #allocation2 [shape = 'f32[16,32]{1,0:T(8,128)}', space=vmem, size = 0x2000, scoped, tag = 'scratch operand']
  #allocation3 [shape = 'f32[1,1]{1,0:T(1,128)S(1)}', space=vmem, size = 0x200, scoped, tag = 'scoped memory for tpu_custom_call.1']
  %s0 = inlined_call_operand.hbm [shape: f32[16,16], index: 0, kind: input, shape index: {}]
  %s1 = inlined_call_operand.hbm [shape: f32[16,128], index: 1, kind: input, shape index: {}]
  %s2 = inlined_call_operand.hbm [shape: f32[3,32,128], index: 2, kind: input, shape index: {}]
  %s3 = inlined_call_operand.hbm [shape: f32[4,32,128], index: 3, kind: input, shape index: {}]
  %s4 = inlined_call_operand.vmem [shape: f32[4,1,128], index: 4, kind: input, shape index: {}]
  %s5 = inlined_call_operand.vmem [shape: f32[1,32], index: 5, kind: input, shape index: {}]
  %s6 = inlined_call_operand.<no memory space> [shape: f32[1,1], index: 6, kind: input, shape index: {}]
  %s7 = inlined_call_operand.vmem [shape: f32[2,1], index: 7, kind: output, shape index: {}]
  %s8 = sld [smem:[#allocation0]]
  $region54: #{tpu_custom_call.1} parent=0
    _
  %s10 = ssub.s32 1, %s8
  %s11 = scalar_select 0, %s10, %s8
  %v12 = vstv %s6
  %13 = vst [vmem:[#allocation3] sm:$0x1] %v12
  $region1: #{tpu_custom_call.1} parent=0
    #allocation4 [shape = 'u8[8192]{0}', space=vmem, size = 0x2000, scoped, tag = 'input window, operand 0, single buffered']
    #allocation5 [shape = 's32[1]{0}', space=sflag, size = 0x4, scoped, tag = 'scoped memory for tpu_custom_call.1']
    #allocation6 [shape = 'u8[8192]{0}', space=vmem, size = 0x2000, scoped, tag = 'input window, operand 1, single buffered']
    #allocation7 [shape = 's32[1]{0}', space=sflag, size = 0x4, scoped, tag = 'scoped memory for tpu_custom_call.1']
    #allocation8 [shape = 'u8[49152]{0}', space=vmem, size = 0xc000, scoped, tag = 'input window, operand 2, single buffered']
    #allocation9 [shape = 'u8[65536]{0}', space=vmem, size = 0x10000, scoped, tag = 'input window, operand 3, single buffered']
    #allocation10 [shape = 's32[1]{0}', space=sflag, size = 0x4, scoped, tag = 'scoped memory for tpu_custom_call.1']
    %14 = vsyncpa [#allocation5], 0
    %15 = vsyncpa [#allocation7], 0
    %16 = vsyncpa [#allocation10], 0
    // Predicated region
    $region2: #{tpu_custom_call.1} parent=1 // pred_check
      _
    $region3: #{tpu_custom_call.1} parent=1 // pred_check_branch
      %18 = sbr.rel (0) target = $region5
    $region4: #{tpu_custom_call.1} parent=1 // pred_region
      %s20 = ssub.s32 256, 256
      %21 = vsyncadd [#allocation5], %s20
      %s22 = sshll.u32 [#allocation4], 4
      %s23 = int_to_ptr.vmem [resolvable:$true] %s22
      %28 = dma.hbm_to_vmem [thread:$0]  %s0, 256, %s23, [#allocation5], 128, 128, 8
    $region5: #{tpu_custom_call.1} parent=1 // pred_fallthru
      _
    // Predicated region
    $region6: #{tpu_custom_call.1} parent=1 // pred_check
      _
    $region7: #{tpu_custom_call.1} parent=1 // pred_check_branch
      %30 = sbr.rel (0) target = $region9
    $region8: #{tpu_custom_call.1} parent=1 // pred_region
      %s32 = ssub.s32 256, 256
      %33 = vsyncadd [#allocation7], %s32
      %s34 = sshll.u32 [#allocation6], 4
      %s35 = int_to_ptr.vmem [resolvable:$true] %s34
      %40 = dma.hbm_to_vmem [thread:$0]  %s1, 256, %s35, [#allocation7], 128, 128, 8
    $region9: #{tpu_custom_call.1} parent=1 // pred_fallthru
      _
    // Predicated region
    $region10: #{tpu_custom_call.1} parent=1 // pred_check
      _
    $region11: #{tpu_custom_call.1} parent=1 // pred_check_branch
      %42 = sbr.rel (0) target = $region13
    $region12: #{tpu_custom_call.1} parent=1 // pred_region
      %s44 = ssub.s32 1536, 1536
      %45 = vsyncadd [#allocation7], %s44
      %s46 = sshll.u32 [#allocation8], 4
      %s47 = int_to_ptr.vmem [resolvable:$true] %s46
      %52 = dma.hbm_to_vmem [thread:$0]  %s2, 1536, %s47, [#allocation7], 128, 128, 8
    $region13: #{tpu_custom_call.1} parent=1 // pred_fallthru
      _
    // Predicated region
    $region14: #{tpu_custom_call.1} parent=1 // pred_check
      _
    $region15: #{tpu_custom_call.1} parent=1 // pred_check_branch
      %54 = sbr.rel (0) target = $region17
    $region16: #{tpu_custom_call.1} parent=1 // pred_region
      %s56 = ssub.s32 2048, 2048
      %57 = vsyncadd [#allocation10], %s56
      %s58 = sshll.u32 [#allocation9], 4
      %s59 = int_to_ptr.vmem [resolvable:$true] %s58
      %64 = dma.hbm_to_vmem [thread:$0]  %s3, 2048, %s59, [#allocation10], 128, 128, 8
    $region17: #{tpu_custom_call.1} parent=1 // pred_fallthru
      _
    // Predicated region
    $region18: #{tpu_custom_call.1} parent=1 // pred_check
      _
    $region19: #{tpu_custom_call.1} parent=1 // pred_check_branch
      %66 = sbr.rel (0) target = $region21
    $region20: #{tpu_custom_call.1} parent=1 // pred_region
      _
    $region21: #{tpu_custom_call.1} parent=1 // pred_fallthru
      _
    // Predicated region
    $region22: #{tpu_custom_call.1} parent=1 // pred_check
      _
    $region23: #{tpu_custom_call.1} parent=1 // pred_check_branch
      %68 = sbr.rel (0) target = $region25
    $region24: #{tpu_custom_call.1} parent=1 // pred_region
      _
    $region25: #{tpu_custom_call.1} parent=1 // pred_fallthru
      _
    // Predicated region
    $region26: #{tpu_custom_call.1} parent=1 // pred_check
      _
    $region27: #{tpu_custom_call.1} parent=1 // pred_check_branch
      %70 = sbr.rel (0) target = $region29
    $region28: #{tpu_custom_call.1} parent=1 // pred_region
      _
    $region29: #{tpu_custom_call.1} parent=1 // pred_fallthru
      _
    // Predicated region
    $region30: #{tpu_custom_call.1} parent=1 // pred_check
      _
    $region31: #{tpu_custom_call.1} parent=1 // pred_check_branch
      %72 = sbr.rel (0) target = $region33
    $region32: #{tpu_custom_call.1} parent=1 // pred_region
      %73 = dma.done [#allocation5], 256
    $region33: #{tpu_custom_call.1} parent=1 // pred_fallthru
      _
    // Predicated region
    $region34: #{tpu_custom_call.1} parent=1 // pred_check
      _
    $region35: #{tpu_custom_call.1} parent=1 // pred_check_branch
      %75 = sbr.rel (0) target = $region37
    $region36: #{tpu_custom_call.1} parent=1 // pred_region
      %76 = dma.done [#allocation7], 256
    $region37: #{tpu_custom_call.1} parent=1 // pred_fallthru
      _
    // Predicated region
    $region38: #{tpu_custom_call.1} parent=1 // pred_check
      _
    $region39: #{tpu_custom_call.1} parent=1 // pred_check_branch
      %78 = sbr.rel (0) target = $region41
    $region40: #{tpu_custom_call.1} parent=1 // pred_region
      %79 = dma.done [#allocation7], 1536
    $region41: #{tpu_custom_call.1} parent=1 // pred_fallthru
      _
    // Predicated region
    $region42: #{tpu_custom_call.1} parent=1 // pred_check
      _
    $region43: #{tpu_custom_call.1} parent=1 // pred_check_branch
      %81 = sbr.rel (0) target = $region45
    $region44: #{tpu_custom_call.1} parent=1 // pred_region
      %82 = dma.done [#allocation10], 2048
    $region45: #{tpu_custom_call.1} parent=1 // pred_fallthru
      _
    %v83 = vld [vmem:[#allocation4] sm:$0xff]
    %v84 = vld [vmem:[#allocation4 + $0x8] sm:$0xff]
    %v85 = vld [vmem:[#allocation6] sm:$0xff]
    %v86 = vld [vmem:[#allocation6 + $0x8] sm:$0xff]
    %v87 = vld [vmem:[%s4] sm:$0x1]
    %v89 = vlaneseq
    %v90 = vshrl.u32 %v89, 7
    %v91 = vsub.s32 0, %v90
    %v92 = vrot.slane %v87, %v91
    %vm94 = vcmask 130048
    %v96 = vsel %vm94, %v83, 0
    %v99 = vsel %vm94, %v84, 0
    %101 = vmatprep.subr.mxu0 0.0
    %102 = vmatpush1.msra.mxu0 %v85
    %103 = vmatprep.subr.mxu0 0.0
    %104 = vmatpush1.msra.mxu0 %v86
    %105 = vmatprep.subr.mxu0 0.0
    %106 = vmatpush1.msra.mxu0 0.0
    %107 = vmatprep.subr.mxu0 0.0
    %108 = vmatpush1.msra.mxu0 0.0
    %109 = vmatprep.subr.mxu0 0.0
    %110 = vmatpush1.msra.mxu0 0.0
    %111 = vmatprep.subr.mxu0 0.0
    %112 = vmatpush1.msra.mxu0 0.0
    %113 = vmatprep.subr.mxu0 0.0
    %114 = vmatpush1.msra.mxu0 0.0
    %115 = vmatprep.subr.mxu0 0.0
    %116 = vmatpush1.msra.mxu0 0.0
    %117 = vmatprep.subr.mxu0 0.0
    %118 = vmatpush1.msra.mxu0 0.0
    %119 = vmatprep.subr.mxu0 0.0
    %120 = vmatpush1.msra.mxu0 0.0
    %121 = vmatprep.subr.mxu0 0.0
    %122 = vmatpush1.msra.mxu0 0.0
    %123 = vmatprep.subr.mxu0 0.0
    %124 = vmatpush1.msra.mxu0 0.0
    %125 = vmatprep.subr.mxu0 0.0
    %126 = vmatpush1.msra.mxu0 0.0
    %127 = vmatprep.subr.mxu0 0.0
    %128 = vmatpush1.msra.mxu0 0.0
    %129 = vmatprep.subr.mxu0 0.0
    %130 = vmatpush1.msra.mxu0 0.0
    %131 = vmatprep.subr.mxu0 0.0
    %132 = vmatpush1.msra.mxu0 0.0
    %133 = vmatprep.subr.mxu0 0.0
    %134 = vmatpush1.msra.mxu0 0.0
    %135 = vmatprep.subr.mxu0 0.0
    %136 = vmatpush1.msra.mxu0 0.0
    %137 = vmatprep.subr.mxu0 0.0
    %138 = vmatpush1.msra.mxu0 0.0
    %139 = vmatprep.subr.mxu0 0.0
    %140 = vmatpush1.msra.mxu0 0.0
    %141 = vmatprep.subr.mxu0 0.0
    %142 = vmatpush1.msra.mxu0 0.0
    %143 = vmatprep.subr.mxu0 0.0
    %144 = vmatpush1.msra.mxu0 0.0
    %145 = vmatprep.subr.mxu0 0.0
    %146 = vmatpush1.msra.mxu0 0.0
    %147 = vmatprep.subr.mxu0 0.0
    %148 = vmatpush1.msra.mxu0 0.0
    %149 = vmatprep.subr.mxu0 0.0
    %150 = vmatpush1.msra.mxu0 0.0
    %151 = vmatprep.subr.mxu0 0.0
    %152 = vmatpush1.msra.mxu0 0.0
    %153 = vmatprep.subr.mxu0 0.0
    %154 = vmatpush1.msra.mxu0 0.0
    %155 = vmatprep.subr.mxu0 0.0
    %156 = vmatpush1.msra.mxu0 0.0
    %157 = vmatprep.subr.mxu0 0.0
    %158 = vmatpush1.msra.mxu0 0.0
    %159 = vmatprep.subr.mxu0 0.0
    %160 = vmatpush1.msra.mxu0 0.0
    %161 = vmatprep.subr.mxu0 0.0
    %162 = vmatpush1.msra.mxu0 0.0
    %163 = vmatprep.subr.mxu0 0.0
    %164 = vmatpush1.msra.mxu0 0.0
    %165 = vmatprep.mubr.f32.mxu0 0.0
    %166 = vmatmul.mubr.f32.gmra.mrb[0].mxu0 %v96
    %v167 = vpop.f32.mrb[0].mxu0
    %v168 = vadd.f32 %v92, %v167
    %v169 = vpop.f32.mrb[0].mxu0
    %170 = vmatprep.mubr.f32.mxu0 0.0
    %171 = vmatmul.mubr.f32.gmra.mrb[0].mxu0 %v99
    %v172 = vpop.f32.mrb[0].mxu0
    %v173 = vadd.f32 %v92, %v172
    %v174 = vpop.f32.mrb[0].mxu0
    %175 = vdwg.mxu0
    %v176 = vld [vmem:[#allocation9] sm:$0xff]
    %v177 = vld [vmem:[#allocation9 + $0x8] sm:$0xff]
    %v178 = vld [vmem:[#allocation9 + $0x10] sm:$0xff]
    %v179 = vld [vmem:[#allocation9 + $0x18] sm:$0xff]
    %vm180 = vcmask 261120
    %v182 = vsel %vm180, 0.0, 0
    %184 = vmatprep.subr.mxu0 0.0
    %185 = vmatpush1.msra.mxu0 %v176
    %186 = vmatprep.subr.mxu0 0.0
    %187 = vmatpush1.msra.mxu0 %v177
    %188 = vmatprep.subr.mxu0 0.0
    %189 = vmatpush1.msra.mxu0 %v178
    %190 = vmatprep.subr.mxu0 0.0
    %191 = vmatpush1.msra.mxu0 %v179
    %192 = vmatprep.subr.mxu0 0.0
    %193 = vmatpush1.msra.mxu0 0.0
    %194 = vmatprep.subr.mxu0 0.0
    %195 = vmatpush1.msra.mxu0 0.0
    %196 = vmatprep.subr.mxu0 0.0
    %197 = vmatpush1.msra.mxu0 0.0
    %198 = vmatprep.subr.mxu0 0.0
    %199 = vmatpush1.msra.mxu0 0.0
    %200 = vmatprep.subr.mxu0 0.0
    %201 = vmatpush1.msra.mxu0 0.0
    %202 = vmatprep.subr.mxu0 0.0
    %203 = vmatpush1.msra.mxu0 0.0
    %204 = vmatprep.subr.mxu0 0.0
    %205 = vmatpush1.msra.mxu0 0.0
    %206 = vmatprep.subr.mxu0 0.0
    %207 = vmatpush1.msra.mxu0 0.0
    %208 = vmatprep.subr.mxu0 0.0
    %209 = vmatpush1.msra.mxu0 0.0
    %210 = vmatprep.subr.mxu0 0.0
    %211 = vmatpush1.msra.mxu0 0.0
    %212 = vmatprep.subr.mxu0 0.0
    %213 = vmatpush1.msra.mxu0 0.0
    %214 = vmatprep.subr.mxu0 0.0
    %215 = vmatpush1.msra.mxu0 0.0
    %216 = vmatprep.subr.mxu0 0.0
    %217 = vmatpush1.msra.mxu0 0.0
    %218 = vmatprep.subr.mxu0 0.0
    %219 = vmatpush1.msra.mxu0 0.0
    %220 = vmatprep.subr.mxu0 0.0
    %221 = vmatpush1.msra.mxu0 0.0
    %222 = vmatprep.subr.mxu0 0.0
    %223 = vmatpush1.msra.mxu0 0.0
    %224 = vmatprep.subr.mxu0 0.0
    %225 = vmatpush1.msra.mxu0 0.0
    %226 = vmatprep.subr.mxu0 0.0
    %227 = vmatpush1.msra.mxu0 0.0
    %228 = vmatprep.subr.mxu0 0.0
    %229 = vmatpush1.msra.mxu0 0.0
    %230 = vmatprep.subr.mxu0 0.0
    %231 = vmatpush1.msra.mxu0 0.0
    %232 = vmatprep.subr.mxu0 0.0
    %233 = vmatpush1.msra.mxu0 0.0
    %234 = vmatprep.subr.mxu0 0.0
    %235 = vmatpush1.msra.mxu0 0.0
    %236 = vmatprep.subr.mxu0 0.0
    %237 = vmatpush1.msra.mxu0 0.0
    %238 = vmatprep.subr.mxu0 0.0
    %239 = vmatpush1.msra.mxu0 0.0
    %240 = vmatprep.subr.mxu0 0.0
    %241 = vmatpush1.msra.mxu0 0.0
    %242 = vmatprep.subr.mxu0 0.0
    %243 = vmatpush1.msra.mxu0 0.0
    %244 = vmatprep.subr.mxu0 0.0
    %245 = vmatpush1.msra.mxu0 0.0
    %246 = vmatprep.subr.mxu0 0.0
    %247 = vmatpush1.msra.mxu0 0.0
    %248 = vmatprep.mubr.f32.mxu0 0.0
    %249 = vmatmul.mubr.f32.gmra.mrb[0].mxu0 %v182
    %v250 = vpop.f32.mrb[0].mxu0
    %v251 = vadd.f32 0.0, %v250
    %v252 = vpop.f32.mrb[0].mxu0
    %253 = vdwg.mxu0
    %v254 = vadd.f32 %v168, %v251
    %v255 = vxor.u32 %v254, 2147483648
    %v256 = vmul.f32 %v255, 1.442695
    %v257 = vpow.pop %v256
    %v258 = vadd.f32 %v257, 1.0
    %v259 = vrcp.pop %v258
    %v260 = vmul.f32 1.0, %v259
    %v261 = vtanh.pop %v254
    %v262 = vmul.f32 %v260, 0.0
    %264 = vrot.lane.b32.xlu0 %v261, 64
    %v265 = vpop.permute.xlu0 %264
    %v267 = vmul.f32 %v260, %v265
    %269 = vrot.lane.b32.xlu0 %v267, 32
    %v270 = vpop.permute.xlu0 %269
    %v272 = vadd.f32 %v262, %v270
    %v273 = vtanh.pop %v272
    %275 = vrot.lane.b32.xlu0 %v273, 64
    %v276 = vpop.permute.xlu0 %275
    %v278 = vmul.f32 %v260, %v276
    %280 = vrot.lane.b32.xlu0 %v278, 32
    %v281 = vpop.permute.xlu0 %280
    %vm283 = vcmask 254976
    %284 = vst.msk [vmem:[#allocation2] sm:$0x3] %vm283, %v281
    %v285 = vsel %vm180, %v281, 0
    %287 = vmatprep.subr.mxu0 0.0
    %288 = vmatpush1.msra.mxu0 %v176
    %289 = vmatprep.subr.mxu0 0.0
    %290 = vmatpush1.msra.mxu0 %v177
    %291 = vmatprep.subr.mxu0 0.0
    %292 = vmatpush1.msra.mxu0 %v178
    %293 = vmatprep.subr.mxu0 0.0
    %294 = vmatpush1.msra.mxu0 %v179
    %295 = vmatprep.subr.mxu0 0.0
    %296 = vmatpush1.msra.mxu0 0.0
    %297 = vmatprep.subr.mxu0 0.0
    %298 = vmatpush1.msra.mxu0 0.0
    %299 = vmatprep.subr.mxu0 0.0
    %300 = vmatpush1.msra.mxu0 0.0
    %301 = vmatprep.subr.mxu0 0.0
    %302 = vmatpush1.msra.mxu0 0.0
    %303 = vmatprep.subr.mxu0 0.0
    %304 = vmatpush1.msra.mxu0 0.0
    %305 = vmatprep.subr.mxu0 0.0
    %306 = vmatpush1.msra.mxu0 0.0
    %307 = vmatprep.subr.mxu0 0.0
    %308 = vmatpush1.msra.mxu0 0.0
    %309 = vmatprep.subr.mxu0 0.0
    %310 = vmatpush1.msra.mxu0 0.0
    %311 = vmatprep.subr.mxu0 0.0
    %312 = vmatpush1.msra.mxu0 0.0
    %313 = vmatprep.subr.mxu0 0.0
    %314 = vmatpush1.msra.mxu0 0.0
    %315 = vmatprep.subr.mxu0 0.0
    %316 = vmatpush1.msra.mxu0 0.0
    %317 = vmatprep.subr.mxu0 0.0
    %318 = vmatpush1.msra.mxu0 0.0
    %319 = vmatprep.subr.mxu0 0.0
    %320 = vmatpush1.msra.mxu0 0.0
    %321 = vmatprep.subr.mxu0 0.0
    %322 = vmatpush1.msra.mxu0 0.0
    %323 = vmatprep.subr.mxu0 0.0
    %324 = vmatpush1.msra.mxu0 0.0
    %325 = vmatprep.subr.mxu0 0.0
    %326 = vmatpush1.msra.mxu0 0.0
    %327 = vmatprep.subr.mxu0 0.0
    %328 = vmatpush1.msra.mxu0 0.0
    %329 = vmatprep.subr.mxu0 0.0
    %330 = vmatpush1.msra.mxu0 0.0
    %331 = vmatprep.subr.mxu0 0.0
    %332 = vmatpush1.msra.mxu0 0.0
    %333 = vmatprep.subr.mxu0 0.0
    %334 = vmatpush1.msra.mxu0 0.0
    %335 = vmatprep.subr.mxu0 0.0
    %336 = vmatpush1.msra.mxu0 0.0
    %337 = vmatprep.subr.mxu0 0.0
    %338 = vmatpush1.msra.mxu0 0.0
    %339 = vmatprep.subr.mxu0 0.0
    %340 = vmatpush1.msra.mxu0 0.0
    %341 = vmatprep.subr.mxu0 0.0
    %342 = vmatpush1.msra.mxu0 0.0
    %343 = vmatprep.subr.mxu0 0.0
    %344 = vmatpush1.msra.mxu0 0.0
    %345 = vmatprep.subr.mxu0 0.0
    %346 = vmatpush1.msra.mxu0 0.0
    %347 = vmatprep.subr.mxu0 0.0
    %348 = vmatpush1.msra.mxu0 0.0
    %349 = vmatprep.subr.mxu0 0.0
    %350 = vmatpush1.msra.mxu0 0.0
    %351 = vmatprep.mubr.f32.mxu0 0.0
    %352 = vmatmul.mubr.f32.gmra.mrb[0].mxu0 %v285
    %v353 = vpop.f32.mrb[0].mxu0
    %v354 = vadd.f32 0.0, %v353
    %v355 = vpop.f32.mrb[0].mxu0
    %356 = vdwg.mxu0
    %v358 = vrot.slane %v354, 6
    %v360 = vadd.f32 %v168, %v358
    %v361 = vxor.u32 %v360, 2147483648
    %v362 = vmul.f32 %v361, 1.442695
    %v363 = vpow.pop %v362
    %v364 = vadd.f32 %v363, 1.0
    %v365 = vrcp.pop %v364
    %v366 = vmul.f32 1.0, %v365
    %v367 = vtanh.pop %v360
    %v369 = vrot.slane %v272, 6
    %v371 = vmul.f32 %v366, %v369
    %373 = vrot.lane.b32.xlu0 %v367, 64
    %v374 = vpop.permute.xlu0 %373
    %v376 = vmul.f32 %v366, %v374
    %378 = vrot.lane.b32.xlu0 %v376, 32
    %v379 = vpop.permute.xlu0 %378
    %v381 = vadd.f32 %v371, %v379
    %v382 = vtanh.pop %v381
    %384 = vrot.lane.b32.xlu0 %v382, 64
    %v385 = vpop.permute.xlu0 %384
    %v387 = vmul.f32 %v366, %v385
    %389 = vrot.lane.b32.xlu0 %v387, 32
    %v390 = vpop.permute.xlu0 %389
    %vm392 = vcmask 257026
    %393 = vst.msk [vmem:[#allocation2] sm:$0xc] %vm392, %v390
    %v394 = vrot.slane %v387, 2
    %395 = vrot.lane.b32.xlu0 %v394, 32
    %v396 = vpop.permute.xlu0 %395
    %v397 = vsel %vm180, %v396, 0
    %399 = vmatprep.subr.mxu0 0.0
    %400 = vmatpush1.msra.mxu0 %v176
    %401 = vmatprep.subr.mxu0 0.0
    %402 = vmatpush1.msra.mxu0 %v177
    %403 = vmatprep.subr.mxu0 0.0
    %404 = vmatpush1.msra.mxu0 %v178
    %405 = vmatprep.subr.mxu0 0.0
    %406 = vmatpush1.msra.mxu0 %v179
    %407 = vmatprep.subr.mxu0 0.0
    %408 = vmatpush1.msra.mxu0 0.0
    %409 = vmatprep.subr.mxu0 0.0
    %410 = vmatpush1.msra.mxu0 0.0
    %411 = vmatprep.subr.mxu0 0.0
    %412 = vmatpush1.msra.mxu0 0.0
    %413 = vmatprep.subr.mxu0 0.0
    %414 = vmatpush1.msra.mxu0 0.0
    %415 = vmatprep.subr.mxu0 0.0
    %416 = vmatpush1.msra.mxu0 0.0
    %417 = vmatprep.subr.mxu0 0.0
    %418 = vmatpush1.msra.mxu0 0.0
    %419 = vmatprep.subr.mxu0 0.0
    %420 = vmatpush1.msra.mxu0 0.0
    %421 = vmatprep.subr.mxu0 0.0
    %422 = vmatpush1.msra.mxu0 0.0
    %423 = vmatprep.subr.mxu0 0.0
    %424 = vmatpush1.msra.mxu0 0.0
    %425 = vmatprep.subr.mxu0 0.0
    %426 = vmatpush1.msra.mxu0 0.0
    %427 = vmatprep.subr.mxu0 0.0
    %428 = vmatpush1.msra.mxu0 0.0
    %429 = vmatprep.subr.mxu0 0.0
    %430 = vmatpush1.msra.mxu0 0.0
    %431 = vmatprep.subr.mxu0 0.0
    %432 = vmatpush1.msra.mxu0 0.0
    %433 = vmatprep.subr.mxu0 0.0
    %434 = vmatpush1.msra.mxu0 0.0
    %435 = vmatprep.subr.mxu0 0.0
    %436 = vmatpush1.msra.mxu0 0.0
    %437 = vmatprep.subr.mxu0 0.0
    %438 = vmatpush1.msra.mxu0 0.0
    %439 = vmatprep.subr.mxu0 0.0
    %440 = vmatpush1.msra.mxu0 0.0
    %441 = vmatprep.subr.mxu0 0.0
    %442 = vmatpush1.msra.mxu0 0.0
    %443 = vmatprep.subr.mxu0 0.0
    %444 = vmatpush1.msra.mxu0 0.0
    %445 = vmatprep.subr.mxu0 0.0
    %446 = vmatpush1.msra.mxu0 0.0
    %447 = vmatprep.subr.mxu0 0.0
    %448 = vmatpush1.msra.mxu0 0.0
    %449 = vmatprep.subr.mxu0 0.0
    %450 = vmatpush1.msra.mxu0 0.0
    %451 = vmatprep.subr.mxu0 0.0
    %452 = vmatpush1.msra.mxu0 0.0
    %453 = vmatprep.subr.mxu0 0.0
    %454 = vmatpush1.msra.mxu0 0.0
    %455 = vmatprep.subr.mxu0 0.0
    %456 = vmatpush1.msra.mxu0 0.0
    %457 = vmatprep.subr.mxu0 0.0
    %458 = vmatpush1.msra.mxu0 0.0
    %459 = vmatprep.subr.mxu0 0.0
    %460 = vmatpush1.msra.mxu0 0.0
    %461 = vmatprep.subr.mxu0 0.0
    %462 = vmatpush1.msra.mxu0 0.0
    %463 = vmatprep.mubr.f32.mxu0 0.0
    %464 = vmatmul.mubr.f32.gmra.mrb[0].mxu0 %v397
    %v465 = vpop.f32.mrb[0].mxu0
    %v466 = vadd.f32 0.0, %v465
    %v467 = vpop.f32.mrb[0].mxu0
    %468 = vdwg.mxu0
    %v470 = vrot.slane %v466, 4
    %v472 = vadd.f32 %v168, %v470
    %v473 = vxor.u32 %v472, 2147483648
    %v474 = vmul.f32 %v473, 1.442695
    %v475 = vpow.pop %v474
    %v476 = vadd.f32 %v475, 1.0
    %v477 = vrcp.pop %v476
    %v478 = vmul.f32 1.0, %v477
    %v479 = vtanh.pop %v472
    %v481 = vrot.slane %v381, 6
    %v483 = vmul.f32 %v478, %v481
    %485 = vrot.lane.b32.xlu0 %v479, 64
    %v486 = vpop.permute.xlu0 %485
    %v488 = vmul.f32 %v478, %v486
    %490 = vrot.lane.b32.xlu0 %v488, 32
    %v491 = vpop.permute.xlu0 %490
    %v493 = vadd.f32 %v483, %v491
    %v494 = vtanh.pop %v493
    %496 = vrot.lane.b32.xlu0 %v494, 64
    %v497 = vpop.permute.xlu0 %496
    %v499 = vmul.f32 %v478, %v497
    %501 = vrot.lane.b32.xlu0 %v499, 32
    %v502 = vpop.permute.xlu0 %501
    %vm504 = vcmask 259076
    %505 = vst.msk [vmem:[#allocation2] sm:$0x30] %vm504, %v502
    %v506 = vrot.slane %v499, 4
    %507 = vrot.lane.b32.xlu0 %v506, 32
    %v508 = vpop.permute.xlu0 %507
    %v509 = vsel %vm180, %v508, 0
    %511 = vmatprep.subr.mxu0 0.0
    %512 = vmatpush1.msra.mxu0 %v176
    %513 = vmatprep.subr.mxu0 0.0
    %514 = vmatpush1.msra.mxu0 %v177
    %515 = vmatprep.subr.mxu0 0.0
    %516 = vmatpush1.msra.mxu0 %v178
    %517 = vmatprep.subr.mxu0 0.0
    %518 = vmatpush1.msra.mxu0 %v179
    %519 = vmatprep.subr.mxu0 0.0
    %520 = vmatpush1.msra.mxu0 0.0
    %521 = vmatprep.subr.mxu0 0.0
    %522 = vmatpush1.msra.mxu0 0.0
    %523 = vmatprep.subr.mxu0 0.0
    %524 = vmatpush1.msra.mxu0 0.0
    %525 = vmatprep.subr.mxu0 0.0
    %526 = vmatpush1.msra.mxu0 0.0
    %527 = vmatprep.subr.mxu0 0.0
    %528 = vmatpush1.msra.mxu0 0.0
    %529 = vmatprep.subr.mxu0 0.0
    %530 = vmatpush1.msra.mxu0 0.0
    %531 = vmatprep.subr.mxu0 0.0
    %532 = vmatpush1.msra.mxu0 0.0
    %533 = vmatprep.subr.mxu0 0.0
    %534 = vmatpush1.msra.mxu0 0.0
    %535 = vmatprep.subr.mxu0 0.0
    %536 = vmatpush1.msra.mxu0 0.0
    %537 = vmatprep.subr.mxu0 0.0
    %538 = vmatpush1.msra.mxu0 0.0
    %539 = vmatprep.subr.mxu0 0.0
    %540 = vmatpush1.msra.mxu0 0.0
    %541 = vmatprep.subr.mxu0 0.0
    %542 = vmatpush1.msra.mxu0 0.0
    %543 = vmatprep.subr.mxu0 0.0
    %544 = vmatpush1.msra.mxu0 0.0
    %545 = vmatprep.subr.mxu0 0.0
    %546 = vmatpush1.msra.mxu0 0.0
    %547 = vmatprep.subr.mxu0 0.0
    %548 = vmatpush1.msra.mxu0 0.0
    %549 = vmatprep.subr.mxu0 0.0
    %550 = vmatpush1.msra.mxu0 0.0
    %551 = vmatprep.subr.mxu0 0.0
    %552 = vmatpush1.msra.mxu0 0.0
    %553 = vmatprep.subr.mxu0 0.0
    %554 = vmatpush1.msra.mxu0 0.0
    %555 = vmatprep.subr.mxu0 0.0
    %556 = vmatpush1.msra.mxu0 0.0
    %557 = vmatprep.subr.mxu0 0.0
    %558 = vmatpush1.msra.mxu0 0.0
    %559 = vmatprep.subr.mxu0 0.0
    %560 = vmatpush1.msra.mxu0 0.0
    %561 = vmatprep.subr.mxu0 0.0
    %562 = vmatpush1.msra.mxu0 0.0
    %563 = vmatprep.subr.mxu0 0.0
    %564 = vmatpush1.msra.mxu0 0.0
    %565 = vmatprep.subr.mxu0 0.0
    %566 = vmatpush1.msra.mxu0 0.0
    %567 = vmatprep.subr.mxu0 0.0
    %568 = vmatpush1.msra.mxu0 0.0
    %569 = vmatprep.subr.mxu0 0.0
    %570 = vmatpush1.msra.mxu0 0.0
    %571 = vmatprep.subr.mxu0 0.0
    %572 = vmatpush1.msra.mxu0 0.0
    %573 = vmatprep.subr.mxu0 0.0
    %574 = vmatpush1.msra.mxu0 0.0
    %575 = vmatprep.mubr.f32.mxu0 0.0
    %576 = vmatmul.mubr.f32.gmra.mrb[0].mxu0 %v509
    %v577 = vpop.f32.mrb[0].mxu0
    %v578 = vadd.f32 0.0, %v577
    %v579 = vpop.f32.mrb[0].mxu0
    %580 = vdwg.mxu0
    %v582 = vrot.slane %v578, 2
    %v584 = vadd.f32 %v168, %v582
    %v585 = vxor.u32 %v584, 2147483648
    %v586 = vmul.f32 %v585, 1.442695
    %v587 = vpow.pop %v586
    %v588 = vadd.f32 %v587, 1.0
    %v589 = vrcp.pop %v588
    %v590 = vmul.f32 1.0, %v589
    %v591 = vtanh.pop %v584
    %v593 = vrot.slane %v493, 6
    %v595 = vmul.f32 %v590, %v593
    %597 = vrot.lane.b32.xlu0 %v591, 64
    %v598 = vpop.permute.xlu0 %597
    %v600 = vmul.f32 %v590, %v598
    %602 = vrot.lane.b32.xlu0 %v600, 32
    %v603 = vpop.permute.xlu0 %602
    %v605 = vadd.f32 %v595, %v603
    %v606 = vtanh.pop %v605
    %608 = vrot.lane.b32.xlu0 %v606, 64
    %v609 = vpop.permute.xlu0 %608
    %v611 = vmul.f32 %v590, %v609
    %613 = vrot.lane.b32.xlu0 %v611, 32
    %v614 = vpop.permute.xlu0 %613
    %vm616 = vcmask 261126
    %617 = vst.msk [vmem:[#allocation2] sm:$0xc0] %vm616, %v614
    %v618 = vrot.slane %v611, 6
    %619 = vrot.lane.b32.xlu0 %v618, 32
    %v620 = vpop.permute.xlu0 %619
    %v621 = vsel %vm180, %v620, 0
    %623 = vmatprep.subr.mxu0 0.0
    %624 = vmatpush1.msra.mxu0 %v176
    %625 = vmatprep.subr.mxu0 0.0
    %626 = vmatpush1.msra.mxu0 %v177
    %627 = vmatprep.subr.mxu0 0.0
    %628 = vmatpush1.msra.mxu0 %v178
    %629 = vmatprep.subr.mxu0 0.0
    %630 = vmatpush1.msra.mxu0 %v179
    %631 = vmatprep.subr.mxu0 0.0
    %632 = vmatpush1.msra.mxu0 0.0
    %633 = vmatprep.subr.mxu0 0.0
    %634 = vmatpush1.msra.mxu0 0.0
    %635 = vmatprep.subr.mxu0 0.0
    %636 = vmatpush1.msra.mxu0 0.0
    %637 = vmatprep.subr.mxu0 0.0
    %638 = vmatpush1.msra.mxu0 0.0
    %639 = vmatprep.subr.mxu0 0.0
    %640 = vmatpush1.msra.mxu0 0.0
    %641 = vmatprep.subr.mxu0 0.0
    %642 = vmatpush1.msra.mxu0 0.0
    %643 = vmatprep.subr.mxu0 0.0
    %644 = vmatpush1.msra.mxu0 0.0
    %645 = vmatprep.subr.mxu0 0.0
    %646 = vmatpush1.msra.mxu0 0.0
    %647 = vmatprep.subr.mxu0 0.0
    %648 = vmatpush1.msra.mxu0 0.0
    %649 = vmatprep.subr.mxu0 0.0
    %650 = vmatpush1.msra.mxu0 0.0
    %651 = vmatprep.subr.mxu0 0.0
    %652 = vmatpush1.msra.mxu0 0.0
    %653 = vmatprep.subr.mxu0 0.0
    %654 = vmatpush1.msra.mxu0 0.0
    %655 = vmatprep.subr.mxu0 0.0
    %656 = vmatpush1.msra.mxu0 0.0
    %657 = vmatprep.subr.mxu0 0.0
    %658 = vmatpush1.msra.mxu0 0.0
    %659 = vmatprep.subr.mxu0 0.0
    %660 = vmatpush1.msra.mxu0 0.0
    %661 = vmatprep.subr.mxu0 0.0
    %662 = vmatpush1.msra.mxu0 0.0
    %663 = vmatprep.subr.mxu0 0.0
    %664 = vmatpush1.msra.mxu0 0.0
    %665 = vmatprep.subr.mxu0 0.0
    %666 = vmatpush1.msra.mxu0 0.0
    %667 = vmatprep.subr.mxu0 0.0
    %668 = vmatpush1.msra.mxu0 0.0
    %669 = vmatprep.subr.mxu0 0.0
    %670 = vmatpush1.msra.mxu0 0.0
    %671 = vmatprep.subr.mxu0 0.0
    %672 = vmatpush1.msra.mxu0 0.0
    %673 = vmatprep.subr.mxu0 0.0
    %674 = vmatpush1.msra.mxu0 0.0
    %675 = vmatprep.subr.mxu0 0.0
    %676 = vmatpush1.msra.mxu0 0.0
    %677 = vmatprep.subr.mxu0 0.0
    %678 = vmatpush1.msra.mxu0 0.0
    %679 = vmatprep.subr.mxu0 0.0
    %680 = vmatpush1.msra.mxu0 0.0
    %681 = vmatprep.subr.mxu0 0.0
    %682 = vmatpush1.msra.mxu0 0.0
    %683 = vmatprep.subr.mxu0 0.0
    %684 = vmatpush1.msra.mxu0 0.0
    %685 = vmatprep.subr.mxu0 0.0
    %686 = vmatpush1.msra.mxu0 0.0
    %687 = vmatprep.mubr.f32.mxu0 0.0
    %688 = vmatmul.mubr.f32.gmra.mrb[0].mxu0 %v621
    %v689 = vpop.f32.mrb[0].mxu0
    %v690 = vadd.f32 0.0, %v689
    %v691 = vpop.f32.mrb[0].mxu0
    %692 = vdwg.mxu0
    %v693 = vadd.f32 %v173, %v690
    %v694 = vxor.u32 %v693, 2147483648
    %v695 = vmul.f32 %v694, 1.442695
    %v696 = vpow.pop %v695
    %v697 = vadd.f32 %v696, 1.0
    %v698 = vrcp.pop %v697
    %v699 = vmul.f32 1.0, %v698
    %v700 = vtanh.pop %v693
    %v702 = vrot.slane %v605, 6
    %v704 = vmul.f32 %v699, %v702
    %706 = vrot.lane.b32.xlu0 %v700, 64
    %v707 = vpop.permute.xlu0 %706
    %v709 = vmul.f32 %v699, %v707
    %711 = vrot.lane.b32.xlu0 %v709, 32
    %v712 = vpop.permute.xlu0 %711
    %v714 = vadd.f32 %v704, %v712
    %v715 = vtanh.pop %v714
    %717 = vrot.lane.b32.xlu0 %v715, 64
    %v718 = vpop.permute.xlu0 %717
    %v720 = vmul.f32 %v699, %v718
    %722 = vrot.lane.b32.xlu0 %v720, 32
    %v723 = vpop.permute.xlu0 %722
    %725 = vst.msk [vmem:[#allocation2 + $0x8] sm:$0x3] %vm283, %v723
    %v726 = vsel %vm180, %v723, 0
    %728 = vmatprep.subr.mxu0 0.0
    %729 = vmatpush1.msra.mxu0 %v176
    %730 = vmatprep.subr.mxu0 0.0
    %731 = vmatpush1.msra.mxu0 %v177
    %732 = vmatprep.subr.mxu0 0.0
    %733 = vmatpush1.msra.mxu0 %v178
    %734 = vmatprep.subr.mxu0 0.0
    %735 = vmatpush1.msra.mxu0 %v179
    %736 = vmatprep.subr.mxu0 0.0
    %737 = vmatpush1.msra.mxu0 0.0
    %738 = vmatprep.subr.mxu0 0.0
    %739 = vmatpush1.msra.mxu0 0.0
    %740 = vmatprep.subr.mxu0 0.0
    %741 = vmatpush1.msra.mxu0 0.0
    %742 = vmatprep.subr.mxu0 0.0
    %743 = vmatpush1.msra.mxu0 0.0
    %744 = vmatprep.subr.mxu0 0.0
    %745 = vmatpush1.msra.mxu0 0.0
    %746 = vmatprep.subr.mxu0 0.0
    %747 = vmatpush1.msra.mxu0 0.0
    %748 = vmatprep.subr.mxu0 0.0
    %749 = vmatpush1.msra.mxu0 0.0
    %750 = vmatprep.subr.mxu0 0.0
    %751 = vmatpush1.msra.mxu0 0.0
    %752 = vmatprep.subr.mxu0 0.0
    %753 = vmatpush1.msra.mxu0 0.0
    %754 = vmatprep.subr.mxu0 0.0
    %755 = vmatpush1.msra.mxu0 0.0
    %756 = vmatprep.subr.mxu0 0.0
    %757 = vmatpush1.msra.mxu0 0.0
    %758 = vmatprep.subr.mxu0 0.0
    %759 = vmatpush1.msra.mxu0 0.0
    %760 = vmatprep.subr.mxu0 0.0
    %761 = vmatpush1.msra.mxu0 0.0
    %762 = vmatprep.subr.mxu0 0.0
    %763 = vmatpush1.msra.mxu0 0.0
    %764 = vmatprep.subr.mxu0 0.0
    %765 = vmatpush1.msra.mxu0 0.0
    %766 = vmatprep.subr.mxu0 0.0
    %767 = vmatpush1.msra.mxu0 0.0
    %768 = vmatprep.subr.mxu0 0.0
    %769 = vmatpush1.msra.mxu0 0.0
    %770 = vmatprep.subr.mxu0 0.0
    %771 = vmatpush1.msra.mxu0 0.0
    %772 = vmatprep.subr.mxu0 0.0
    %773 = vmatpush1.msra.mxu0 0.0
    %774 = vmatprep.subr.mxu0 0.0
    %775 = vmatpush1.msra.mxu0 0.0
    %776 = vmatprep.subr.mxu0 0.0
    %777 = vmatpush1.msra.mxu0 0.0
    %778 = vmatprep.subr.mxu0 0.0
    %779 = vmatpush1.msra.mxu0 0.0
    %780 = vmatprep.subr.mxu0 0.0
    %781 = vmatpush1.msra.mxu0 0.0
    %782 = vmatprep.subr.mxu0 0.0
    %783 = vmatpush1.msra.mxu0 0.0
    %784 = vmatprep.subr.mxu0 0.0
    %785 = vmatpush1.msra.mxu0 0.0
    %786 = vmatprep.subr.mxu0 0.0
    %787 = vmatpush1.msra.mxu0 0.0
    %788 = vmatprep.subr.mxu0 0.0
    %789 = vmatpush1.msra.mxu0 0.0
    %790 = vmatprep.subr.mxu0 0.0
    %791 = vmatpush1.msra.mxu0 0.0
    %792 = vmatprep.mubr.f32.mxu0 0.0
    %793 = vmatmul.mubr.f32.gmra.mrb[0].mxu0 %v726
    %v794 = vpop.f32.mrb[0].mxu0
    %v795 = vadd.f32 0.0, %v794
    %v796 = vpop.f32.mrb[0].mxu0
    %797 = vdwg.mxu0
    %v799 = vrot.slane %v795, 6
    %v801 = vadd.f32 %v173, %v799
    %v802 = vxor.u32 %v801, 2147483648
    %v803 = vmul.f32 %v802, 1.442695
    %v804 = vpow.pop %v803
    %v805 = vadd.f32 %v804, 1.0
    %v806 = vrcp.pop %v805
    %v807 = vmul.f32 1.0, %v806
    %v808 = vtanh.pop %v801
    %v810 = vrot.slane %v714, 6
    %v812 = vmul.f32 %v807, %v810
    %814 = vrot.lane.b32.xlu0 %v808, 64
    %v815 = vpop.permute.xlu0 %814
    %v817 = vmul.f32 %v807, %v815
    %819 = vrot.lane.b32.xlu0 %v817, 32
    %v820 = vpop.permute.xlu0 %819
    %v822 = vadd.f32 %v812, %v820
    %v823 = vtanh.pop %v822
    %825 = vrot.lane.b32.xlu0 %v823, 64
    %v826 = vpop.permute.xlu0 %825
    %v828 = vmul.f32 %v807, %v826
    %830 = vrot.lane.b32.xlu0 %v828, 32
    %v831 = vpop.permute.xlu0 %830
    %833 = vst.msk [vmem:[#allocation2 + $0x8] sm:$0xc] %vm392, %v831
    %v834 = vrot.slane %v828, 2
    %835 = vrot.lane.b32.xlu0 %v834, 32
    %v836 = vpop.permute.xlu0 %835
    %v837 = vsel %vm180, %v836, 0
    %839 = vmatprep.subr.mxu0 0.0
    %840 = vmatpush1.msra.mxu0 %v176
    %841 = vmatprep.subr.mxu0 0.0
    %842 = vmatpush1.msra.mxu0 %v177
    %843 = vmatprep.subr.mxu0 0.0
    %844 = vmatpush1.msra.mxu0 %v178
    %845 = vmatprep.subr.mxu0 0.0
    %846 = vmatpush1.msra.mxu0 %v179
    %847 = vmatprep.subr.mxu0 0.0
    %848 = vmatpush1.msra.mxu0 0.0
    %849 = vmatprep.subr.mxu0 0.0
    %850 = vmatpush1.msra.mxu0 0.0
    %851 = vmatprep.subr.mxu0 0.0
    %852 = vmatpush1.msra.mxu0 0.0
    %853 = vmatprep.subr.mxu0 0.0
    %854 = vmatpush1.msra.mxu0 0.0
    %855 = vmatprep.subr.mxu0 0.0
    %856 = vmatpush1.msra.mxu0 0.0
    %857 = vmatprep.subr.mxu0 0.0
    %858 = vmatpush1.msra.mxu0 0.0
    %859 = vmatprep.subr.mxu0 0.0
    %860 = vmatpush1.msra.mxu0 0.0
    %861 = vmatprep.subr.mxu0 0.0
    %862 = vmatpush1.msra.mxu0 0.0
    %863 = vmatprep.subr.mxu0 0.0
    %864 = vmatpush1.msra.mxu0 0.0
    %865 = vmatprep.subr.mxu0 0.0
    %866 = vmatpush1.msra.mxu0 0.0
    %867 = vmatprep.subr.mxu0 0.0
    %868 = vmatpush1.msra.mxu0 0.0
    %869 = vmatprep.subr.mxu0 0.0
    %870 = vmatpush1.msra.mxu0 0.0
    %871 = vmatprep.subr.mxu0 0.0
    %872 = vmatpush1.msra.mxu0 0.0
    %873 = vmatprep.subr.mxu0 0.0
    %874 = vmatpush1.msra.mxu0 0.0
    %875 = vmatprep.subr.mxu0 0.0
    %876 = vmatpush1.msra.mxu0 0.0
    %877 = vmatprep.subr.mxu0 0.0
    %878 = vmatpush1.msra.mxu0 0.0
    %879 = vmatprep.subr.mxu0 0.0
    %880 = vmatpush1.msra.mxu0 0.0
    %881 = vmatprep.subr.mxu0 0.0
    %882 = vmatpush1.msra.mxu0 0.0
    %883 = vmatprep.subr.mxu0 0.0
    %884 = vmatpush1.msra.mxu0 0.0
    %885 = vmatprep.subr.mxu0 0.0
    %886 = vmatpush1.msra.mxu0 0.0
    %887 = vmatprep.subr.mxu0 0.0
    %888 = vmatpush1.msra.mxu0 0.0
    %889 = vmatprep.subr.mxu0 0.0
    %890 = vmatpush1.msra.mxu0 0.0
    %891 = vmatprep.subr.mxu0 0.0
    %892 = vmatpush1.msra.mxu0 0.0
    %893 = vmatprep.subr.mxu0 0.0
    %894 = vmatpush1.msra.mxu0 0.0
    %895 = vmatprep.subr.mxu0 0.0
    %896 = vmatpush1.msra.mxu0 0.0
    %897 = vmatprep.subr.mxu0 0.0
    %898 = vmatpush1.msra.mxu0 0.0
    %899 = vmatprep.subr.mxu0 0.0
    %900 = vmatpush1.msra.mxu0 0.0
    %901 = vmatprep.subr.mxu0 0.0
    %902 = vmatpush1.msra.mxu0 0.0
    %903 = vmatprep.mubr.f32.mxu0 0.0
    %904 = vmatmul.mubr.f32.gmra.mrb[0].mxu0 %v837
    %v905 = vpop.f32.mrb[0].mxu0
    %v906 = vadd.f32 0.0, %v905
    %v907 = vpop.f32.mrb[0].mxu0
    %908 = vdwg.mxu0
    %v910 = vrot.slane %v906, 4
    %v912 = vadd.f32 %v173, %v910
    %v913 = vxor.u32 %v912, 2147483648
    %v914 = vmul.f32 %v913, 1.442695
    %v915 = vpow.pop %v914
    %v916 = vadd.f32 %v915, 1.0
    %v917 = vrcp.pop %v916
    %v918 = vmul.f32 1.0, %v917
    %v919 = vtanh.pop %v912
    %v921 = vrot.slane %v822, 6
    %v923 = vmul.f32 %v918, %v921
    %925 = vrot.lane.b32.xlu0 %v919, 64
    %v926 = vpop.permute.xlu0 %925
    %v928 = vmul.f32 %v918, %v926
    %930 = vrot.lane.b32.xlu0 %v928, 32
    %v931 = vpop.permute.xlu0 %930
    %v933 = vadd.f32 %v923, %v931
    %v934 = vtanh.pop %v933
    %936 = vrot.lane.b32.xlu0 %v934, 64
    %v937 = vpop.permute.xlu0 %936
    %v939 = vmul.f32 %v918, %v937
    %941 = vrot.lane.b32.xlu0 %v939, 32
    %v942 = vpop.permute.xlu0 %941
    %944 = vst.msk [vmem:[#allocation2 + $0x8] sm:$0x30] %vm504, %v942
    %v945 = vrot.slane %v939, 4
    %946 = vrot.lane.b32.xlu0 %v945, 32
    %v947 = vpop.permute.xlu0 %946
    %v948 = vsel %vm180, %v947, 0
    %950 = vmatprep.subr.mxu0 0.0
    %951 = vmatpush1.msra.mxu0 %v176
    %952 = vmatprep.subr.mxu0 0.0
    %953 = vmatpush1.msra.mxu0 %v177
    %954 = vmatprep.subr.mxu0 0.0
    %955 = vmatpush1.msra.mxu0 %v178
    %956 = vmatprep.subr.mxu0 0.0
    %957 = vmatpush1.msra.mxu0 %v179
    %958 = vmatprep.subr.mxu0 0.0
    %959 = vmatpush1.msra.mxu0 0.0
    %960 = vmatprep.subr.mxu0 0.0
    %961 = vmatpush1.msra.mxu0 0.0
    %962 = vmatprep.subr.mxu0 0.0
    %963 = vmatpush1.msra.mxu0 0.0
    %964 = vmatprep.subr.mxu0 0.0
    %965 = vmatpush1.msra.mxu0 0.0
    %966 = vmatprep.subr.mxu0 0.0
    %967 = vmatpush1.msra.mxu0 0.0
    %968 = vmatprep.subr.mxu0 0.0
    %969 = vmatpush1.msra.mxu0 0.0
    %970 = vmatprep.subr.mxu0 0.0
    %971 = vmatpush1.msra.mxu0 0.0
    %972 = vmatprep.subr.mxu0 0.0
    %973 = vmatpush1.msra.mxu0 0.0
    %974 = vmatprep.subr.mxu0 0.0
    %975 = vmatpush1.msra.mxu0 0.0
    %976 = vmatprep.subr.mxu0 0.0
    %977 = vmatpush1.msra.mxu0 0.0
    %978 = vmatprep.subr.mxu0 0.0
    %979 = vmatpush1.msra.mxu0 0.0
    %980 = vmatprep.subr.mxu0 0.0
    %981 = vmatpush1.msra.mxu0 0.0
    %982 = vmatprep.subr.mxu0 0.0
    %983 = vmatpush1.msra.mxu0 0.0
    %984 = vmatprep.subr.mxu0 0.0
    %985 = vmatpush1.msra.mxu0 0.0
    %986 = vmatprep.subr.mxu0 0.0
    %987 = vmatpush1.msra.mxu0 0.0
    %988 = vmatprep.subr.mxu0 0.0
    %989 = vmatpush1.msra.mxu0 0.0
    %990 = vmatprep.subr.mxu0 0.0
    %991 = vmatpush1.msra.mxu0 0.0
    %992 = vmatprep.subr.mxu0 0.0
    %993 = vmatpush1.msra.mxu0 0.0
    %994 = vmatprep.subr.mxu0 0.0
    %995 = vmatpush1.msra.mxu0 0.0
    %996 = vmatprep.subr.mxu0 0.0
    %997 = vmatpush1.msra.mxu0 0.0
    %998 = vmatprep.subr.mxu0 0.0
    %999 = vmatpush1.msra.mxu0 0.0
    %1000 = vmatprep.subr.mxu0 0.0
    %1001 = vmatpush1.msra.mxu0 0.0
    %1002 = vmatprep.subr.mxu0 0.0
    %1003 = vmatpush1.msra.mxu0 0.0
    %1004 = vmatprep.subr.mxu0 0.0
    %1005 = vmatpush1.msra.mxu0 0.0
    %1006 = vmatprep.subr.mxu0 0.0
    %1007 = vmatpush1.msra.mxu0 0.0
    %1008 = vmatprep.subr.mxu0 0.0
    %1009 = vmatpush1.msra.mxu0 0.0
    %1010 = vmatprep.subr.mxu0 0.0
    %1011 = vmatpush1.msra.mxu0 0.0
    %1012 = vmatprep.subr.mxu0 0.0
    %1013 = vmatpush1.msra.mxu0 0.0
    %1014 = vmatprep.mubr.f32.mxu0 0.0
    %1015 = vmatmul.mubr.f32.gmra.mrb[0].mxu0 %v948
    %v1016 = vpop.f32.mrb[0].mxu0
    %v1017 = vadd.f32 0.0, %v1016
    %v1018 = vpop.f32.mrb[0].mxu0
    %1019 = vdwg.mxu0
    %v1021 = vrot.slane %v1017, 2
    %v1023 = vadd.f32 %v173, %v1021
    %v1024 = vxor.u32 %v1023, 2147483648
    %v1025 = vmul.f32 %v1024, 1.442695
    %v1026 = vpow.pop %v1025
    %v1027 = vadd.f32 %v1026, 1.0
    %v1028 = vrcp.pop %v1027
    %v1029 = vmul.f32 1.0, %v1028
    %v1030 = vtanh.pop %v1023
    %v1032 = vrot.slane %v933, 6
    %v1034 = vmul.f32 %v1029, %v1032
    %1036 = vrot.lane.b32.xlu0 %v1030, 64
    %v1037 = vpop.permute.xlu0 %1036
    %v1039 = vmul.f32 %v1029, %v1037
    %1041 = vrot.lane.b32.xlu0 %v1039, 32
    %v1042 = vpop.permute.xlu0 %1041
    %v1044 = vadd.f32 %v1034, %v1042
    %v1045 = vtanh.pop %v1044
    %1047 = vrot.lane.b32.xlu0 %v1045, 64
    %v1048 = vpop.permute.xlu0 %1047
    %v1050 = vmul.f32 %v1029, %v1048
    %1052 = vrot.lane.b32.xlu0 %v1050, 32
    %v1053 = vpop.permute.xlu0 %1052
    %1055 = vst.msk [vmem:[#allocation2 + $0x8] sm:$0xc0] %vm616, %v1053
    %v1056 = vld [vmem:[#allocation2] sm:$0xff]
    %v1057 = vld [vmem:[#allocation2 + $0x8] sm:$0xff]
    %v1058 = vld [vmem:[#allocation8] sm:$0xff]
    %v1059 = vld [vmem:[#allocation8 + $0x8] sm:$0xff]
    %v1060 = vld [vmem:[#allocation8 + $0x10] sm:$0xff]
    %v1061 = vld [vmem:[#allocation8 + $0x18] sm:$0xff]
    %s1062 = scalar_lea.vmem %s4, 1
    %v1063 = vld [vmem:[%s1062] sm:$0x1]
    %v1065 = vlaneseq
    %v1066 = vshrl.u32 %v1065, 7
    %v1067 = vsub.s32 0, %v1066
    %v1068 = vrot.slane %v1063, %v1067
    %v1071 = vsel %vm180, %v1056, 0
    %v1074 = vsel %vm180, %v1057, 0
    %1076 = vmatprep.subr.mxu0 0.0
    %1077 = vmatpush1.msra.mxu0 %v1058
    %1078 = vmatprep.subr.mxu0 0.0
    %1079 = vmatpush1.msra.mxu0 %v1059
    %1080 = vmatprep.subr.mxu0 0.0
    %1081 = vmatpush1.msra.mxu0 %v1060
    %1082 = vmatprep.subr.mxu0 0.0
    %1083 = vmatpush1.msra.mxu0 %v1061
    %1084 = vmatprep.subr.mxu0 0.0
    %1085 = vmatpush1.msra.mxu0 0.0
    %1086 = vmatprep.subr.mxu0 0.0
    %1087 = vmatpush1.msra.mxu0 0.0
    %1088 = vmatprep.subr.mxu0 0.0
    %1089 = vmatpush1.msra.mxu0 0.0
    %1090 = vmatprep.subr.mxu0 0.0
    %1091 = vmatpush1.msra.mxu0 0.0
    %1092 = vmatprep.subr.mxu0 0.0
    %1093 = vmatpush1.msra.mxu0 0.0
    %1094 = vmatprep.subr.mxu0 0.0
    %1095 = vmatpush1.msra.mxu0 0.0
    %1096 = vmatprep.subr.mxu0 0.0
    %1097 = vmatpush1.msra.mxu0 0.0
    %1098 = vmatprep.subr.mxu0 0.0
    %1099 = vmatpush1.msra.mxu0 0.0
    %1100 = vmatprep.subr.mxu0 0.0
    %1101 = vmatpush1.msra.mxu0 0.0
    %1102 = vmatprep.subr.mxu0 0.0
    %1103 = vmatpush1.msra.mxu0 0.0
    %1104 = vmatprep.subr.mxu0 0.0
    %1105 = vmatpush1.msra.mxu0 0.0
    %1106 = vmatprep.subr.mxu0 0.0
    %1107 = vmatpush1.msra.mxu0 0.0
    %1108 = vmatprep.subr.mxu0 0.0
    %1109 = vmatpush1.msra.mxu0 0.0
    %1110 = vmatprep.subr.mxu0 0.0
    %1111 = vmatpush1.msra.mxu0 0.0
    %1112 = vmatprep.subr.mxu0 0.0
    %1113 = vmatpush1.msra.mxu0 0.0
    %1114 = vmatprep.subr.mxu0 0.0
    %1115 = vmatpush1.msra.mxu0 0.0
    %1116 = vmatprep.subr.mxu0 0.0
    %1117 = vmatpush1.msra.mxu0 0.0
    %1118 = vmatprep.subr.mxu0 0.0
    %1119 = vmatpush1.msra.mxu0 0.0
    %1120 = vmatprep.subr.mxu0 0.0
    %1121 = vmatpush1.msra.mxu0 0.0
    %1122 = vmatprep.subr.mxu0 0.0
    %1123 = vmatpush1.msra.mxu0 0.0
    %1124 = vmatprep.subr.mxu0 0.0
    %1125 = vmatpush1.msra.mxu0 0.0
    %1126 = vmatprep.subr.mxu0 0.0
    %1127 = vmatpush1.msra.mxu0 0.0
    %1128 = vmatprep.subr.mxu0 0.0
    %1129 = vmatpush1.msra.mxu0 0.0
    %1130 = vmatprep.subr.mxu0 0.0
    %1131 = vmatpush1.msra.mxu0 0.0
    %1132 = vmatprep.subr.mxu0 0.0
    %1133 = vmatpush1.msra.mxu0 0.0
    %1134 = vmatprep.subr.mxu0 0.0
    %1135 = vmatpush1.msra.mxu0 0.0
    %1136 = vmatprep.subr.mxu0 0.0
    %1137 = vmatpush1.msra.mxu0 0.0
    %1138 = vmatprep.subr.mxu0 0.0
    %1139 = vmatpush1.msra.mxu0 0.0
    %1140 = vmatprep.mubr.f32.mxu0 0.0
    %1141 = vmatmul.mubr.f32.gmra.mrb[0].mxu0 %v1071
    %v1142 = vpop.f32.mrb[0].mxu0
    %v1143 = vadd.f32 %v1068, %v1142
    %v1144 = vpop.f32.mrb[0].mxu0
    %1145 = vmatprep.mubr.f32.mxu0 0.0
    %1146 = vmatmul.mubr.f32.gmra.mrb[0].mxu0 %v1074
    %v1147 = vpop.f32.mrb[0].mxu0
    %v1148 = vadd.f32 %v1068, %v1147
    %v1149 = vpop.f32.mrb[0].mxu0
    %1150 = vdwg.mxu0
    %s1151 = scalar_lea.vmem [#allocation9], 32
    %v1152 = vld [vmem:[%s1151] sm:$0xff]
    %v1153 = vld [vmem:[%s1151 + $0x8] sm:$0xff]
    %v1154 = vld [vmem:[%s1151 + $0x10] sm:$0xff]
    %v1155 = vld [vmem:[%s1151 + $0x18] sm:$0xff]
    %1156 = vmatprep.subr.mxu0 0.0
    %1157 = vmatpush1.msra.mxu0 %v1152
    %1158 = vmatprep.subr.mxu0 0.0
    %1159 = vmatpush1.msra.mxu0 %v1153
    %1160 = vmatprep.subr.mxu0 0.0
    %1161 = vmatpush1.msra.mxu0 %v1154
    %1162 = vmatprep.subr.mxu0 0.0
    %1163 = vmatpush1.msra.mxu0 %v1155
    %1164 = vmatprep.subr.mxu0 0.0
    %1165 = vmatpush1.msra.mxu0 0.0
    %1166 = vmatprep.subr.mxu0 0.0
    %1167 = vmatpush1.msra.mxu0 0.0
    %1168 = vmatprep.subr.mxu0 0.0
    %1169 = vmatpush1.msra.mxu0 0.0
    %1170 = vmatprep.subr.mxu0 0.0
    %1171 = vmatpush1.msra.mxu0 0.0
    %1172 = vmatprep.subr.mxu0 0.0
    %1173 = vmatpush1.msra.mxu0 0.0
    %1174 = vmatprep.subr.mxu0 0.0
    %1175 = vmatpush1.msra.mxu0 0.0
    %1176 = vmatprep.subr.mxu0 0.0
    %1177 = vmatpush1.msra.mxu0 0.0
    %1178 = vmatprep.subr.mxu0 0.0
    %1179 = vmatpush1.msra.mxu0 0.0
    %1180 = vmatprep.subr.mxu0 0.0
    %1181 = vmatpush1.msra.mxu0 0.0
    %1182 = vmatprep.subr.mxu0 0.0
    %1183 = vmatpush1.msra.mxu0 0.0
    %1184 = vmatprep.subr.mxu0 0.0
    %1185 = vmatpush1.msra.mxu0 0.0
    %1186 = vmatprep.subr.mxu0 0.0
    %1187 = vmatpush1.msra.mxu0 0.0
    %1188 = vmatprep.subr.mxu0 0.0
    %1189 = vmatpush1.msra.mxu0 0.0
    %1190 = vmatprep.subr.mxu0 0.0
    %1191 = vmatpush1.msra.mxu0 0.0
    %1192 = vmatprep.subr.mxu0 0.0
    %1193 = vmatpush1.msra.mxu0 0.0
    %1194 = vmatprep.subr.mxu0 0.0
    %1195 = vmatpush1.msra.mxu0 0.0
    %1196 = vmatprep.subr.mxu0 0.0
    %1197 = vmatpush1.msra.mxu0 0.0
    %1198 = vmatprep.subr.mxu0 0.0
    %1199 = vmatpush1.msra.mxu0 0.0
    %1200 = vmatprep.subr.mxu0 0.0
    %1201 = vmatpush1.msra.mxu0 0.0
    %1202 = vmatprep.subr.mxu0 0.0
    %1203 = vmatpush1.msra.mxu0 0.0
    %1204 = vmatprep.subr.mxu0 0.0
    %1205 = vmatpush1.msra.mxu0 0.0
    %1206 = vmatprep.subr.mxu0 0.0
    %1207 = vmatpush1.msra.mxu0 0.0
    %1208 = vmatprep.subr.mxu0 0.0
    %1209 = vmatpush1.msra.mxu0 0.0
    %1210 = vmatprep.subr.mxu0 0.0
    %1211 = vmatpush1.msra.mxu0 0.0
    %1212 = vmatprep.subr.mxu0 0.0
    %1213 = vmatpush1.msra.mxu0 0.0
    %1214 = vmatprep.subr.mxu0 0.0
    %1215 = vmatpush1.msra.mxu0 0.0
    %1216 = vmatprep.subr.mxu0 0.0
    %1217 = vmatpush1.msra.mxu0 0.0
    %1218 = vmatprep.subr.mxu0 0.0
    %1219 = vmatpush1.msra.mxu0 0.0
    %1220 = vmatprep.mubr.f32.mxu0 0.0
    %1221 = vmatmul.mubr.f32.gmra.mrb[0].mxu0 %v182
    %v1222 = vpop.f32.mrb[0].mxu0
    %v1223 = vadd.f32 0.0, %v1222
    %v1224 = vpop.f32.mrb[0].mxu0
    %1225 = vdwg.mxu0
    %v1226 = vadd.f32 %v1143, %v1223
    %v1227 = vxor.u32 %v1226, 2147483648
    %v1228 = vmul.f32 %v1227, 1.442695
    %v1229 = vpow.pop %v1228
    %v1230 = vadd.f32 %v1229, 1.0
    %v1231 = vrcp.pop %v1230
    %v1232 = vmul.f32 1.0, %v1231
    %v1233 = vtanh.pop %v1226
    %v1234 = vmul.f32 %v1232, 0.0
    %1236 = vrot.lane.b32.xlu0 %v1233, 64
    %v1237 = vpop.permute.xlu0 %1236
    %v1239 = vmul.f32 %v1232, %v1237
    %1241 = vrot.lane.b32.xlu0 %v1239, 32
    %v1242 = vpop.permute.xlu0 %1241
    %v1244 = vadd.f32 %v1234, %v1242
    %v1245 = vtanh.pop %v1244
    %1247 = vrot.lane.b32.xlu0 %v1245, 64
    %v1248 = vpop.permute.xlu0 %1247
    %v1250 = vmul.f32 %v1232, %v1248
    %1252 = vrot.lane.b32.xlu0 %v1250, 32
    %v1253 = vpop.permute.xlu0 %1252
    %1255 = vst.msk [vmem:[#allocation2] sm:$0x3] %vm283, %v1253
    %v1256 = vsel %vm180, %v1253, 0
    %1258 = vmatprep.subr.mxu0 0.0
    %1259 = vmatpush1.msra.mxu0 %v1152
    %1260 = vmatprep.subr.mxu0 0.0
    %1261 = vmatpush1.msra.mxu0 %v1153
    %1262 = vmatprep.subr.mxu0 0.0
    %1263 = vmatpush1.msra.mxu0 %v1154
    %1264 = vmatprep.subr.mxu0 0.0
    %1265 = vmatpush1.msra.mxu0 %v1155
    %1266 = vmatprep.subr.mxu0 0.0
    %1267 = vmatpush1.msra.mxu0 0.0
    %1268 = vmatprep.subr.mxu0 0.0
    %1269 = vmatpush1.msra.mxu0 0.0
    %1270 = vmatprep.subr.mxu0 0.0
    %1271 = vmatpush1.msra.mxu0 0.0
    %1272 = vmatprep.subr.mxu0 0.0
    %1273 = vmatpush1.msra.mxu0 0.0
    %1274 = vmatprep.subr.mxu0 0.0
    %1275 = vmatpush1.msra.mxu0 0.0
    %1276 = vmatprep.subr.mxu0 0.0
    %1277 = vmatpush1.msra.mxu0 0.0
    %1278 = vmatprep.subr.mxu0 0.0
    %1279 = vmatpush1.msra.mxu0 0.0
    %1280 = vmatprep.subr.mxu0 0.0
    %1281 = vmatpush1.msra.mxu0 0.0
    %1282 = vmatprep.subr.mxu0 0.0
    %1283 = vmatpush1.msra.mxu0 0.0
    %1284 = vmatprep.subr.mxu0 0.0
    %1285 = vmatpush1.msra.mxu0 0.0
    %1286 = vmatprep.subr.mxu0 0.0
    %1287 = vmatpush1.msra.mxu0 0.0
    %1288 = vmatprep.subr.mxu0 0.0
    %1289 = vmatpush1.msra.mxu0 0.0
    %1290 = vmatprep.subr.mxu0 0.0
    %1291 = vmatpush1.msra.mxu0 0.0
    %1292 = vmatprep.subr.mxu0 0.0
    %1293 = vmatpush1.msra.mxu0 0.0
    %1294 = vmatprep.subr.mxu0 0.0
    %1295 = vmatpush1.msra.mxu0 0.0
    %1296 = vmatprep.subr.mxu0 0.0
    %1297 = vmatpush1.msra.mxu0 0.0
    %1298 = vmatprep.subr.mxu0 0.0
    %1299 = vmatpush1.msra.mxu0 0.0
    %1300 = vmatprep.subr.mxu0 0.0
    %1301 = vmatpush1.msra.mxu0 0.0
    %1302 = vmatprep.subr.mxu0 0.0
    %1303 = vmatpush1.msra.mxu0 0.0
    %1304 = vmatprep.subr.mxu0 0.0
    %1305 = vmatpush1.msra.mxu0 0.0
    %1306 = vmatprep.subr.mxu0 0.0
    %1307 = vmatpush1.msra.mxu0 0.0
    %1308 = vmatprep.subr.mxu0 0.0
    %1309 = vmatpush1.msra.mxu0 0.0
    %1310 = vmatprep.subr.mxu0 0.0
    %1311 = vmatpush1.msra.mxu0 0.0
    %1312 = vmatprep.subr.mxu0 0.0
    %1313 = vmatpush1.msra.mxu0 0.0
    %1314 = vmatprep.subr.mxu0 0.0
    %1315 = vmatpush1.msra.mxu0 0.0
    %1316 = vmatprep.subr.mxu0 0.0
    %1317 = vmatpush1.msra.mxu0 0.0
    %1318 = vmatprep.subr.mxu0 0.0
    %1319 = vmatpush1.msra.mxu0 0.0
    %1320 = vmatprep.subr.mxu0 0.0
    %1321 = vmatpush1.msra.mxu0 0.0
    %1322 = vmatprep.mubr.f32.mxu0 0.0
    %1323 = vmatmul.mubr.f32.gmra.mrb[0].mxu0 %v1256
    %v1324 = vpop.f32.mrb[0].mxu0
    %v1325 = vadd.f32 0.0, %v1324
    %v1326 = vpop.f32.mrb[0].mxu0
    %1327 = vdwg.mxu0
    %v1329 = vrot.slane %v1325, 6
    %v1331 = vadd.f32 %v1143, %v1329
    %v1332 = vxor.u32 %v1331, 2147483648
    %v1333 = vmul.f32 %v1332, 1.442695
    %v1334 = vpow.pop %v1333
    %v1335 = vadd.f32 %v1334, 1.0
    %v1336 = vrcp.pop %v1335
    %v1337 = vmul.f32 1.0, %v1336
    %v1338 = vtanh.pop %v1331
    %v1340 = vrot.slane %v1244, 6
    %v1342 = vmul.f32 %v1337, %v1340
    %1344 = vrot.lane.b32.xlu0 %v1338, 64
    %v1345 = vpop.permute.xlu0 %1344
    %v1347 = vmul.f32 %v1337, %v1345
    %1349 = vrot.lane.b32.xlu0 %v1347, 32
    %v1350 = vpop.permute.xlu0 %1349
    %v1352 = vadd.f32 %v1342, %v1350
    %v1353 = vtanh.pop %v1352
    %1355 = vrot.lane.b32.xlu0 %v1353, 64
    %v1356 = vpop.permute.xlu0 %1355
    %v1358 = vmul.f32 %v1337, %v1356
    %1360 = vrot.lane.b32.xlu0 %v1358, 32
    %v1361 = vpop.permute.xlu0 %1360
    %1363 = vst.msk [vmem:[#allocation2] sm:$0xc] %vm392, %v1361
    %v1364 = vrot.slane %v1358, 2
    %1365 = vrot.lane.b32.xlu0 %v1364, 32
    %v1366 = vpop.permute.xlu0 %1365
    %v1367 = vsel %vm180, %v1366, 0
    %1369 = vmatprep.subr.mxu0 0.0
    %1370 = vmatpush1.msra.mxu0 %v1152
    %1371 = vmatprep.subr.mxu0 0.0
    %1372 = vmatpush1.msra.mxu0 %v1153
    %1373 = vmatprep.subr.mxu0 0.0
    %1374 = vmatpush1.msra.mxu0 %v1154
    %1375 = vmatprep.subr.mxu0 0.0
    %1376 = vmatpush1.msra.mxu0 %v1155
    %1377 = vmatprep.subr.mxu0 0.0
    %1378 = vmatpush1.msra.mxu0 0.0
    %1379 = vmatprep.subr.mxu0 0.0
    %1380 = vmatpush1.msra.mxu0 0.0
    %1381 = vmatprep.subr.mxu0 0.0
    %1382 = vmatpush1.msra.mxu0 0.0
    %1383 = vmatprep.subr.mxu0 0.0
    %1384 = vmatpush1.msra.mxu0 0.0
    %1385 = vmatprep.subr.mxu0 0.0
    %1386 = vmatpush1.msra.mxu0 0.0
    %1387 = vmatprep.subr.mxu0 0.0
    %1388 = vmatpush1.msra.mxu0 0.0
    %1389 = vmatprep.subr.mxu0 0.0
    %1390 = vmatpush1.msra.mxu0 0.0
    %1391 = vmatprep.subr.mxu0 0.0
    %1392 = vmatpush1.msra.mxu0 0.0
    %1393 = vmatprep.subr.mxu0 0.0
    %1394 = vmatpush1.msra.mxu0 0.0
    %1395 = vmatprep.subr.mxu0 0.0
    %1396 = vmatpush1.msra.mxu0 0.0
    %1397 = vmatprep.subr.mxu0 0.0
    %1398 = vmatpush1.msra.mxu0 0.0
    %1399 = vmatprep.subr.mxu0 0.0
    %1400 = vmatpush1.msra.mxu0 0.0
    %1401 = vmatprep.subr.mxu0 0.0
    %1402 = vmatpush1.msra.mxu0 0.0
    %1403 = vmatprep.subr.mxu0 0.0
    %1404 = vmatpush1.msra.mxu0 0.0
    %1405 = vmatprep.subr.mxu0 0.0
    %1406 = vmatpush1.msra.mxu0 0.0
    %1407 = vmatprep.subr.mxu0 0.0
    %1408 = vmatpush1.msra.mxu0 0.0
    %1409 = vmatprep.subr.mxu0 0.0
    %1410 = vmatpush1.msra.mxu0 0.0
    %1411 = vmatprep.subr.mxu0 0.0
    %1412 = vmatpush1.msra.mxu0 0.0
    %1413 = vmatprep.subr.mxu0 0.0
    %1414 = vmatpush1.msra.mxu0 0.0
    %1415 = vmatprep.subr.mxu0 0.0
    %1416 = vmatpush1.msra.mxu0 0.0
    %1417 = vmatprep.subr.mxu0 0.0
    %1418 = vmatpush1.msra.mxu0 0.0
    %1419 = vmatprep.subr.mxu0 0.0
    %1420 = vmatpush1.msra.mxu0 0.0
    %1421 = vmatprep.subr.mxu0 0.0
    %1422 = vmatpush1.msra.mxu0 0.0
    %1423 = vmatprep.subr.mxu0 0.0
    %1424 = vmatpush1.msra.mxu0 0.0
    %1425 = vmatprep.subr.mxu0 0.0
    %1426 = vmatpush1.msra.mxu0 0.0
    %1427 = vmatprep.subr.mxu0 0.0
    %1428 = vmatpush1.msra.mxu0 0.0
    %1429 = vmatprep.subr.mxu0 0.0
    %1430 = vmatpush1.msra.mxu0 0.0
    %1431 = vmatprep.subr.mxu0 0.0
    %1432 = vmatpush1.msra.mxu0 0.0
    %1433 = vmatprep.mubr.f32.mxu0 0.0
    %1434 = vmatmul.mubr.f32.gmra.mrb[0].mxu0 %v1367
    %v1435 = vpop.f32.mrb[0].mxu0
    %v1436 = vadd.f32 0.0, %v1435
    %v1437 = vpop.f32.mrb[0].mxu0
    %1438 = vdwg.mxu0
    %v1440 = vrot.slane %v1436, 4
    %v1442 = vadd.f32 %v1143, %v1440
    %v1443 = vxor.u32 %v1442, 2147483648
    %v1444 = vmul.f32 %v1443, 1.442695
    %v1445 = vpow.pop %v1444
    %v1446 = vadd.f32 %v1445, 1.0
    %v1447 = vrcp.pop %v1446
    %v1448 = vmul.f32 1.0, %v1447
    %v1449 = vtanh.pop %v1442
    %v1451 = vrot.slane %v1352, 6
    %v1453 = vmul.f32 %v1448, %v1451
    %1455 = vrot.lane.b32.xlu0 %v1449, 64
    %v1456 = vpop.permute.xlu0 %1455
    %v1458 = vmul.f32 %v1448, %v1456
    %1460 = vrot.lane.b32.xlu0 %v1458, 32
    %v1461 = vpop.permute.xlu0 %1460
    %v1463 = vadd.f32 %v1453, %v1461
    %v1464 = vtanh.pop %v1463
    %1466 = vrot.lane.b32.xlu0 %v1464, 64
    %v1467 = vpop.permute.xlu0 %1466
    %v1469 = vmul.f32 %v1448, %v1467
    %1471 = vrot.lane.b32.xlu0 %v1469, 32
    %v1472 = vpop.permute.xlu0 %1471
    %1474 = vst.msk [vmem:[#allocation2] sm:$0x30] %vm504, %v1472
    %v1475 = vrot.slane %v1469, 4
    %1476 = vrot.lane.b32.xlu0 %v1475, 32
    %v1477 = vpop.permute.xlu0 %1476
    %v1478 = vsel %vm180, %v1477, 0
    %1480 = vmatprep.subr.mxu0 0.0
    %1481 = vmatpush1.msra.mxu0 %v1152
    %1482 = vmatprep.subr.mxu0 0.0
    %1483 = vmatpush1.msra.mxu0 %v1153
    %1484 = vmatprep.subr.mxu0 0.0
    %1485 = vmatpush1.msra.mxu0 %v1154
    %1486 = vmatprep.subr.mxu0 0.0
    %1487 = vmatpush1.msra.mxu0 %v1155
    %1488 = vmatprep.subr.mxu0 0.0
    %1489 = vmatpush1.msra.mxu0 0.0
    %1490 = vmatprep.subr.mxu0 0.0
    %1491 = vmatpush1.msra.mxu0 0.0
    %1492 = vmatprep.subr.mxu0 0.0
    %1493 = vmatpush1.msra.mxu0 0.0
    %1494 = vmatprep.subr.mxu0 0.0
    %1495 = vmatpush1.msra.mxu0 0.0
    %1496 = vmatprep.subr.mxu0 0.0
    %1497 = vmatpush1.msra.mxu0 0.0
    %1498 = vmatprep.subr.mxu0 0.0
    %1499 = vmatpush1.msra.mxu0 0.0
    %1500 = vmatprep.subr.mxu0 0.0
    %1501 = vmatpush1.msra.mxu0 0.0
    %1502 = vmatprep.subr.mxu0 0.0
    %1503 = vmatpush1.msra.mxu0 0.0
    %1504 = vmatprep.subr.mxu0 0.0
    %1505 = vmatpush1.msra.mxu0 0.0
    %1506 = vmatprep.subr.mxu0 0.0
    %1507 = vmatpush1.msra.mxu0 0.0
    %1508 = vmatprep.subr.mxu0 0.0
    %1509 = vmatpush1.msra.mxu0 0.0
    %1510 = vmatprep.subr.mxu0 0.0
    %1511 = vmatpush1.msra.mxu0 0.0
    %1512 = vmatprep.subr.mxu0 0.0
    %1513 = vmatpush1.msra.mxu0 0.0
    %1514 = vmatprep.subr.mxu0 0.0
    %1515 = vmatpush1.msra.mxu0 0.0
    %1516 = vmatprep.subr.mxu0 0.0
    %1517 = vmatpush1.msra.mxu0 0.0
    %1518 = vmatprep.subr.mxu0 0.0
    %1519 = vmatpush1.msra.mxu0 0.0
    %1520 = vmatprep.subr.mxu0 0.0
    %1521 = vmatpush1.msra.mxu0 0.0
    %1522 = vmatprep.subr.mxu0 0.0
    %1523 = vmatpush1.msra.mxu0 0.0
    %1524 = vmatprep.subr.mxu0 0.0
    %1525 = vmatpush1.msra.mxu0 0.0
    %1526 = vmatprep.subr.mxu0 0.0
    %1527 = vmatpush1.msra.mxu0 0.0
    %1528 = vmatprep.subr.mxu0 0.0
    %1529 = vmatpush1.msra.mxu0 0.0
    %1530 = vmatprep.subr.mxu0 0.0
    %1531 = vmatpush1.msra.mxu0 0.0
    %1532 = vmatprep.subr.mxu0 0.0
    %1533 = vmatpush1.msra.mxu0 0.0
    %1534 = vmatprep.subr.mxu0 0.0
    %1535 = vmatpush1.msra.mxu0 0.0
    %1536 = vmatprep.subr.mxu0 0.0
    %1537 = vmatpush1.msra.mxu0 0.0
    %1538 = vmatprep.subr.mxu0 0.0
    %1539 = vmatpush1.msra.mxu0 0.0
    %1540 = vmatprep.subr.mxu0 0.0
    %1541 = vmatpush1.msra.mxu0 0.0
    %1542 = vmatprep.subr.mxu0 0.0
    %1543 = vmatpush1.msra.mxu0 0.0
    %1544 = vmatprep.mubr.f32.mxu0 0.0
    %1545 = vmatmul.mubr.f32.gmra.mrb[0].mxu0 %v1478
    %v1546 = vpop.f32.mrb[0].mxu0
    %v1547 = vadd.f32 0.0, %v1546
    %v1548 = vpop.f32.mrb[0].mxu0
    %1549 = vdwg.mxu0
    %v1551 = vrot.slane %v1547, 2
    %v1553 = vadd.f32 %v1143, %v1551
    %v1554 = vxor.u32 %v1553, 2147483648
    %v1555 = vmul.f32 %v1554, 1.442695
    %v1556 = vpow.pop %v1555
    %v1557 = vadd.f32 %v1556, 1.0
    %v1558 = vrcp.pop %v1557
    %v1559 = vmul.f32 1.0, %v1558
    %v1560 = vtanh.pop %v1553
    %v1562 = vrot.slane %v1463, 6
    %v1564 = vmul.f32 %v1559, %v1562
    %1566 = vrot.lane.b32.xlu0 %v1560, 64
    %v1567 = vpop.permute.xlu0 %1566
    %v1569 = vmul.f32 %v1559, %v1567
    %1571 = vrot.lane.b32.xlu0 %v1569, 32
    %v1572 = vpop.permute.xlu0 %1571
    %v1574 = vadd.f32 %v1564, %v1572
    %v1575 = vtanh.pop %v1574
    %1577 = vrot.lane.b32.xlu0 %v1575, 64
    %v1578 = vpop.permute.xlu0 %1577
    %v1580 = vmul.f32 %v1559, %v1578
    %1582 = vrot.lane.b32.xlu0 %v1580, 32
    %v1583 = vpop.permute.xlu0 %1582
    %1585 = vst.msk [vmem:[#allocation2] sm:$0xc0] %vm616, %v1583
    %v1586 = vrot.slane %v1580, 6
    %1587 = vrot.lane.b32.xlu0 %v1586, 32
    %v1588 = vpop.permute.xlu0 %1587
    %v1589 = vsel %vm180, %v1588, 0
    %1591 = vmatprep.subr.mxu0 0.0
    %1592 = vmatpush1.msra.mxu0 %v1152
    %1593 = vmatprep.subr.mxu0 0.0
    %1594 = vmatpush1.msra.mxu0 %v1153
    %1595 = vmatprep.subr.mxu0 0.0
    %1596 = vmatpush1.msra.mxu0 %v1154
    %1597 = vmatprep.subr.mxu0 0.0
    %1598 = vmatpush1.msra.mxu0 %v1155
    %1599 = vmatprep.subr.mxu0 0.0
    %1600 = vmatpush1.msra.mxu0 0.0
    %1601 = vmatprep.subr.mxu0 0.0
    %1602 = vmatpush1.msra.mxu0 0.0
    %1603 = vmatprep.subr.mxu0 0.0
    %1604 = vmatpush1.msra.mxu0 0.0
    %1605 = vmatprep.subr.mxu0 0.0
    %1606 = vmatpush1.msra.mxu0 0.0
    %1607 = vmatprep.subr.mxu0 0.0
    %1608 = vmatpush1.msra.mxu0 0.0
    %1609 = vmatprep.subr.mxu0 0.0
    %1610 = vmatpush1.msra.mxu0 0.0
    %1611 = vmatprep.subr.mxu0 0.0
    %1612 = vmatpush1.msra.mxu0 0.0
    %1613 = vmatprep.subr.mxu0 0.0
    %1614 = vmatpush1.msra.mxu0 0.0
    %1615 = vmatprep.subr.mxu0 0.0
    %1616 = vmatpush1.msra.mxu0 0.0
    %1617 = vmatprep.subr.mxu0 0.0
    %1618 = vmatpush1.msra.mxu0 0.0
    %1619 = vmatprep.subr.mxu0 0.0
    %1620 = vmatpush1.msra.mxu0 0.0
    %1621 = vmatprep.subr.mxu0 0.0
    %1622 = vmatpush1.msra.mxu0 0.0
    %1623 = vmatprep.subr.mxu0 0.0
    %1624 = vmatpush1.msra.mxu0 0.0
    %1625 = vmatprep.subr.mxu0 0.0
    %1626 = vmatpush1.msra.mxu0 0.0
    %1627 = vmatprep.subr.mxu0 0.0
    %1628 = vmatpush1.msra.mxu0 0.0
    %1629 = vmatprep.subr.mxu0 0.0
    %1630 = vmatpush1.msra.mxu0 0.0
    %1631 = vmatprep.subr.mxu0 0.0
    %1632 = vmatpush1.msra.mxu0 0.0
    %1633 = vmatprep.subr.mxu0 0.0
    %1634 = vmatpush1.msra.mxu0 0.0
    %1635 = vmatprep.subr.mxu0 0.0
    %1636 = vmatpush1.msra.mxu0 0.0
    %1637 = vmatprep.subr.mxu0 0.0
    %1638 = vmatpush1.msra.mxu0 0.0
    %1639 = vmatprep.subr.mxu0 0.0
    %1640 = vmatpush1.msra.mxu0 0.0
    %1641 = vmatprep.subr.mxu0 0.0
    %1642 = vmatpush1.msra.mxu0 0.0
    %1643 = vmatprep.subr.mxu0 0.0
    %1644 = vmatpush1.msra.mxu0 0.0
    %1645 = vmatprep.subr.mxu0 0.0
    %1646 = vmatpush1.msra.mxu0 0.0
    %1647 = vmatprep.subr.mxu0 0.0
    %1648 = vmatpush1.msra.mxu0 0.0
    %1649 = vmatprep.subr.mxu0 0.0
    %1650 = vmatpush1.msra.mxu0 0.0
    %1651 = vmatprep.subr.mxu0 0.0
    %1652 = vmatpush1.msra.mxu0 0.0
    %1653 = vmatprep.subr.mxu0 0.0
    %1654 = vmatpush1.msra.mxu0 0.0
    %1655 = vmatprep.mubr.f32.mxu0 0.0
    %1656 = vmatmul.mubr.f32.gmra.mrb[0].mxu0 %v1589
    %v1657 = vpop.f32.mrb[0].mxu0
    %v1658 = vadd.f32 0.0, %v1657
    %v1659 = vpop.f32.mrb[0].mxu0
    %1660 = vdwg.mxu0
    %v1661 = vadd.f32 %v1148, %v1658
    %v1662 = vxor.u32 %v1661, 2147483648
    %v1663 = vmul.f32 %v1662, 1.442695
    %v1664 = vpow.pop %v1663
    %v1665 = vadd.f32 %v1664, 1.0
    %v1666 = vrcp.pop %v1665
    %v1667 = vmul.f32 1.0, %v1666
    %v1668 = vtanh.pop %v1661
    %v1670 = vrot.slane %v1574, 6
    %v1672 = vmul.f32 %v1667, %v1670
    %1674 = vrot.lane.b32.xlu0 %v1668, 64
    %v1675 = vpop.permute.xlu0 %1674
    %v1677 = vmul.f32 %v1667, %v1675
    %1679 = vrot.lane.b32.xlu0 %v1677, 32
    %v1680 = vpop.permute.xlu0 %1679
    %v1682 = vadd.f32 %v1672, %v1680
    %v1683 = vtanh.pop %v1682
    %1685 = vrot.lane.b32.xlu0 %v1683, 64
    %v1686 = vpop.permute.xlu0 %1685
    %v1688 = vmul.f32 %v1667, %v1686
    %1690 = vrot.lane.b32.xlu0 %v1688, 32
    %v1691 = vpop.permute.xlu0 %1690
    %1693 = vst.msk [vmem:[#allocation2 + $0x8] sm:$0x3] %vm283, %v1691
    %v1694 = vsel %vm180, %v1691, 0
    %1696 = vmatprep.subr.mxu0 0.0
    %1697 = vmatpush1.msra.mxu0 %v1152
    %1698 = vmatprep.subr.mxu0 0.0
    %1699 = vmatpush1.msra.mxu0 %v1153
    %1700 = vmatprep.subr.mxu0 0.0
    %1701 = vmatpush1.msra.mxu0 %v1154
    %1702 = vmatprep.subr.mxu0 0.0
    %1703 = vmatpush1.msra.mxu0 %v1155
    %1704 = vmatprep.subr.mxu0 0.0
    %1705 = vmatpush1.msra.mxu0 0.0
    %1706 = vmatprep.subr.mxu0 0.0
    %1707 = vmatpush1.msra.mxu0 0.0
    %1708 = vmatprep.subr.mxu0 0.0
    %1709 = vmatpush1.msra.mxu0 0.0
    %1710 = vmatprep.subr.mxu0 0.0
    %1711 = vmatpush1.msra.mxu0 0.0
    %1712 = vmatprep.subr.mxu0 0.0
    %1713 = vmatpush1.msra.mxu0 0.0
    %1714 = vmatprep.subr.mxu0 0.0
    %1715 = vmatpush1.msra.mxu0 0.0
    %1716 = vmatprep.subr.mxu0 0.0
    %1717 = vmatpush1.msra.mxu0 0.0
    %1718 = vmatprep.subr.mxu0 0.0
    %1719 = vmatpush1.msra.mxu0 0.0
    %1720 = vmatprep.subr.mxu0 0.0
    %1721 = vmatpush1.msra.mxu0 0.0
    %1722 = vmatprep.subr.mxu0 0.0
    %1723 = vmatpush1.msra.mxu0 0.0
    %1724 = vmatprep.subr.mxu0 0.0
    %1725 = vmatpush1.msra.mxu0 0.0
    %1726 = vmatprep.subr.mxu0 0.0
    %1727 = vmatpush1.msra.mxu0 0.0
    %1728 = vmatprep.subr.mxu0 0.0
    %1729 = vmatpush1.msra.mxu0 0.0
    %1730 = vmatprep.subr.mxu0 0.0
    %1731 = vmatpush1.msra.mxu0 0.0
    %1732 = vmatprep.subr.mxu0 0.0
    %1733 = vmatpush1.msra.mxu0 0.0
    %1734 = vmatprep.subr.mxu0 0.0
    %1735 = vmatpush1.msra.mxu0 0.0
    %1736 = vmatprep.subr.mxu0 0.0
    %1737 = vmatpush1.msra.mxu0 0.0
    %1738 = vmatprep.subr.mxu0 0.0
    %1739 = vmatpush1.msra.mxu0 0.0
    %1740 = vmatprep.subr.mxu0 0.0
    %1741 = vmatpush1.msra.mxu0 0.0
    %1742 = vmatprep.subr.mxu0 0.0
    %1743 = vmatpush1.msra.mxu0 0.0
    %1744 = vmatprep.subr.mxu0 0.0
    %1745 = vmatpush1.msra.mxu0 0.0
    %1746 = vmatprep.subr.mxu0 0.0
    %1747 = vmatpush1.msra.mxu0 0.0
    %1748 = vmatprep.subr.mxu0 0.0
    %1749 = vmatpush1.msra.mxu0 0.0
    %1750 = vmatprep.subr.mxu0 0.0
    %1751 = vmatpush1.msra.mxu0 0.0
    %1752 = vmatprep.subr.mxu0 0.0
    %1753 = vmatpush1.msra.mxu0 0.0
    %1754 = vmatprep.subr.mxu0 0.0
    %1755 = vmatpush1.msra.mxu0 0.0
    %1756 = vmatprep.subr.mxu0 0.0
    %1757 = vmatpush1.msra.mxu0 0.0
    %1758 = vmatprep.subr.mxu0 0.0
    %1759 = vmatpush1.msra.mxu0 0.0
    %1760 = vmatprep.mubr.f32.mxu0 0.0
    %1761 = vmatmul.mubr.f32.gmra.mrb[0].mxu0 %v1694
    %v1762 = vpop.f32.mrb[0].mxu0
    %v1763 = vadd.f32 0.0, %v1762
    %v1764 = vpop.f32.mrb[0].mxu0
    %1765 = vdwg.mxu0
    %v1767 = vrot.slane %v1763, 6
    %v1769 = vadd.f32 %v1148, %v1767
    %v1770 = vxor.u32 %v1769, 2147483648
    %v1771 = vmul.f32 %v1770, 1.442695
    %v1772 = vpow.pop %v1771
    %v1773 = vadd.f32 %v1772, 1.0
    %v1774 = vrcp.pop %v1773
    %v1775 = vmul.f32 1.0, %v1774
    %v1776 = vtanh.pop %v1769
    %v1778 = vrot.slane %v1682, 6
    %v1780 = vmul.f32 %v1775, %v1778
    %1782 = vrot.lane.b32.xlu0 %v1776, 64
    %v1783 = vpop.permute.xlu0 %1782
    %v1785 = vmul.f32 %v1775, %v1783
    %1787 = vrot.lane.b32.xlu0 %v1785, 32
    %v1788 = vpop.permute.xlu0 %1787
    %v1790 = vadd.f32 %v1780, %v1788
    %v1791 = vtanh.pop %v1790
    %1793 = vrot.lane.b32.xlu0 %v1791, 64
    %v1794 = vpop.permute.xlu0 %1793
    %v1796 = vmul.f32 %v1775, %v1794
    %1798 = vrot.lane.b32.xlu0 %v1796, 32
    %v1799 = vpop.permute.xlu0 %1798
    %1801 = vst.msk [vmem:[#allocation2 + $0x8] sm:$0xc] %vm392, %v1799
    %v1802 = vrot.slane %v1796, 2
    %1803 = vrot.lane.b32.xlu0 %v1802, 32
    %v1804 = vpop.permute.xlu0 %1803
    %v1805 = vsel %vm180, %v1804, 0
    %1807 = vmatprep.subr.mxu0 0.0
    %1808 = vmatpush1.msra.mxu0 %v1152
    %1809 = vmatprep.subr.mxu0 0.0
    %1810 = vmatpush1.msra.mxu0 %v1153
    %1811 = vmatprep.subr.mxu0 0.0
    %1812 = vmatpush1.msra.mxu0 %v1154
    %1813 = vmatprep.subr.mxu0 0.0
    %1814 = vmatpush1.msra.mxu0 %v1155
    %1815 = vmatprep.subr.mxu0 0.0
    %1816 = vmatpush1.msra.mxu0 0.0
    %1817 = vmatprep.subr.mxu0 0.0
    %1818 = vmatpush1.msra.mxu0 0.0
    %1819 = vmatprep.subr.mxu0 0.0
    %1820 = vmatpush1.msra.mxu0 0.0
    %1821 = vmatprep.subr.mxu0 0.0
    %1822 = vmatpush1.msra.mxu0 0.0
    %1823 = vmatprep.subr.mxu0 0.0
    %1824 = vmatpush1.msra.mxu0 0.0
    %1825 = vmatprep.subr.mxu0 0.0
    %1826 = vmatpush1.msra.mxu0 0.0
    %1827 = vmatprep.subr.mxu0 0.0
    %1828 = vmatpush1.msra.mxu0 0.0
    %1829 = vmatprep.subr.mxu0 0.0
    %1830 = vmatpush1.msra.mxu0 0.0
    %1831 = vmatprep.subr.mxu0 0.0
    %1832 = vmatpush1.msra.mxu0 0.0
    %1833 = vmatprep.subr.mxu0 0.0
    %1834 = vmatpush1.msra.mxu0 0.0
    %1835 = vmatprep.subr.mxu0 0.0
    %1836 = vmatpush1.msra.mxu0 0.0
    %1837 = vmatprep.subr.mxu0 0.0
    %1838 = vmatpush1.msra.mxu0 0.0
    %1839 = vmatprep.subr.mxu0 0.0
    %1840 = vmatpush1.msra.mxu0 0.0
    %1841 = vmatprep.subr.mxu0 0.0
    %1842 = vmatpush1.msra.mxu0 0.0
    %1843 = vmatprep.subr.mxu0 0.0
    %1844 = vmatpush1.msra.mxu0 0.0
    %1845 = vmatprep.subr.mxu0 0.0
    %1846 = vmatpush1.msra.mxu0 0.0
    %1847 = vmatprep.subr.mxu0 0.0
    %1848 = vmatpush1.msra.mxu0 0.0
    %1849 = vmatprep.subr.mxu0 0.0
    %1850 = vmatpush1.msra.mxu0 0.0
    %1851 = vmatprep.subr.mxu0 0.0
    %1852 = vmatpush1.msra.mxu0 0.0
    %1853 = vmatprep.subr.mxu0 0.0
    %1854 = vmatpush1.msra.mxu0 0.0
    %1855 = vmatprep.subr.mxu0 0.0
    %1856 = vmatpush1.msra.mxu0 0.0
    %1857 = vmatprep.subr.mxu0 0.0
    %1858 = vmatpush1.msra.mxu0 0.0
    %1859 = vmatprep.subr.mxu0 0.0
    %1860 = vmatpush1.msra.mxu0 0.0
    %1861 = vmatprep.subr.mxu0 0.0
    %1862 = vmatpush1.msra.mxu0 0.0
    %1863 = vmatprep.subr.mxu0 0.0
    %1864 = vmatpush1.msra.mxu0 0.0
    %1865 = vmatprep.subr.mxu0 0.0
    %1866 = vmatpush1.msra.mxu0 0.0
    %1867 = vmatprep.subr.mxu0 0.0
    %1868 = vmatpush1.msra.mxu0 0.0
    %1869 = vmatprep.subr.mxu0 0.0
    %1870 = vmatpush1.msra.mxu0 0.0
    %1871 = vmatprep.mubr.f32.mxu0 0.0
    %1872 = vmatmul.mubr.f32.gmra.mrb[0].mxu0 %v1805
    %v1873 = vpop.f32.mrb[0].mxu0
    %v1874 = vadd.f32 0.0, %v1873
    %v1875 = vpop.f32.mrb[0].mxu0
    %1876 = vdwg.mxu0
    %v1878 = vrot.slane %v1874, 4
    %v1880 = vadd.f32 %v1148, %v1878
    %v1881 = vxor.u32 %v1880, 2147483648
    %v1882 = vmul.f32 %v1881, 1.442695
    %v1883 = vpow.pop %v1882
    %v1884 = vadd.f32 %v1883, 1.0
    %v1885 = vrcp.pop %v1884
    %v1886 = vmul.f32 1.0, %v1885
    %v1887 = vtanh.pop %v1880
    %v1889 = vrot.slane %v1790, 6
    %v1891 = vmul.f32 %v1886, %v1889
    %1893 = vrot.lane.b32.xlu0 %v1887, 64
    %v1894 = vpop.permute.xlu0 %1893
    %v1896 = vmul.f32 %v1886, %v1894
    %1898 = vrot.lane.b32.xlu0 %v1896, 32
    %v1899 = vpop.permute.xlu0 %1898
    %v1901 = vadd.f32 %v1891, %v1899
    %v1902 = vtanh.pop %v1901
    %1904 = vrot.lane.b32.xlu0 %v1902, 64
    %v1905 = vpop.permute.xlu0 %1904
    %v1907 = vmul.f32 %v1886, %v1905
    %1909 = vrot.lane.b32.xlu0 %v1907, 32
    %v1910 = vpop.permute.xlu0 %1909
    %1912 = vst.msk [vmem:[#allocation2 + $0x8] sm:$0x30] %vm504, %v1910
    %v1913 = vrot.slane %v1907, 4
    %1914 = vrot.lane.b32.xlu0 %v1913, 32
    %v1915 = vpop.permute.xlu0 %1914
    %v1916 = vsel %vm180, %v1915, 0
    %1918 = vmatprep.subr.mxu0 0.0
    %1919 = vmatpush1.msra.mxu0 %v1152
    %1920 = vmatprep.subr.mxu0 0.0
    %1921 = vmatpush1.msra.mxu0 %v1153
    %1922 = vmatprep.subr.mxu0 0.0
    %1923 = vmatpush1.msra.mxu0 %v1154
    %1924 = vmatprep.subr.mxu0 0.0
    %1925 = vmatpush1.msra.mxu0 %v1155
    %1926 = vmatprep.subr.mxu0 0.0
    %1927 = vmatpush1.msra.mxu0 0.0
    %1928 = vmatprep.subr.mxu0 0.0
    %1929 = vmatpush1.msra.mxu0 0.0
    %1930 = vmatprep.subr.mxu0 0.0
    %1931 = vmatpush1.msra.mxu0 0.0
    %1932 = vmatprep.subr.mxu0 0.0
    %1933 = vmatpush1.msra.mxu0 0.0
    %1934 = vmatprep.subr.mxu0 0.0
    %1935 = vmatpush1.msra.mxu0 0.0
    %1936 = vmatprep.subr.mxu0 0.0
    %1937 = vmatpush1.msra.mxu0 0.0
    %1938 = vmatprep.subr.mxu0 0.0
    %1939 = vmatpush1.msra.mxu0 0.0
    %1940 = vmatprep.subr.mxu0 0.0
    %1941 = vmatpush1.msra.mxu0 0.0
    %1942 = vmatprep.subr.mxu0 0.0
    %1943 = vmatpush1.msra.mxu0 0.0
    %1944 = vmatprep.subr.mxu0 0.0
    %1945 = vmatpush1.msra.mxu0 0.0
    %1946 = vmatprep.subr.mxu0 0.0
    %1947 = vmatpush1.msra.mxu0 0.0
    %1948 = vmatprep.subr.mxu0 0.0
    %1949 = vmatpush1.msra.mxu0 0.0
    %1950 = vmatprep.subr.mxu0 0.0
    %1951 = vmatpush1.msra.mxu0 0.0
    %1952 = vmatprep.subr.mxu0 0.0
    %1953 = vmatpush1.msra.mxu0 0.0
    %1954 = vmatprep.subr.mxu0 0.0
    %1955 = vmatpush1.msra.mxu0 0.0
    %1956 = vmatprep.subr.mxu0 0.0
    %1957 = vmatpush1.msra.mxu0 0.0
    %1958 = vmatprep.subr.mxu0 0.0
    %1959 = vmatpush1.msra.mxu0 0.0
    %1960 = vmatprep.subr.mxu0 0.0
    %1961 = vmatpush1.msra.mxu0 0.0
    %1962 = vmatprep.subr.mxu0 0.0
    %1963 = vmatpush1.msra.mxu0 0.0
    %1964 = vmatprep.subr.mxu0 0.0
    %1965 = vmatpush1.msra.mxu0 0.0
    %1966 = vmatprep.subr.mxu0 0.0
    %1967 = vmatpush1.msra.mxu0 0.0
    %1968 = vmatprep.subr.mxu0 0.0
    %1969 = vmatpush1.msra.mxu0 0.0
    %1970 = vmatprep.subr.mxu0 0.0
    %1971 = vmatpush1.msra.mxu0 0.0
    %1972 = vmatprep.subr.mxu0 0.0
    %1973 = vmatpush1.msra.mxu0 0.0
    %1974 = vmatprep.subr.mxu0 0.0
    %1975 = vmatpush1.msra.mxu0 0.0
    %1976 = vmatprep.subr.mxu0 0.0
    %1977 = vmatpush1.msra.mxu0 0.0
    %1978 = vmatprep.subr.mxu0 0.0
    %1979 = vmatpush1.msra.mxu0 0.0
    %1980 = vmatprep.subr.mxu0 0.0
    %1981 = vmatpush1.msra.mxu0 0.0
    %1982 = vmatprep.mubr.f32.mxu0 0.0
    %1983 = vmatmul.mubr.f32.gmra.mrb[0].mxu0 %v1916
    %v1984 = vpop.f32.mrb[0].mxu0
    %v1985 = vadd.f32 0.0, %v1984
    %v1986 = vpop.f32.mrb[0].mxu0
    %1987 = vdwg.mxu0
    %v1989 = vrot.slane %v1985, 2
    %v1991 = vadd.f32 %v1148, %v1989
    %v1992 = vxor.u32 %v1991, 2147483648
    %v1993 = vmul.f32 %v1992, 1.442695
    %v1994 = vpow.pop %v1993
    %v1995 = vadd.f32 %v1994, 1.0
    %v1996 = vrcp.pop %v1995
    %v1997 = vmul.f32 1.0, %v1996
    %v1998 = vtanh.pop %v1991
    %v2000 = vrot.slane %v1901, 6
    %v2002 = vmul.f32 %v1997, %v2000
    %2004 = vrot.lane.b32.xlu0 %v1998, 64
    %v2005 = vpop.permute.xlu0 %2004
    %v2007 = vmul.f32 %v1997, %v2005
    %2009 = vrot.lane.b32.xlu0 %v2007, 32
    %v2010 = vpop.permute.xlu0 %2009
    %v2012 = vadd.f32 %v2002, %v2010
    %v2013 = vtanh.pop %v2012
    %2015 = vrot.lane.b32.xlu0 %v2013, 64
    %v2016 = vpop.permute.xlu0 %2015
    %v2018 = vmul.f32 %v1997, %v2016
    %2020 = vrot.lane.b32.xlu0 %v2018, 32
    %v2021 = vpop.permute.xlu0 %2020
    %2023 = vst.msk [vmem:[#allocation2 + $0x8] sm:$0xc0] %vm616, %v2021
    %v2024 = vld [vmem:[#allocation2] sm:$0xff]
    %v2025 = vld [vmem:[#allocation2 + $0x8] sm:$0xff]
    %s2026 = scalar_lea.vmem [#allocation8], 32
    %v2027 = vld [vmem:[%s2026] sm:$0xff]
    %v2028 = vld [vmem:[%s2026 + $0x8] sm:$0xff]
    %v2029 = vld [vmem:[%s2026 + $0x10] sm:$0xff]
    %v2030 = vld [vmem:[%s2026 + $0x18] sm:$0xff]
    %s2031 = scalar_lea.vmem %s4, 2
    %v2032 = vld [vmem:[%s2031] sm:$0x1]
    %v2034 = vlaneseq
    %v2035 = vshrl.u32 %v2034, 7
    %v2036 = vsub.s32 0, %v2035
    %v2037 = vrot.slane %v2032, %v2036
    %v2040 = vsel %vm180, %v2024, 0
    %v2043 = vsel %vm180, %v2025, 0
    %2045 = vmatprep.subr.mxu0 0.0
    %2046 = vmatpush1.msra.mxu0 %v2027
    %2047 = vmatprep.subr.mxu0 0.0
    %2048 = vmatpush1.msra.mxu0 %v2028
    %2049 = vmatprep.subr.mxu0 0.0
    %2050 = vmatpush1.msra.mxu0 %v2029
    %2051 = vmatprep.subr.mxu0 0.0
    %2052 = vmatpush1.msra.mxu0 %v2030
    %2053 = vmatprep.subr.mxu0 0.0
    %2054 = vmatpush1.msra.mxu0 0.0
    %2055 = vmatprep.subr.mxu0 0.0
    %2056 = vmatpush1.msra.mxu0 0.0
    %2057 = vmatprep.subr.mxu0 0.0
    %2058 = vmatpush1.msra.mxu0 0.0
    %2059 = vmatprep.subr.mxu0 0.0
    %2060 = vmatpush1.msra.mxu0 0.0
    %2061 = vmatprep.subr.mxu0 0.0
    %2062 = vmatpush1.msra.mxu0 0.0
    %2063 = vmatprep.subr.mxu0 0.0
    %2064 = vmatpush1.msra.mxu0 0.0
    %2065 = vmatprep.subr.mxu0 0.0
    %2066 = vmatpush1.msra.mxu0 0.0
    %2067 = vmatprep.subr.mxu0 0.0
    %2068 = vmatpush1.msra.mxu0 0.0
    %2069 = vmatprep.subr.mxu0 0.0
    %2070 = vmatpush1.msra.mxu0 0.0
    %2071 = vmatprep.subr.mxu0 0.0
    %2072 = vmatpush1.msra.mxu0 0.0
    %2073 = vmatprep.subr.mxu0 0.0
    %2074 = vmatpush1.msra.mxu0 0.0
    %2075 = vmatprep.subr.mxu0 0.0
    %2076 = vmatpush1.msra.mxu0 0.0
    %2077 = vmatprep.subr.mxu0 0.0
    %2078 = vmatpush1.msra.mxu0 0.0
    %2079 = vmatprep.subr.mxu0 0.0
    %2080 = vmatpush1.msra.mxu0 0.0
    %2081 = vmatprep.subr.mxu0 0.0
    %2082 = vmatpush1.msra.mxu0 0.0
    %2083 = vmatprep.subr.mxu0 0.0
    %2084 = vmatpush1.msra.mxu0 0.0
    %2085 = vmatprep.subr.mxu0 0.0
    %2086 = vmatpush1.msra.mxu0 0.0
    %2087 = vmatprep.subr.mxu0 0.0
    %2088 = vmatpush1.msra.mxu0 0.0
    %2089 = vmatprep.subr.mxu0 0.0
    %2090 = vmatpush1.msra.mxu0 0.0
    %2091 = vmatprep.subr.mxu0 0.0
    %2092 = vmatpush1.msra.mxu0 0.0
    %2093 = vmatprep.subr.mxu0 0.0
    %2094 = vmatpush1.msra.mxu0 0.0
    %2095 = vmatprep.subr.mxu0 0.0
    %2096 = vmatpush1.msra.mxu0 0.0
    %2097 = vmatprep.subr.mxu0 0.0
    %2098 = vmatpush1.msra.mxu0 0.0
    %2099 = vmatprep.subr.mxu0 0.0
    %2100 = vmatpush1.msra.mxu0 0.0
    %2101 = vmatprep.subr.mxu0 0.0
    %2102 = vmatpush1.msra.mxu0 0.0
    %2103 = vmatprep.subr.mxu0 0.0
    %2104 = vmatpush1.msra.mxu0 0.0
    %2105 = vmatprep.subr.mxu0 0.0
    %2106 = vmatpush1.msra.mxu0 0.0
    %2107 = vmatprep.subr.mxu0 0.0
    %2108 = vmatpush1.msra.mxu0 0.0
    %2109 = vmatprep.mubr.f32.mxu0 0.0
    %2110 = vmatmul.mubr.f32.gmra.mrb[0].mxu0 %v2040
    %v2111 = vpop.f32.mrb[0].mxu0
    %v2112 = vadd.f32 %v2037, %v2111
    %v2113 = vpop.f32.mrb[0].mxu0
    %2114 = vmatprep.mubr.f32.mxu0 0.0
    %2115 = vmatmul.mubr.f32.gmra.mrb[0].mxu0 %v2043
    %v2116 = vpop.f32.mrb[0].mxu0
    %v2117 = vadd.f32 %v2037, %v2116
    %v2118 = vpop.f32.mrb[0].mxu0
    %2119 = vdwg.mxu0
    %s2120 = scalar_lea.vmem [#allocation9], 64
    %v2121 = vld [vmem:[%s2120] sm:$0xff]
    %v2122 = vld [vmem:[%s2120 + $0x8] sm:$0xff]
    %v2123 = vld [vmem:[%s2120 + $0x10] sm:$0xff]
    %v2124 = vld [vmem:[%s2120 + $0x18] sm:$0xff]
    %2125 = vmatprep.subr.mxu0 0.0
    %2126 = vmatpush1.msra.mxu0 %v2121
    %2127 = vmatprep.subr.mxu0 0.0
    %2128 = vmatpush1.msra.mxu0 %v2122
    %2129 = vmatprep.subr.mxu0 0.0
    %2130 = vmatpush1.msra.mxu0 %v2123
    %2131 = vmatprep.subr.mxu0 0.0
    %2132 = vmatpush1.msra.mxu0 %v2124
    %2133 = vmatprep.subr.mxu0 0.0
    %2134 = vmatpush1.msra.mxu0 0.0
    %2135 = vmatprep.subr.mxu0 0.0
    %2136 = vmatpush1.msra.mxu0 0.0
    %2137 = vmatprep.subr.mxu0 0.0
    %2138 = vmatpush1.msra.mxu0 0.0
    %2139 = vmatprep.subr.mxu0 0.0
    %2140 = vmatpush1.msra.mxu0 0.0
    %2141 = vmatprep.subr.mxu0 0.0
    %2142 = vmatpush1.msra.mxu0 0.0
    %2143 = vmatprep.subr.mxu0 0.0
    %2144 = vmatpush1.msra.mxu0 0.0
    %2145 = vmatprep.subr.mxu0 0.0
    %2146 = vmatpush1.msra.mxu0 0.0
    %2147 = vmatprep.subr.mxu0 0.0
    %2148 = vmatpush1.msra.mxu0 0.0
    %2149 = vmatprep.subr.mxu0 0.0
    %2150 = vmatpush1.msra.mxu0 0.0
    %2151 = vmatprep.subr.mxu0 0.0
    %2152 = vmatpush1.msra.mxu0 0.0
    %2153 = vmatprep.subr.mxu0 0.0
    %2154 = vmatpush1.msra.mxu0 0.0
    %2155 = vmatprep.subr.mxu0 0.0
    %2156 = vmatpush1.msra.mxu0 0.0
    %2157 = vmatprep.subr.mxu0 0.0
    %2158 = vmatpush1.msra.mxu0 0.0
    %2159 = vmatprep.subr.mxu0 0.0
    %2160 = vmatpush1.msra.mxu0 0.0
    %2161 = vmatprep.subr.mxu0 0.0
    %2162 = vmatpush1.msra.mxu0 0.0
    %2163 = vmatprep.subr.mxu0 0.0
    %2164 = vmatpush1.msra.mxu0 0.0
    %2165 = vmatprep.subr.mxu0 0.0
    %2166 = vmatpush1.msra.mxu0 0.0
    %2167 = vmatprep.subr.mxu0 0.0
    %2168 = vmatpush1.msra.mxu0 0.0
    %2169 = vmatprep.subr.mxu0 0.0
    %2170 = vmatpush1.msra.mxu0 0.0
    %2171 = vmatprep.subr.mxu0 0.0
    %2172 = vmatpush1.msra.mxu0 0.0
    %2173 = vmatprep.subr.mxu0 0.0
    %2174 = vmatpush1.msra.mxu0 0.0
    %2175 = vmatprep.subr.mxu0 0.0
    %2176 = vmatpush1.msra.mxu0 0.0
    %2177 = vmatprep.subr.mxu0 0.0
    %2178 = vmatpush1.msra.mxu0 0.0
    %2179 = vmatprep.subr.mxu0 0.0
    %2180 = vmatpush1.msra.mxu0 0.0
    %2181 = vmatprep.subr.mxu0 0.0
    %2182 = vmatpush1.msra.mxu0 0.0
    %2183 = vmatprep.subr.mxu0 0.0
    %2184 = vmatpush1.msra.mxu0 0.0
    %2185 = vmatprep.subr.mxu0 0.0
    %2186 = vmatpush1.msra.mxu0 0.0
    %2187 = vmatprep.subr.mxu0 0.0
    %2188 = vmatpush1.msra.mxu0 0.0
    %2189 = vmatprep.mubr.f32.mxu0 0.0
    %2190 = vmatmul.mubr.f32.gmra.mrb[0].mxu0 %v182
    %v2191 = vpop.f32.mrb[0].mxu0
    %v2192 = vadd.f32 0.0, %v2191
    %v2193 = vpop.f32.mrb[0].mxu0
    %2194 = vdwg.mxu0
    %v2195 = vadd.f32 %v2112, %v2192
    %v2196 = vxor.u32 %v2195, 2147483648
    %v2197 = vmul.f32 %v2196, 1.442695
    %v2198 = vpow.pop %v2197
    %v2199 = vadd.f32 %v2198, 1.0
    %v2200 = vrcp.pop %v2199
    %v2201 = vmul.f32 1.0, %v2200
    %v2202 = vtanh.pop %v2195
    %v2203 = vmul.f32 %v2201, 0.0
    %2205 = vrot.lane.b32.xlu0 %v2202, 64
    %v2206 = vpop.permute.xlu0 %2205
    %v2208 = vmul.f32 %v2201, %v2206
    %2210 = vrot.lane.b32.xlu0 %v2208, 32
    %v2211 = vpop.permute.xlu0 %2210
    %v2213 = vadd.f32 %v2203, %v2211
    %v2214 = vtanh.pop %v2213
    %2216 = vrot.lane.b32.xlu0 %v2214, 64
    %v2217 = vpop.permute.xlu0 %2216
    %v2219 = vmul.f32 %v2201, %v2217
    %2221 = vrot.lane.b32.xlu0 %v2219, 32
    %v2222 = vpop.permute.xlu0 %2221
    %2224 = vst.msk [vmem:[#allocation2] sm:$0x3] %vm283, %v2222
    %v2225 = vsel %vm180, %v2222, 0
    %2227 = vmatprep.subr.mxu0 0.0
    %2228 = vmatpush1.msra.mxu0 %v2121
    %2229 = vmatprep.subr.mxu0 0.0
    %2230 = vmatpush1.msra.mxu0 %v2122
    %2231 = vmatprep.subr.mxu0 0.0
    %2232 = vmatpush1.msra.mxu0 %v2123
    %2233 = vmatprep.subr.mxu0 0.0
    %2234 = vmatpush1.msra.mxu0 %v2124
    %2235 = vmatprep.subr.mxu0 0.0
    %2236 = vmatpush1.msra.mxu0 0.0
    %2237 = vmatprep.subr.mxu0 0.0
    %2238 = vmatpush1.msra.mxu0 0.0
    %2239 = vmatprep.subr.mxu0 0.0
    %2240 = vmatpush1.msra.mxu0 0.0
    %2241 = vmatprep.subr.mxu0 0.0
    %2242 = vmatpush1.msra.mxu0 0.0
    %2243 = vmatprep.subr.mxu0 0.0
    %2244 = vmatpush1.msra.mxu0 0.0
    %2245 = vmatprep.subr.mxu0 0.0
    %2246 = vmatpush1.msra.mxu0 0.0
    %2247 = vmatprep.subr.mxu0 0.0
    %2248 = vmatpush1.msra.mxu0 0.0
    %2249 = vmatprep.subr.mxu0 0.0
    %2250 = vmatpush1.msra.mxu0 0.0
    %2251 = vmatprep.subr.mxu0 0.0
    %2252 = vmatpush1.msra.mxu0 0.0
    %2253 = vmatprep.subr.mxu0 0.0
    %2254 = vmatpush1.msra.mxu0 0.0
    %2255 = vmatprep.subr.mxu0 0.0
    %2256 = vmatpush1.msra.mxu0 0.0
    %2257 = vmatprep.subr.mxu0 0.0
    %2258 = vmatpush1.msra.mxu0 0.0
    %2259 = vmatprep.subr.mxu0 0.0
    %2260 = vmatpush1.msra.mxu0 0.0
    %2261 = vmatprep.subr.mxu0 0.0
    %2262 = vmatpush1.msra.mxu0 0.0
    %2263 = vmatprep.subr.mxu0 0.0
    %2264 = vmatpush1.msra.mxu0 0.0
    %2265 = vmatprep.subr.mxu0 0.0
    %2266 = vmatpush1.msra.mxu0 0.0
    %2267 = vmatprep.subr.mxu0 0.0
    %2268 = vmatpush1.msra.mxu0 0.0
    %2269 = vmatprep.subr.mxu0 0.0
    %2270 = vmatpush1.msra.mxu0 0.0
    %2271 = vmatprep.subr.mxu0 0.0
    %2272 = vmatpush1.msra.mxu0 0.0
    %2273 = vmatprep.subr.mxu0 0.0
    %2274 = vmatpush1.msra.mxu0 0.0
    %2275 = vmatprep.subr.mxu0 0.0
    %2276 = vmatpush1.msra.mxu0 0.0
    %2277 = vmatprep.subr.mxu0 0.0
    %2278 = vmatpush1.msra.mxu0 0.0
    %2279 = vmatprep.subr.mxu0 0.0
    %2280 = vmatpush1.msra.mxu0 0.0
    %2281 = vmatprep.subr.mxu0 0.0
    %2282 = vmatpush1.msra.mxu0 0.0
    %2283 = vmatprep.subr.mxu0 0.0
    %2284 = vmatpush1.msra.mxu0 0.0
    %2285 = vmatprep.subr.mxu0 0.0
    %2286 = vmatpush1.msra.mxu0 0.0
    %2287 = vmatprep.subr.mxu0 0.0
    %2288 = vmatpush1.msra.mxu0 0.0
    %2289 = vmatprep.subr.mxu0 0.0
    %2290 = vmatpush1.msra.mxu0 0.0
    %2291 = vmatprep.mubr.f32.mxu0 0.0
    %2292 = vmatmul.mubr.f32.gmra.mrb[0].mxu0 %v2225
    %v2293 = vpop.f32.mrb[0].mxu0
    %v2294 = vadd.f32 0.0, %v2293
    %v2295 = vpop.f32.mrb[0].mxu0
    %2296 = vdwg.mxu0
    %v2298 = vrot.slane %v2294, 6
    %v2300 = vadd.f32 %v2112, %v2298
    %v2301 = vxor.u32 %v2300, 2147483648
    %v2302 = vmul.f32 %v2301, 1.442695
    %v2303 = vpow.pop %v2302
    %v2304 = vadd.f32 %v2303, 1.0
    %v2305 = vrcp.pop %v2304
    %v2306 = vmul.f32 1.0, %v2305
    %v2307 = vtanh.pop %v2300
    %v2309 = vrot.slane %v2213, 6
    %v2311 = vmul.f32 %v2306, %v2309
    %2313 = vrot.lane.b32.xlu0 %v2307, 64
    %v2314 = vpop.permute.xlu0 %2313
    %v2316 = vmul.f32 %v2306, %v2314
    %2318 = vrot.lane.b32.xlu0 %v2316, 32
    %v2319 = vpop.permute.xlu0 %2318
    %v2321 = vadd.f32 %v2311, %v2319
    %v2322 = vtanh.pop %v2321
    %2324 = vrot.lane.b32.xlu0 %v2322, 64
    %v2325 = vpop.permute.xlu0 %2324
    %v2327 = vmul.f32 %v2306, %v2325
    %2329 = vrot.lane.b32.xlu0 %v2327, 32
    %v2330 = vpop.permute.xlu0 %2329
    %2332 = vst.msk [vmem:[#allocation2] sm:$0xc] %vm392, %v2330
    %v2333 = vrot.slane %v2327, 2
    %2334 = vrot.lane.b32.xlu0 %v2333, 32
    %v2335 = vpop.permute.xlu0 %2334
    %v2336 = vsel %vm180, %v2335, 0
    %2338 = vmatprep.subr.mxu0 0.0
    %2339 = vmatpush1.msra.mxu0 %v2121
    %2340 = vmatprep.subr.mxu0 0.0
    %2341 = vmatpush1.msra.mxu0 %v2122
    %2342 = vmatprep.subr.mxu0 0.0
    %2343 = vmatpush1.msra.mxu0 %v2123
    %2344 = vmatprep.subr.mxu0 0.0
    %2345 = vmatpush1.msra.mxu0 %v2124
    %2346 = vmatprep.subr.mxu0 0.0
    %2347 = vmatpush1.msra.mxu0 0.0
    %2348 = vmatprep.subr.mxu0 0.0
    %2349 = vmatpush1.msra.mxu0 0.0
    %2350 = vmatprep.subr.mxu0 0.0
    %2351 = vmatpush1.msra.mxu0 0.0
    %2352 = vmatprep.subr.mxu0 0.0
    %2353 = vmatpush1.msra.mxu0 0.0
    %2354 = vmatprep.subr.mxu0 0.0
    %2355 = vmatpush1.msra.mxu0 0.0
    %2356 = vmatprep.subr.mxu0 0.0
    %2357 = vmatpush1.msra.mxu0 0.0
    %2358 = vmatprep.subr.mxu0 0.0
    %2359 = vmatpush1.msra.mxu0 0.0
    %2360 = vmatprep.subr.mxu0 0.0
    %2361 = vmatpush1.msra.mxu0 0.0
    %2362 = vmatprep.subr.mxu0 0.0
    %2363 = vmatpush1.msra.mxu0 0.0
    %2364 = vmatprep.subr.mxu0 0.0
    %2365 = vmatpush1.msra.mxu0 0.0
    %2366 = vmatprep.subr.mxu0 0.0
    %2367 = vmatpush1.msra.mxu0 0.0
    %2368 = vmatprep.subr.mxu0 0.0
    %2369 = vmatpush1.msra.mxu0 0.0
    %2370 = vmatprep.subr.mxu0 0.0
    %2371 = vmatpush1.msra.mxu0 0.0
    %2372 = vmatprep.subr.mxu0 0.0
    %2373 = vmatpush1.msra.mxu0 0.0
    %2374 = vmatprep.subr.mxu0 0.0
    %2375 = vmatpush1.msra.mxu0 0.0
    %2376 = vmatprep.subr.mxu0 0.0
    %2377 = vmatpush1.msra.mxu0 0.0
    %2378 = vmatprep.subr.mxu0 0.0
    %2379 = vmatpush1.msra.mxu0 0.0
    %2380 = vmatprep.subr.mxu0 0.0
    %2381 = vmatpush1.msra.mxu0 0.0
    %2382 = vmatprep.subr.mxu0 0.0
    %2383 = vmatpush1.msra.mxu0 0.0
    %2384 = vmatprep.subr.mxu0 0.0
    %2385 = vmatpush1.msra.mxu0 0.0
    %2386 = vmatprep.subr.mxu0 0.0
    %2387 = vmatpush1.msra.mxu0 0.0
    %2388 = vmatprep.subr.mxu0 0.0
    %2389 = vmatpush1.msra.mxu0 0.0
    %2390 = vmatprep.subr.mxu0 0.0
    %2391 = vmatpush1.msra.mxu0 0.0
    %2392 = vmatprep.subr.mxu0 0.0
    %2393 = vmatpush1.msra.mxu0 0.0
    %2394 = vmatprep.subr.mxu0 0.0
    %2395 = vmatpush1.msra.mxu0 0.0
    %2396 = vmatprep.subr.mxu0 0.0
    %2397 = vmatpush1.msra.mxu0 0.0
    %2398 = vmatprep.subr.mxu0 0.0
    %2399 = vmatpush1.msra.mxu0 0.0
    %2400 = vmatprep.subr.mxu0 0.0
    %2401 = vmatpush1.msra.mxu0 0.0
    %2402 = vmatprep.mubr.f32.mxu0 0.0
    %2403 = vmatmul.mubr.f32.gmra.mrb[0].mxu0 %v2336
    %v2404 = vpop.f32.mrb[0].mxu0
    %v2405 = vadd.f32 0.0, %v2404
    %v2406 = vpop.f32.mrb[0].mxu0
    %2407 = vdwg.mxu0
    %v2409 = vrot.slane %v2405, 4
    %v2411 = vadd.f32 %v2112, %v2409
    %v2412 = vxor.u32 %v2411, 2147483648
    %v2413 = vmul.f32 %v2412, 1.442695
    %v2414 = vpow.pop %v2413
    %v2415 = vadd.f32 %v2414, 1.0
    %v2416 = vrcp.pop %v2415
    %v2417 = vmul.f32 1.0, %v2416
    %v2418 = vtanh.pop %v2411
    %v2420 = vrot.slane %v2321, 6
    %v2422 = vmul.f32 %v2417, %v2420
    %2424 = vrot.lane.b32.xlu0 %v2418, 64
    %v2425 = vpop.permute.xlu0 %2424
    %v2427 = vmul.f32 %v2417, %v2425
    %2429 = vrot.lane.b32.xlu0 %v2427, 32
    %v2430 = vpop.permute.xlu0 %2429
    %v2432 = vadd.f32 %v2422, %v2430
    %v2433 = vtanh.pop %v2432
    %2435 = vrot.lane.b32.xlu0 %v2433, 64
    %v2436 = vpop.permute.xlu0 %2435
    %v2438 = vmul.f32 %v2417, %v2436
    %2440 = vrot.lane.b32.xlu0 %v2438, 32
    %v2441 = vpop.permute.xlu0 %2440
    %2443 = vst.msk [vmem:[#allocation2] sm:$0x30] %vm504, %v2441
    %v2444 = vrot.slane %v2438, 4
    %2445 = vrot.lane.b32.xlu0 %v2444, 32
    %v2446 = vpop.permute.xlu0 %2445
    %v2447 = vsel %vm180, %v2446, 0
    %2449 = vmatprep.subr.mxu0 0.0
    %2450 = vmatpush1.msra.mxu0 %v2121
    %2451 = vmatprep.subr.mxu0 0.0
    %2452 = vmatpush1.msra.mxu0 %v2122
    %2453 = vmatprep.subr.mxu0 0.0
    %2454 = vmatpush1.msra.mxu0 %v2123
    %2455 = vmatprep.subr.mxu0 0.0
    %2456 = vmatpush1.msra.mxu0 %v2124
    %2457 = vmatprep.subr.mxu0 0.0
    %2458 = vmatpush1.msra.mxu0 0.0
    %2459 = vmatprep.subr.mxu0 0.0
    %2460 = vmatpush1.msra.mxu0 0.0
    %2461 = vmatprep.subr.mxu0 0.0
    %2462 = vmatpush1.msra.mxu0 0.0
    %2463 = vmatprep.subr.mxu0 0.0
    %2464 = vmatpush1.msra.mxu0 0.0
    %2465 = vmatprep.subr.mxu0 0.0
    %2466 = vmatpush1.msra.mxu0 0.0
    %2467 = vmatprep.subr.mxu0 0.0
    %2468 = vmatpush1.msra.mxu0 0.0
    %2469 = vmatprep.subr.mxu0 0.0
    %2470 = vmatpush1.msra.mxu0 0.0
    %2471 = vmatprep.subr.mxu0 0.0
    %2472 = vmatpush1.msra.mxu0 0.0
    %2473 = vmatprep.subr.mxu0 0.0
    %2474 = vmatpush1.msra.mxu0 0.0
    %2475 = vmatprep.subr.mxu0 0.0
    %2476 = vmatpush1.msra.mxu0 0.0
    %2477 = vmatprep.subr.mxu0 0.0
    %2478 = vmatpush1.msra.mxu0 0.0
    %2479 = vmatprep.subr.mxu0 0.0
    %2480 = vmatpush1.msra.mxu0 0.0
    %2481 = vmatprep.subr.mxu0 0.0
    %2482 = vmatpush1.msra.mxu0 0.0
    %2483 = vmatprep.subr.mxu0 0.0
    %2484 = vmatpush1.msra.mxu0 0.0
    %2485 = vmatprep.subr.mxu0 0.0
    %2486 = vmatpush1.msra.mxu0 0.0
    %2487 = vmatprep.subr.mxu0 0.0
    %2488 = vmatpush1.msra.mxu0 0.0
    %2489 = vmatprep.subr.mxu0 0.0
    %2490 = vmatpush1.msra.mxu0 0.0
    %2491 = vmatprep.subr.mxu0 0.0
    %2492 = vmatpush1.msra.mxu0 0.0
    %2493 = vmatprep.subr.mxu0 0.0
    %2494 = vmatpush1.msra.mxu0 0.0
    %2495 = vmatprep.subr.mxu0 0.0
    %2496 = vmatpush1.msra.mxu0 0.0
    %2497 = vmatprep.subr.mxu0 0.0
    %2498 = vmatpush1.msra.mxu0 0.0
    %2499 = vmatprep.subr.mxu0 0.0
    %2500 = vmatpush1.msra.mxu0 0.0
    %2501 = vmatprep.subr.mxu0 0.0
    %2502 = vmatpush1.msra.mxu0 0.0
    %2503 = vmatprep.subr.mxu0 0.0
    %2504 = vmatpush1.msra.mxu0 0.0
    %2505 = vmatprep.subr.mxu0 0.0
    %2506 = vmatpush1.msra.mxu0 0.0
    %2507 = vmatprep.subr.mxu0 0.0
    %2508 = vmatpush1.msra.mxu0 0.0
    %2509 = vmatprep.subr.mxu0 0.0
    %2510 = vmatpush1.msra.mxu0 0.0
    %2511 = vmatprep.subr.mxu0 0.0
    %2512 = vmatpush1.msra.mxu0 0.0
    %2513 = vmatprep.mubr.f32.mxu0 0.0
    %2514 = vmatmul.mubr.f32.gmra.mrb[0].mxu0 %v2447
    %v2515 = vpop.f32.mrb[0].mxu0
    %v2516 = vadd.f32 0.0, %v2515
    %v2517 = vpop.f32.mrb[0].mxu0
    %2518 = vdwg.mxu0
    %v2520 = vrot.slane %v2516, 2
    %v2522 = vadd.f32 %v2112, %v2520
    %v2523 = vxor.u32 %v2522, 2147483648
    %v2524 = vmul.f32 %v2523, 1.442695
    %v2525 = vpow.pop %v2524
    %v2526 = vadd.f32 %v2525, 1.0
    %v2527 = vrcp.pop %v2526
    %v2528 = vmul.f32 1.0, %v2527
    %v2529 = vtanh.pop %v2522
    %v2531 = vrot.slane %v2432, 6
    %v2533 = vmul.f32 %v2528, %v2531
    %2535 = vrot.lane.b32.xlu0 %v2529, 64
    %v2536 = vpop.permute.xlu0 %2535
    %v2538 = vmul.f32 %v2528, %v2536
    %2540 = vrot.lane.b32.xlu0 %v2538, 32
    %v2541 = vpop.permute.xlu0 %2540
    %v2543 = vadd.f32 %v2533, %v2541
    %v2544 = vtanh.pop %v2543
    %2546 = vrot.lane.b32.xlu0 %v2544, 64
    %v2547 = vpop.permute.xlu0 %2546
    %v2549 = vmul.f32 %v2528, %v2547
    %2551 = vrot.lane.b32.xlu0 %v2549, 32
    %v2552 = vpop.permute.xlu0 %2551
    %2554 = vst.msk [vmem:[#allocation2] sm:$0xc0] %vm616, %v2552
    %v2555 = vrot.slane %v2549, 6
    %2556 = vrot.lane.b32.xlu0 %v2555, 32
    %v2557 = vpop.permute.xlu0 %2556
    %v2558 = vsel %vm180, %v2557, 0
    %2560 = vmatprep.subr.mxu0 0.0
    %2561 = vmatpush1.msra.mxu0 %v2121
    %2562 = vmatprep.subr.mxu0 0.0
    %2563 = vmatpush1.msra.mxu0 %v2122
    %2564 = vmatprep.subr.mxu0 0.0
    %2565 = vmatpush1.msra.mxu0 %v2123
    %2566 = vmatprep.subr.mxu0 0.0
    %2567 = vmatpush1.msra.mxu0 %v2124
    %2568 = vmatprep.subr.mxu0 0.0
    %2569 = vmatpush1.msra.mxu0 0.0
    %2570 = vmatprep.subr.mxu0 0.0
    %2571 = vmatpush1.msra.mxu0 0.0
    %2572 = vmatprep.subr.mxu0 0.0
    %2573 = vmatpush1.msra.mxu0 0.0
    %2574 = vmatprep.subr.mxu0 0.0
    %2575 = vmatpush1.msra.mxu0 0.0
    %2576 = vmatprep.subr.mxu0 0.0
    %2577 = vmatpush1.msra.mxu0 0.0
    %2578 = vmatprep.subr.mxu0 0.0
    %2579 = vmatpush1.msra.mxu0 0.0
    %2580 = vmatprep.subr.mxu0 0.0
    %2581 = vmatpush1.msra.mxu0 0.0
    %2582 = vmatprep.subr.mxu0 0.0
    %2583 = vmatpush1.msra.mxu0 0.0
    %2584 = vmatprep.subr.mxu0 0.0
    %2585 = vmatpush1.msra.mxu0 0.0
    %2586 = vmatprep.subr.mxu0 0.0
    %2587 = vmatpush1.msra.mxu0 0.0
    %2588 = vmatprep.subr.mxu0 0.0
    %2589 = vmatpush1.msra.mxu0 0.0
    %2590 = vmatprep.subr.mxu0 0.0
    %2591 = vmatpush1.msra.mxu0 0.0
    %2592 = vmatprep.subr.mxu0 0.0
    %2593 = vmatpush1.msra.mxu0 0.0
    %2594 = vmatprep.subr.mxu0 0.0
    %2595 = vmatpush1.msra.mxu0 0.0
    %2596 = vmatprep.subr.mxu0 0.0
    %2597 = vmatpush1.msra.mxu0 0.0
    %2598 = vmatprep.subr.mxu0 0.0
    %2599 = vmatpush1.msra.mxu0 0.0
    %2600 = vmatprep.subr.mxu0 0.0
    %2601 = vmatpush1.msra.mxu0 0.0
    %2602 = vmatprep.subr.mxu0 0.0
    %2603 = vmatpush1.msra.mxu0 0.0
    %2604 = vmatprep.subr.mxu0 0.0
    %2605 = vmatpush1.msra.mxu0 0.0
    %2606 = vmatprep.subr.mxu0 0.0
    %2607 = vmatpush1.msra.mxu0 0.0
    %2608 = vmatprep.subr.mxu0 0.0
    %2609 = vmatpush1.msra.mxu0 0.0
    %2610 = vmatprep.subr.mxu0 0.0
    %2611 = vmatpush1.msra.mxu0 0.0
    %2612 = vmatprep.subr.mxu0 0.0
    %2613 = vmatpush1.msra.mxu0 0.0
    %2614 = vmatprep.subr.mxu0 0.0
    %2615 = vmatpush1.msra.mxu0 0.0
    %2616 = vmatprep.subr.mxu0 0.0
    %2617 = vmatpush1.msra.mxu0 0.0
    %2618 = vmatprep.subr.mxu0 0.0
    %2619 = vmatpush1.msra.mxu0 0.0
    %2620 = vmatprep.subr.mxu0 0.0
    %2621 = vmatpush1.msra.mxu0 0.0
    %2622 = vmatprep.subr.mxu0 0.0
    %2623 = vmatpush1.msra.mxu0 0.0
    %2624 = vmatprep.mubr.f32.mxu0 0.0
    %2625 = vmatmul.mubr.f32.gmra.mrb[0].mxu0 %v2558
    %v2626 = vpop.f32.mrb[0].mxu0
    %v2627 = vadd.f32 0.0, %v2626
    %v2628 = vpop.f32.mrb[0].mxu0
    %2629 = vdwg.mxu0
    %v2630 = vadd.f32 %v2117, %v2627
    %v2631 = vxor.u32 %v2630, 2147483648
    %v2632 = vmul.f32 %v2631, 1.442695
    %v2633 = vpow.pop %v2632
    %v2634 = vadd.f32 %v2633, 1.0
    %v2635 = vrcp.pop %v2634
    %v2636 = vmul.f32 1.0, %v2635
    %v2637 = vtanh.pop %v2630
    %v2639 = vrot.slane %v2543, 6
    %v2641 = vmul.f32 %v2636, %v2639
    %2643 = vrot.lane.b32.xlu0 %v2637, 64
    %v2644 = vpop.permute.xlu0 %2643
    %v2646 = vmul.f32 %v2636, %v2644
    %2648 = vrot.lane.b32.xlu0 %v2646, 32
    %v2649 = vpop.permute.xlu0 %2648
    %v2651 = vadd.f32 %v2641, %v2649
    %v2652 = vtanh.pop %v2651
    %2654 = vrot.lane.b32.xlu0 %v2652, 64
    %v2655 = vpop.permute.xlu0 %2654
    %v2657 = vmul.f32 %v2636, %v2655
    %2659 = vrot.lane.b32.xlu0 %v2657, 32
    %v2660 = vpop.permute.xlu0 %2659
    %2662 = vst.msk [vmem:[#allocation2 + $0x8] sm:$0x3] %vm283, %v2660
    %v2663 = vsel %vm180, %v2660, 0
    %2665 = vmatprep.subr.mxu0 0.0
    %2666 = vmatpush1.msra.mxu0 %v2121
    %2667 = vmatprep.subr.mxu0 0.0
    %2668 = vmatpush1.msra.mxu0 %v2122
    %2669 = vmatprep.subr.mxu0 0.0
    %2670 = vmatpush1.msra.mxu0 %v2123
    %2671 = vmatprep.subr.mxu0 0.0
    %2672 = vmatpush1.msra.mxu0 %v2124
    %2673 = vmatprep.subr.mxu0 0.0
    %2674 = vmatpush1.msra.mxu0 0.0
    %2675 = vmatprep.subr.mxu0 0.0
    %2676 = vmatpush1.msra.mxu0 0.0
    %2677 = vmatprep.subr.mxu0 0.0
    %2678 = vmatpush1.msra.mxu0 0.0
    %2679 = vmatprep.subr.mxu0 0.0
    %2680 = vmatpush1.msra.mxu0 0.0
    %2681 = vmatprep.subr.mxu0 0.0
    %2682 = vmatpush1.msra.mxu0 0.0
    %2683 = vmatprep.subr.mxu0 0.0
    %2684 = vmatpush1.msra.mxu0 0.0
    %2685 = vmatprep.subr.mxu0 0.0
    %2686 = vmatpush1.msra.mxu0 0.0
    %2687 = vmatprep.subr.mxu0 0.0
    %2688 = vmatpush1.msra.mxu0 0.0
    %2689 = vmatprep.subr.mxu0 0.0
    %2690 = vmatpush1.msra.mxu0 0.0
    %2691 = vmatprep.subr.mxu0 0.0
    %2692 = vmatpush1.msra.mxu0 0.0
    %2693 = vmatprep.subr.mxu0 0.0
    %2694 = vmatpush1.msra.mxu0 0.0
    %2695 = vmatprep.subr.mxu0 0.0
    %2696 = vmatpush1.msra.mxu0 0.0
    %2697 = vmatprep.subr.mxu0 0.0
    %2698 = vmatpush1.msra.mxu0 0.0
    %2699 = vmatprep.subr.mxu0 0.0
    %2700 = vmatpush1.msra.mxu0 0.0
    %2701 = vmatprep.subr.mxu0 0.0
    %2702 = vmatpush1.msra.mxu0 0.0
    %2703 = vmatprep.subr.mxu0 0.0
    %2704 = vmatpush1.msra.mxu0 0.0
    %2705 = vmatprep.subr.mxu0 0.0
    %2706 = vmatpush1.msra.mxu0 0.0
    %2707 = vmatprep.subr.mxu0 0.0
    %2708 = vmatpush1.msra.mxu0 0.0
    %2709 = vmatprep.subr.mxu0 0.0
    %2710 = vmatpush1.msra.mxu0 0.0
    %2711 = vmatprep.subr.mxu0 0.0
    %2712 = vmatpush1.msra.mxu0 0.0
    %2713 = vmatprep.subr.mxu0 0.0
    %2714 = vmatpush1.msra.mxu0 0.0
    %2715 = vmatprep.subr.mxu0 0.0
    %2716 = vmatpush1.msra.mxu0 0.0
    %2717 = vmatprep.subr.mxu0 0.0
    %2718 = vmatpush1.msra.mxu0 0.0
    %2719 = vmatprep.subr.mxu0 0.0
    %2720 = vmatpush1.msra.mxu0 0.0
    %2721 = vmatprep.subr.mxu0 0.0
    %2722 = vmatpush1.msra.mxu0 0.0
    %2723 = vmatprep.subr.mxu0 0.0
    %2724 = vmatpush1.msra.mxu0 0.0
    %2725 = vmatprep.subr.mxu0 0.0
    %2726 = vmatpush1.msra.mxu0 0.0
    %2727 = vmatprep.subr.mxu0 0.0
    %2728 = vmatpush1.msra.mxu0 0.0
    %2729 = vmatprep.mubr.f32.mxu0 0.0
    %2730 = vmatmul.mubr.f32.gmra.mrb[0].mxu0 %v2663
    %v2731 = vpop.f32.mrb[0].mxu0
    %v2732 = vadd.f32 0.0, %v2731
    %v2733 = vpop.f32.mrb[0].mxu0
    %2734 = vdwg.mxu0
    %v2736 = vrot.slane %v2732, 6
    %v2738 = vadd.f32 %v2117, %v2736
    %v2739 = vxor.u32 %v2738, 2147483648
    %v2740 = vmul.f32 %v2739, 1.442695
    %v2741 = vpow.pop %v2740
    %v2742 = vadd.f32 %v2741, 1.0
    %v2743 = vrcp.pop %v2742
    %v2744 = vmul.f32 1.0, %v2743
    %v2745 = vtanh.pop %v2738
    %v2747 = vrot.slane %v2651, 6
    %v2749 = vmul.f32 %v2744, %v2747
    %2751 = vrot.lane.b32.xlu0 %v2745, 64
    %v2752 = vpop.permute.xlu0 %2751
    %v2754 = vmul.f32 %v2744, %v2752
    %2756 = vrot.lane.b32.xlu0 %v2754, 32
    %v2757 = vpop.permute.xlu0 %2756
    %v2759 = vadd.f32 %v2749, %v2757
    %v2760 = vtanh.pop %v2759
    %2762 = vrot.lane.b32.xlu0 %v2760, 64
    %v2763 = vpop.permute.xlu0 %2762
    %v2765 = vmul.f32 %v2744, %v2763
    %2767 = vrot.lane.b32.xlu0 %v2765, 32
    %v2768 = vpop.permute.xlu0 %2767
    %2770 = vst.msk [vmem:[#allocation2 + $0x8] sm:$0xc] %vm392, %v2768
    %v2771 = vrot.slane %v2765, 2
    %2772 = vrot.lane.b32.xlu0 %v2771, 32
    %v2773 = vpop.permute.xlu0 %2772
    %v2774 = vsel %vm180, %v2773, 0
    %2776 = vmatprep.subr.mxu0 0.0
    %2777 = vmatpush1.msra.mxu0 %v2121
    %2778 = vmatprep.subr.mxu0 0.0
    %2779 = vmatpush1.msra.mxu0 %v2122
    %2780 = vmatprep.subr.mxu0 0.0
    %2781 = vmatpush1.msra.mxu0 %v2123
    %2782 = vmatprep.subr.mxu0 0.0
    %2783 = vmatpush1.msra.mxu0 %v2124
    %2784 = vmatprep.subr.mxu0 0.0
    %2785 = vmatpush1.msra.mxu0 0.0
    %2786 = vmatprep.subr.mxu0 0.0
    %2787 = vmatpush1.msra.mxu0 0.0
    %2788 = vmatprep.subr.mxu0 0.0
    %2789 = vmatpush1.msra.mxu0 0.0
    %2790 = vmatprep.subr.mxu0 0.0
    %2791 = vmatpush1.msra.mxu0 0.0
    %2792 = vmatprep.subr.mxu0 0.0
    %2793 = vmatpush1.msra.mxu0 0.0
    %2794 = vmatprep.subr.mxu0 0.0
    %2795 = vmatpush1.msra.mxu0 0.0
    %2796 = vmatprep.subr.mxu0 0.0
    %2797 = vmatpush1.msra.mxu0 0.0
    %2798 = vmatprep.subr.mxu0 0.0
    %2799 = vmatpush1.msra.mxu0 0.0
    %2800 = vmatprep.subr.mxu0 0.0
    %2801 = vmatpush1.msra.mxu0 0.0
    %2802 = vmatprep.subr.mxu0 0.0
    %2803 = vmatpush1.msra.mxu0 0.0
    %2804 = vmatprep.subr.mxu0 0.0
    %2805 = vmatpush1.msra.mxu0 0.0
    %2806 = vmatprep.subr.mxu0 0.0
    %2807 = vmatpush1.msra.mxu0 0.0
    %2808 = vmatprep.subr.mxu0 0.0
    %2809 = vmatpush1.msra.mxu0 0.0
    %2810 = vmatprep.subr.mxu0 0.0
    %2811 = vmatpush1.msra.mxu0 0.0
    %2812 = vmatprep.subr.mxu0 0.0
    %2813 = vmatpush1.msra.mxu0 0.0
    %2814 = vmatprep.subr.mxu0 0.0
    %2815 = vmatpush1.msra.mxu0 0.0
    %2816 = vmatprep.subr.mxu0 0.0
    %2817 = vmatpush1.msra.mxu0 0.0
    %2818 = vmatprep.subr.mxu0 0.0
    %2819 = vmatpush1.msra.mxu0 0.0
    %2820 = vmatprep.subr.mxu0 0.0
    %2821 = vmatpush1.msra.mxu0 0.0
    %2822 = vmatprep.subr.mxu0 0.0
    %2823 = vmatpush1.msra.mxu0 0.0
    %2824 = vmatprep.subr.mxu0 0.0
    %2825 = vmatpush1.msra.mxu0 0.0
    %2826 = vmatprep.subr.mxu0 0.0
    %2827 = vmatpush1.msra.mxu0 0.0
    %2828 = vmatprep.subr.mxu0 0.0
    %2829 = vmatpush1.msra.mxu0 0.0
    %2830 = vmatprep.subr.mxu0 0.0
    %2831 = vmatpush1.msra.mxu0 0.0
    %2832 = vmatprep.subr.mxu0 0.0
    %2833 = vmatpush1.msra.mxu0 0.0
    %2834 = vmatprep.subr.mxu0 0.0
    %2835 = vmatpush1.msra.mxu0 0.0
    %2836 = vmatprep.subr.mxu0 0.0
    %2837 = vmatpush1.msra.mxu0 0.0
    %2838 = vmatprep.subr.mxu0 0.0
    %2839 = vmatpush1.msra.mxu0 0.0
    %2840 = vmatprep.mubr.f32.mxu0 0.0
    %2841 = vmatmul.mubr.f32.gmra.mrb[0].mxu0 %v2774
    %v2842 = vpop.f32.mrb[0].mxu0
    %v2843 = vadd.f32 0.0, %v2842
    %v2844 = vpop.f32.mrb[0].mxu0
    %2845 = vdwg.mxu0
    %v2847 = vrot.slane %v2843, 4
    %v2849 = vadd.f32 %v2117, %v2847
    %v2850 = vxor.u32 %v2849, 2147483648
    %v2851 = vmul.f32 %v2850, 1.442695
    %v2852 = vpow.pop %v2851
    %v2853 = vadd.f32 %v2852, 1.0
    %v2854 = vrcp.pop %v2853
    %v2855 = vmul.f32 1.0, %v2854
    %v2856 = vtanh.pop %v2849
    %v2858 = vrot.slane %v2759, 6
    %v2860 = vmul.f32 %v2855, %v2858
    %2862 = vrot.lane.b32.xlu0 %v2856, 64
    %v2863 = vpop.permute.xlu0 %2862
    %v2865 = vmul.f32 %v2855, %v2863
    %2867 = vrot.lane.b32.xlu0 %v2865, 32
    %v2868 = vpop.permute.xlu0 %2867
    %v2870 = vadd.f32 %v2860, %v2868
    %v2871 = vtanh.pop %v2870
    %2873 = vrot.lane.b32.xlu0 %v2871, 64
    %v2874 = vpop.permute.xlu0 %2873
    %v2876 = vmul.f32 %v2855, %v2874
    %2878 = vrot.lane.b32.xlu0 %v2876, 32
    %v2879 = vpop.permute.xlu0 %2878
    %2881 = vst.msk [vmem:[#allocation2 + $0x8] sm:$0x30] %vm504, %v2879
    %v2882 = vrot.slane %v2876, 4
    %2883 = vrot.lane.b32.xlu0 %v2882, 32
    %v2884 = vpop.permute.xlu0 %2883
    %v2885 = vsel %vm180, %v2884, 0
    %2887 = vmatprep.subr.mxu0 0.0
    %2888 = vmatpush1.msra.mxu0 %v2121
    %2889 = vmatprep.subr.mxu0 0.0
    %2890 = vmatpush1.msra.mxu0 %v2122
    %2891 = vmatprep.subr.mxu0 0.0
    %2892 = vmatpush1.msra.mxu0 %v2123
    %2893 = vmatprep.subr.mxu0 0.0
    %2894 = vmatpush1.msra.mxu0 %v2124
    %2895 = vmatprep.subr.mxu0 0.0
    %2896 = vmatpush1.msra.mxu0 0.0
    %2897 = vmatprep.subr.mxu0 0.0
    %2898 = vmatpush1.msra.mxu0 0.0
    %2899 = vmatprep.subr.mxu0 0.0
    %2900 = vmatpush1.msra.mxu0 0.0
    %2901 = vmatprep.subr.mxu0 0.0
    %2902 = vmatpush1.msra.mxu0 0.0
    %2903 = vmatprep.subr.mxu0 0.0
    %2904 = vmatpush1.msra.mxu0 0.0
    %2905 = vmatprep.subr.mxu0 0.0
    %2906 = vmatpush1.msra.mxu0 0.0
    %2907 = vmatprep.subr.mxu0 0.0
    %2908 = vmatpush1.msra.mxu0 0.0
    %2909 = vmatprep.subr.mxu0 0.0
    %2910 = vmatpush1.msra.mxu0 0.0
    %2911 = vmatprep.subr.mxu0 0.0
    %2912 = vmatpush1.msra.mxu0 0.0
    %2913 = vmatprep.subr.mxu0 0.0
    %2914 = vmatpush1.msra.mxu0 0.0
    %2915 = vmatprep.subr.mxu0 0.0
    %2916 = vmatpush1.msra.mxu0 0.0
    %2917 = vmatprep.subr.mxu0 0.0
    %2918 = vmatpush1.msra.mxu0 0.0
    %2919 = vmatprep.subr.mxu0 0.0
    %2920 = vmatpush1.msra.mxu0 0.0
    %2921 = vmatprep.subr.mxu0 0.0
    %2922 = vmatpush1.msra.mxu0 0.0
    %2923 = vmatprep.subr.mxu0 0.0
    %2924 = vmatpush1.msra.mxu0 0.0
    %2925 = vmatprep.subr.mxu0 0.0
    %2926 = vmatpush1.msra.mxu0 0.0
    %2927 = vmatprep.subr.mxu0 0.0
    %2928 = vmatpush1.msra.mxu0 0.0
    %2929 = vmatprep.subr.mxu0 0.0
    %2930 = vmatpush1.msra.mxu0 0.0
    %2931 = vmatprep.subr.mxu0 0.0
    %2932 = vmatpush1.msra.mxu0 0.0
    %2933 = vmatprep.subr.mxu0 0.0
    %2934 = vmatpush1.msra.mxu0 0.0
    %2935 = vmatprep.subr.mxu0 0.0
    %2936 = vmatpush1.msra.mxu0 0.0
    %2937 = vmatprep.subr.mxu0 0.0
    %2938 = vmatpush1.msra.mxu0 0.0
    %2939 = vmatprep.subr.mxu0 0.0
    %2940 = vmatpush1.msra.mxu0 0.0
    %2941 = vmatprep.subr.mxu0 0.0
    %2942 = vmatpush1.msra.mxu0 0.0
    %2943 = vmatprep.subr.mxu0 0.0
    %2944 = vmatpush1.msra.mxu0 0.0
    %2945 = vmatprep.subr.mxu0 0.0
    %2946 = vmatpush1.msra.mxu0 0.0
    %2947 = vmatprep.subr.mxu0 0.0
    %2948 = vmatpush1.msra.mxu0 0.0
    %2949 = vmatprep.subr.mxu0 0.0
    %2950 = vmatpush1.msra.mxu0 0.0
    %2951 = vmatprep.mubr.f32.mxu0 0.0
    %2952 = vmatmul.mubr.f32.gmra.mrb[0].mxu0 %v2885
    %v2953 = vpop.f32.mrb[0].mxu0
    %v2954 = vadd.f32 0.0, %v2953
    %v2955 = vpop.f32.mrb[0].mxu0
    %2956 = vdwg.mxu0
    %v2958 = vrot.slane %v2954, 2
    %v2960 = vadd.f32 %v2117, %v2958
    %v2961 = vxor.u32 %v2960, 2147483648
    %v2962 = vmul.f32 %v2961, 1.442695
    %v2963 = vpow.pop %v2962
    %v2964 = vadd.f32 %v2963, 1.0
    %v2965 = vrcp.pop %v2964
    %v2966 = vmul.f32 1.0, %v2965
    %v2967 = vtanh.pop %v2960
    %v2969 = vrot.slane %v2870, 6
    %v2971 = vmul.f32 %v2966, %v2969
    %2973 = vrot.lane.b32.xlu0 %v2967, 64
    %v2974 = vpop.permute.xlu0 %2973
    %v2976 = vmul.f32 %v2966, %v2974
    %2978 = vrot.lane.b32.xlu0 %v2976, 32
    %v2979 = vpop.permute.xlu0 %2978
    %v2981 = vadd.f32 %v2971, %v2979
    %v2982 = vtanh.pop %v2981
    %2984 = vrot.lane.b32.xlu0 %v2982, 64
    %v2985 = vpop.permute.xlu0 %2984
    %v2987 = vmul.f32 %v2966, %v2985
    %2989 = vrot.lane.b32.xlu0 %v2987, 32
    %v2990 = vpop.permute.xlu0 %2989
    %2992 = vst.msk [vmem:[#allocation2 + $0x8] sm:$0xc0] %vm616, %v2990
    %v2993 = vld [vmem:[#allocation2] sm:$0xff]
    %v2994 = vld [vmem:[#allocation2 + $0x8] sm:$0xff]
    %s2995 = scalar_lea.vmem [#allocation8], 64
    %v2996 = vld [vmem:[%s2995] sm:$0xff]
    %v2997 = vld [vmem:[%s2995 + $0x8] sm:$0xff]
    %v2998 = vld [vmem:[%s2995 + $0x10] sm:$0xff]
    %v2999 = vld [vmem:[%s2995 + $0x18] sm:$0xff]
    %s3000 = scalar_lea.vmem %s4, 3
    %v3001 = vld [vmem:[%s3000] sm:$0x1]
    %v3003 = vlaneseq
    %v3004 = vshrl.u32 %v3003, 7
    %v3005 = vsub.s32 0, %v3004
    %v3006 = vrot.slane %v3001, %v3005
    %v3009 = vsel %vm180, %v2993, 0
    %v3012 = vsel %vm180, %v2994, 0
    %3014 = vmatprep.subr.mxu0 0.0
    %3015 = vmatpush1.msra.mxu0 %v2996
    %3016 = vmatprep.subr.mxu0 0.0
    %3017 = vmatpush1.msra.mxu0 %v2997
    %3018 = vmatprep.subr.mxu0 0.0
    %3019 = vmatpush1.msra.mxu0 %v2998
    %3020 = vmatprep.subr.mxu0 0.0
    %3021 = vmatpush1.msra.mxu0 %v2999
    %3022 = vmatprep.subr.mxu0 0.0
    %3023 = vmatpush1.msra.mxu0 0.0
    %3024 = vmatprep.subr.mxu0 0.0
    %3025 = vmatpush1.msra.mxu0 0.0
    %3026 = vmatprep.subr.mxu0 0.0
    %3027 = vmatpush1.msra.mxu0 0.0
    %3028 = vmatprep.subr.mxu0 0.0
    %3029 = vmatpush1.msra.mxu0 0.0
    %3030 = vmatprep.subr.mxu0 0.0
    %3031 = vmatpush1.msra.mxu0 0.0
    %3032 = vmatprep.subr.mxu0 0.0
    %3033 = vmatpush1.msra.mxu0 0.0
    %3034 = vmatprep.subr.mxu0 0.0
    %3035 = vmatpush1.msra.mxu0 0.0
    %3036 = vmatprep.subr.mxu0 0.0
    %3037 = vmatpush1.msra.mxu0 0.0
    %3038 = vmatprep.subr.mxu0 0.0
    %3039 = vmatpush1.msra.mxu0 0.0
    %3040 = vmatprep.subr.mxu0 0.0
    %3041 = vmatpush1.msra.mxu0 0.0
    %3042 = vmatprep.subr.mxu0 0.0
    %3043 = vmatpush1.msra.mxu0 0.0
    %3044 = vmatprep.subr.mxu0 0.0
    %3045 = vmatpush1.msra.mxu0 0.0
    %3046 = vmatprep.subr.mxu0 0.0
    %3047 = vmatpush1.msra.mxu0 0.0
    %3048 = vmatprep.subr.mxu0 0.0
    %3049 = vmatpush1.msra.mxu0 0.0
    %3050 = vmatprep.subr.mxu0 0.0
    %3051 = vmatpush1.msra.mxu0 0.0
    %3052 = vmatprep.subr.mxu0 0.0
    %3053 = vmatpush1.msra.mxu0 0.0
    %3054 = vmatprep.subr.mxu0 0.0
    %3055 = vmatpush1.msra.mxu0 0.0
    %3056 = vmatprep.subr.mxu0 0.0
    %3057 = vmatpush1.msra.mxu0 0.0
    %3058 = vmatprep.subr.mxu0 0.0
    %3059 = vmatpush1.msra.mxu0 0.0
    %3060 = vmatprep.subr.mxu0 0.0
    %3061 = vmatpush1.msra.mxu0 0.0
    %3062 = vmatprep.subr.mxu0 0.0
    %3063 = vmatpush1.msra.mxu0 0.0
    %3064 = vmatprep.subr.mxu0 0.0
    %3065 = vmatpush1.msra.mxu0 0.0
    %3066 = vmatprep.subr.mxu0 0.0
    %3067 = vmatpush1.msra.mxu0 0.0
    %3068 = vmatprep.subr.mxu0 0.0
    %3069 = vmatpush1.msra.mxu0 0.0
    %3070 = vmatprep.subr.mxu0 0.0
    %3071 = vmatpush1.msra.mxu0 0.0
    %3072 = vmatprep.subr.mxu0 0.0
    %3073 = vmatpush1.msra.mxu0 0.0
    %3074 = vmatprep.subr.mxu0 0.0
    %3075 = vmatpush1.msra.mxu0 0.0
    %3076 = vmatprep.subr.mxu0 0.0
    %3077 = vmatpush1.msra.mxu0 0.0
    %3078 = vmatprep.mubr.f32.mxu0 0.0
    %3079 = vmatmul.mubr.f32.gmra.mrb[0].mxu0 %v3009
    %v3080 = vpop.f32.mrb[0].mxu0
    %v3081 = vadd.f32 %v3006, %v3080
    %v3082 = vpop.f32.mrb[0].mxu0
    %3083 = vmatprep.mubr.f32.mxu0 0.0
    %3084 = vmatmul.mubr.f32.gmra.mrb[0].mxu0 %v3012
    %v3085 = vpop.f32.mrb[0].mxu0
    %v3086 = vadd.f32 %v3006, %v3085
    %v3087 = vpop.f32.mrb[0].mxu0
    %3088 = vdwg.mxu0
    %s3089 = scalar_lea.vmem [#allocation9], 96
    %v3090 = vld [vmem:[%s3089] sm:$0xff]
    %v3091 = vld [vmem:[%s3089 + $0x8] sm:$0xff]
    %v3092 = vld [vmem:[%s3089 + $0x10] sm:$0xff]
    %v3093 = vld [vmem:[%s3089 + $0x18] sm:$0xff]
    %3094 = vmatprep.subr.mxu0 0.0
    %3095 = vmatpush1.msra.mxu0 %v3090
    %3096 = vmatprep.subr.mxu0 0.0
    %3097 = vmatpush1.msra.mxu0 %v3091
    %3098 = vmatprep.subr.mxu0 0.0
    %3099 = vmatpush1.msra.mxu0 %v3092
    %3100 = vmatprep.subr.mxu0 0.0
    %3101 = vmatpush1.msra.mxu0 %v3093
    %3102 = vmatprep.subr.mxu0 0.0
    %3103 = vmatpush1.msra.mxu0 0.0
    %3104 = vmatprep.subr.mxu0 0.0
    %3105 = vmatpush1.msra.mxu0 0.0
    %3106 = vmatprep.subr.mxu0 0.0
    %3107 = vmatpush1.msra.mxu0 0.0
    %3108 = vmatprep.subr.mxu0 0.0
    %3109 = vmatpush1.msra.mxu0 0.0
    %3110 = vmatprep.subr.mxu0 0.0
    %3111 = vmatpush1.msra.mxu0 0.0
    %3112 = vmatprep.subr.mxu0 0.0
    %3113 = vmatpush1.msra.mxu0 0.0
    %3114 = vmatprep.subr.mxu0 0.0
    %3115 = vmatpush1.msra.mxu0 0.0
    %3116 = vmatprep.subr.mxu0 0.0
    %3117 = vmatpush1.msra.mxu0 0.0
    %3118 = vmatprep.subr.mxu0 0.0
    %3119 = vmatpush1.msra.mxu0 0.0
    %3120 = vmatprep.subr.mxu0 0.0
    %3121 = vmatpush1.msra.mxu0 0.0
    %3122 = vmatprep.subr.mxu0 0.0
    %3123 = vmatpush1.msra.mxu0 0.0
    %3124 = vmatprep.subr.mxu0 0.0
    %3125 = vmatpush1.msra.mxu0 0.0
    %3126 = vmatprep.subr.mxu0 0.0
    %3127 = vmatpush1.msra.mxu0 0.0
    %3128 = vmatprep.subr.mxu0 0.0
    %3129 = vmatpush1.msra.mxu0 0.0
    %3130 = vmatprep.subr.mxu0 0.0
    %3131 = vmatpush1.msra.mxu0 0.0
    %3132 = vmatprep.subr.mxu0 0.0
    %3133 = vmatpush1.msra.mxu0 0.0
    %3134 = vmatprep.subr.mxu0 0.0
    %3135 = vmatpush1.msra.mxu0 0.0
    %3136 = vmatprep.subr.mxu0 0.0
    %3137 = vmatpush1.msra.mxu0 0.0
    %3138 = vmatprep.subr.mxu0 0.0
    %3139 = vmatpush1.msra.mxu0 0.0
    %3140 = vmatprep.subr.mxu0 0.0
    %3141 = vmatpush1.msra.mxu0 0.0
    %3142 = vmatprep.subr.mxu0 0.0
    %3143 = vmatpush1.msra.mxu0 0.0
    %3144 = vmatprep.subr.mxu0 0.0
    %3145 = vmatpush1.msra.mxu0 0.0
    %3146 = vmatprep.subr.mxu0 0.0
    %3147 = vmatpush1.msra.mxu0 0.0
    %3148 = vmatprep.subr.mxu0 0.0
    %3149 = vmatpush1.msra.mxu0 0.0
    %3150 = vmatprep.subr.mxu0 0.0
    %3151 = vmatpush1.msra.mxu0 0.0
    %3152 = vmatprep.subr.mxu0 0.0
    %3153 = vmatpush1.msra.mxu0 0.0
    %3154 = vmatprep.subr.mxu0 0.0
    %3155 = vmatpush1.msra.mxu0 0.0
    %3156 = vmatprep.subr.mxu0 0.0
    %3157 = vmatpush1.msra.mxu0 0.0
    %3158 = vmatprep.mubr.f32.mxu0 0.0
    %3159 = vmatmul.mubr.f32.gmra.mrb[0].mxu0 %v182
    %v3160 = vpop.f32.mrb[0].mxu0
    %v3161 = vadd.f32 0.0, %v3160
    %v3162 = vpop.f32.mrb[0].mxu0
    %3163 = vdwg.mxu0
    %v3164 = vadd.f32 %v3081, %v3161
    %v3165 = vxor.u32 %v3164, 2147483648
    %v3166 = vmul.f32 %v3165, 1.442695
    %v3167 = vpow.pop %v3166
    %v3168 = vadd.f32 %v3167, 1.0
    %v3169 = vrcp.pop %v3168
    %v3170 = vmul.f32 1.0, %v3169
    %v3171 = vtanh.pop %v3164
    %v3172 = vmul.f32 %v3170, 0.0
    %3174 = vrot.lane.b32.xlu0 %v3171, 64
    %v3175 = vpop.permute.xlu0 %3174
    %v3177 = vmul.f32 %v3170, %v3175
    %3179 = vrot.lane.b32.xlu0 %v3177, 32
    %v3180 = vpop.permute.xlu0 %3179
    %v3182 = vadd.f32 %v3172, %v3180
    %v3183 = vtanh.pop %v3182
    %3185 = vrot.lane.b32.xlu0 %v3183, 64
    %v3186 = vpop.permute.xlu0 %3185
    %v3188 = vmul.f32 %v3170, %v3186
    %3190 = vrot.lane.b32.xlu0 %v3188, 32
    %v3191 = vpop.permute.xlu0 %3190
    %v3192 = vsel %vm180, %v3191, 0
    %3194 = vmatprep.subr.mxu0 0.0
    %3195 = vmatpush1.msra.mxu0 %v3090
    %3196 = vmatprep.subr.mxu0 0.0
    %3197 = vmatpush1.msra.mxu0 %v3091
    %3198 = vmatprep.subr.mxu0 0.0
    %3199 = vmatpush1.msra.mxu0 %v3092
    %3200 = vmatprep.subr.mxu0 0.0
    %3201 = vmatpush1.msra.mxu0 %v3093
    %3202 = vmatprep.subr.mxu0 0.0
    %3203 = vmatpush1.msra.mxu0 0.0
    %3204 = vmatprep.subr.mxu0 0.0
    %3205 = vmatpush1.msra.mxu0 0.0
    %3206 = vmatprep.subr.mxu0 0.0
    %3207 = vmatpush1.msra.mxu0 0.0
    %3208 = vmatprep.subr.mxu0 0.0
    %3209 = vmatpush1.msra.mxu0 0.0
    %3210 = vmatprep.subr.mxu0 0.0
    %3211 = vmatpush1.msra.mxu0 0.0
    %3212 = vmatprep.subr.mxu0 0.0
    %3213 = vmatpush1.msra.mxu0 0.0
    %3214 = vmatprep.subr.mxu0 0.0
    %3215 = vmatpush1.msra.mxu0 0.0
    %3216 = vmatprep.subr.mxu0 0.0
    %3217 = vmatpush1.msra.mxu0 0.0
    %3218 = vmatprep.subr.mxu0 0.0
    %3219 = vmatpush1.msra.mxu0 0.0
    %3220 = vmatprep.subr.mxu0 0.0
    %3221 = vmatpush1.msra.mxu0 0.0
    %3222 = vmatprep.subr.mxu0 0.0
    %3223 = vmatpush1.msra.mxu0 0.0
    %3224 = vmatprep.subr.mxu0 0.0
    %3225 = vmatpush1.msra.mxu0 0.0
    %3226 = vmatprep.subr.mxu0 0.0
    %3227 = vmatpush1.msra.mxu0 0.0
    %3228 = vmatprep.subr.mxu0 0.0
    %3229 = vmatpush1.msra.mxu0 0.0
    %3230 = vmatprep.subr.mxu0 0.0
    %3231 = vmatpush1.msra.mxu0 0.0
    %3232 = vmatprep.subr.mxu0 0.0
    %3233 = vmatpush1.msra.mxu0 0.0
    %3234 = vmatprep.subr.mxu0 0.0
    %3235 = vmatpush1.msra.mxu0 0.0
    %3236 = vmatprep.subr.mxu0 0.0
    %3237 = vmatpush1.msra.mxu0 0.0
    %3238 = vmatprep.subr.mxu0 0.0
    %3239 = vmatpush1.msra.mxu0 0.0
    %3240 = vmatprep.subr.mxu0 0.0
    %3241 = vmatpush1.msra.mxu0 0.0
    %3242 = vmatprep.subr.mxu0 0.0
    %3243 = vmatpush1.msra.mxu0 0.0
    %3244 = vmatprep.subr.mxu0 0.0
    %3245 = vmatpush1.msra.mxu0 0.0
    %3246 = vmatprep.subr.mxu0 0.0
    %3247 = vmatpush1.msra.mxu0 0.0
    %3248 = vmatprep.subr.mxu0 0.0
    %3249 = vmatpush1.msra.mxu0 0.0
    %3250 = vmatprep.subr.mxu0 0.0
    %3251 = vmatpush1.msra.mxu0 0.0
    %3252 = vmatprep.subr.mxu0 0.0
    %3253 = vmatpush1.msra.mxu0 0.0
    %3254 = vmatprep.subr.mxu0 0.0
    %3255 = vmatpush1.msra.mxu0 0.0
    %3256 = vmatprep.subr.mxu0 0.0
    %3257 = vmatpush1.msra.mxu0 0.0
    %3258 = vmatprep.mubr.f32.mxu0 0.0
    %3259 = vmatmul.mubr.f32.gmra.mrb[0].mxu0 %v3192
    %v3260 = vpop.f32.mrb[0].mxu0
    %v3261 = vadd.f32 0.0, %v3260
    %v3262 = vpop.f32.mrb[0].mxu0
    %3263 = vdwg.mxu0
    %v3265 = vrot.slane %v3261, 6
    %v3267 = vadd.f32 %v3081, %v3265
    %v3268 = vxor.u32 %v3267, 2147483648
    %v3269 = vmul.f32 %v3268, 1.442695
    %v3270 = vpow.pop %v3269
    %v3271 = vadd.f32 %v3270, 1.0
    %v3272 = vrcp.pop %v3271
    %v3273 = vmul.f32 1.0, %v3272
    %v3274 = vtanh.pop %v3267
    %v3276 = vrot.slane %v3182, 6
    %v3278 = vmul.f32 %v3273, %v3276
    %3280 = vrot.lane.b32.xlu0 %v3274, 64
    %v3281 = vpop.permute.xlu0 %3280
    %v3283 = vmul.f32 %v3273, %v3281
    %3285 = vrot.lane.b32.xlu0 %v3283, 32
    %v3286 = vpop.permute.xlu0 %3285
    %v3288 = vadd.f32 %v3278, %v3286
    %v3289 = vtanh.pop %v3288
    %3291 = vrot.lane.b32.xlu0 %v3289, 64
    %v3292 = vpop.permute.xlu0 %3291
    %v3294 = vmul.f32 %v3273, %v3292
    %v3296 = vrot.slane %v3294, 2
    %3297 = vrot.lane.b32.xlu0 %v3296, 32
    %v3298 = vpop.permute.xlu0 %3297
    %v3299 = vsel %vm180, %v3298, 0
    %3301 = vmatprep.subr.mxu0 0.0
    %3302 = vmatpush1.msra.mxu0 %v3090
    %3303 = vmatprep.subr.mxu0 0.0
    %3304 = vmatpush1.msra.mxu0 %v3091
    %3305 = vmatprep.subr.mxu0 0.0
    %3306 = vmatpush1.msra.mxu0 %v3092
    %3307 = vmatprep.subr.mxu0 0.0
    %3308 = vmatpush1.msra.mxu0 %v3093
    %3309 = vmatprep.subr.mxu0 0.0
    %3310 = vmatpush1.msra.mxu0 0.0
    %3311 = vmatprep.subr.mxu0 0.0
    %3312 = vmatpush1.msra.mxu0 0.0
    %3313 = vmatprep.subr.mxu0 0.0
    %3314 = vmatpush1.msra.mxu0 0.0
    %3315 = vmatprep.subr.mxu0 0.0
    %3316 = vmatpush1.msra.mxu0 0.0
    %3317 = vmatprep.subr.mxu0 0.0
    %3318 = vmatpush1.msra.mxu0 0.0
    %3319 = vmatprep.subr.mxu0 0.0
    %3320 = vmatpush1.msra.mxu0 0.0
    %3321 = vmatprep.subr.mxu0 0.0
    %3322 = vmatpush1.msra.mxu0 0.0
    %3323 = vmatprep.subr.mxu0 0.0
    %3324 = vmatpush1.msra.mxu0 0.0
    %3325 = vmatprep.subr.mxu0 0.0
    %3326 = vmatpush1.msra.mxu0 0.0
    %3327 = vmatprep.subr.mxu0 0.0
    %3328 = vmatpush1.msra.mxu0 0.0
    %3329 = vmatprep.subr.mxu0 0.0
    %3330 = vmatpush1.msra.mxu0 0.0
    %3331 = vmatprep.subr.mxu0 0.0
    %3332 = vmatpush1.msra.mxu0 0.0
    %3333 = vmatprep.subr.mxu0 0.0
    %3334 = vmatpush1.msra.mxu0 0.0
    %3335 = vmatprep.subr.mxu0 0.0
    %3336 = vmatpush1.msra.mxu0 0.0
    %3337 = vmatprep.subr.mxu0 0.0
    %3338 = vmatpush1.msra.mxu0 0.0
    %3339 = vmatprep.subr.mxu0 0.0
    %3340 = vmatpush1.msra.mxu0 0.0
    %3341 = vmatprep.subr.mxu0 0.0
    %3342 = vmatpush1.msra.mxu0 0.0
    %3343 = vmatprep.subr.mxu0 0.0
    %3344 = vmatpush1.msra.mxu0 0.0
    %3345 = vmatprep.subr.mxu0 0.0
    %3346 = vmatpush1.msra.mxu0 0.0
    %3347 = vmatprep.subr.mxu0 0.0
    %3348 = vmatpush1.msra.mxu0 0.0
    %3349 = vmatprep.subr.mxu0 0.0
    %3350 = vmatpush1.msra.mxu0 0.0
    %3351 = vmatprep.subr.mxu0 0.0
    %3352 = vmatpush1.msra.mxu0 0.0
    %3353 = vmatprep.subr.mxu0 0.0
    %3354 = vmatpush1.msra.mxu0 0.0
    %3355 = vmatprep.subr.mxu0 0.0
    %3356 = vmatpush1.msra.mxu0 0.0
    %3357 = vmatprep.subr.mxu0 0.0
    %3358 = vmatpush1.msra.mxu0 0.0
    %3359 = vmatprep.subr.mxu0 0.0
    %3360 = vmatpush1.msra.mxu0 0.0
    %3361 = vmatprep.subr.mxu0 0.0
    %3362 = vmatpush1.msra.mxu0 0.0
    %3363 = vmatprep.subr.mxu0 0.0
    %3364 = vmatpush1.msra.mxu0 0.0
    %3365 = vmatprep.mubr.f32.mxu0 0.0
    %3366 = vmatmul.mubr.f32.gmra.mrb[0].mxu0 %v3299
    %v3367 = vpop.f32.mrb[0].mxu0
    %v3368 = vadd.f32 0.0, %v3367
    %v3369 = vpop.f32.mrb[0].mxu0
    %3370 = vdwg.mxu0
    %v3372 = vrot.slane %v3368, 4
    %v3374 = vadd.f32 %v3081, %v3372
    %v3375 = vxor.u32 %v3374, 2147483648
    %v3376 = vmul.f32 %v3375, 1.442695
    %v3377 = vpow.pop %v3376
    %v3378 = vadd.f32 %v3377, 1.0
    %v3379 = vrcp.pop %v3378
    %v3380 = vmul.f32 1.0, %v3379
    %v3381 = vtanh.pop %v3374
    %v3383 = vrot.slane %v3288, 6
    %v3385 = vmul.f32 %v3380, %v3383
    %3387 = vrot.lane.b32.xlu0 %v3381, 64
    %v3388 = vpop.permute.xlu0 %3387
    %v3390 = vmul.f32 %v3380, %v3388
    %3392 = vrot.lane.b32.xlu0 %v3390, 32
    %v3393 = vpop.permute.xlu0 %3392
    %v3395 = vadd.f32 %v3385, %v3393
    %v3396 = vtanh.pop %v3395
    %3398 = vrot.lane.b32.xlu0 %v3396, 64
    %v3399 = vpop.permute.xlu0 %3398
    %v3401 = vmul.f32 %v3380, %v3399
    %v3403 = vrot.slane %v3401, 4
    %3404 = vrot.lane.b32.xlu0 %v3403, 32
    %v3405 = vpop.permute.xlu0 %3404
    %v3406 = vsel %vm180, %v3405, 0
    %3408 = vmatprep.subr.mxu0 0.0
    %3409 = vmatpush1.msra.mxu0 %v3090
    %3410 = vmatprep.subr.mxu0 0.0
    %3411 = vmatpush1.msra.mxu0 %v3091
    %3412 = vmatprep.subr.mxu0 0.0
    %3413 = vmatpush1.msra.mxu0 %v3092
    %3414 = vmatprep.subr.mxu0 0.0
    %3415 = vmatpush1.msra.mxu0 %v3093
    %3416 = vmatprep.subr.mxu0 0.0
    %3417 = vmatpush1.msra.mxu0 0.0
    %3418 = vmatprep.subr.mxu0 0.0
    %3419 = vmatpush1.msra.mxu0 0.0
    %3420 = vmatprep.subr.mxu0 0.0
    %3421 = vmatpush1.msra.mxu0 0.0
    %3422 = vmatprep.subr.mxu0 0.0
    %3423 = vmatpush1.msra.mxu0 0.0
    %3424 = vmatprep.subr.mxu0 0.0
    %3425 = vmatpush1.msra.mxu0 0.0
    %3426 = vmatprep.subr.mxu0 0.0
    %3427 = vmatpush1.msra.mxu0 0.0
    %3428 = vmatprep.subr.mxu0 0.0
    %3429 = vmatpush1.msra.mxu0 0.0
    %3430 = vmatprep.subr.mxu0 0.0
    %3431 = vmatpush1.msra.mxu0 0.0
    %3432 = vmatprep.subr.mxu0 0.0
    %3433 = vmatpush1.msra.mxu0 0.0
    %3434 = vmatprep.subr.mxu0 0.0
    %3435 = vmatpush1.msra.mxu0 0.0
    %3436 = vmatprep.subr.mxu0 0.0
    %3437 = vmatpush1.msra.mxu0 0.0
    %3438 = vmatprep.subr.mxu0 0.0
    %3439 = vmatpush1.msra.mxu0 0.0
    %3440 = vmatprep.subr.mxu0 0.0
    %3441 = vmatpush1.msra.mxu0 0.0
    %3442 = vmatprep.subr.mxu0 0.0
    %3443 = vmatpush1.msra.mxu0 0.0
    %3444 = vmatprep.subr.mxu0 0.0
    %3445 = vmatpush1.msra.mxu0 0.0
    %3446 = vmatprep.subr.mxu0 0.0
    %3447 = vmatpush1.msra.mxu0 0.0
    %3448 = vmatprep.subr.mxu0 0.0
    %3449 = vmatpush1.msra.mxu0 0.0
    %3450 = vmatprep.subr.mxu0 0.0
    %3451 = vmatpush1.msra.mxu0 0.0
    %3452 = vmatprep.subr.mxu0 0.0
    %3453 = vmatpush1.msra.mxu0 0.0
    %3454 = vmatprep.subr.mxu0 0.0
    %3455 = vmatpush1.msra.mxu0 0.0
    %3456 = vmatprep.subr.mxu0 0.0
    %3457 = vmatpush1.msra.mxu0 0.0
    %3458 = vmatprep.subr.mxu0 0.0
    %3459 = vmatpush1.msra.mxu0 0.0
    %3460 = vmatprep.subr.mxu0 0.0
    %3461 = vmatpush1.msra.mxu0 0.0
    %3462 = vmatprep.subr.mxu0 0.0
    %3463 = vmatpush1.msra.mxu0 0.0
    %3464 = vmatprep.subr.mxu0 0.0
    %3465 = vmatpush1.msra.mxu0 0.0
    %3466 = vmatprep.subr.mxu0 0.0
    %3467 = vmatpush1.msra.mxu0 0.0
    %3468 = vmatprep.subr.mxu0 0.0
    %3469 = vmatpush1.msra.mxu0 0.0
    %3470 = vmatprep.subr.mxu0 0.0
    %3471 = vmatpush1.msra.mxu0 0.0
    %3472 = vmatprep.mubr.f32.mxu0 0.0
    %3473 = vmatmul.mubr.f32.gmra.mrb[0].mxu0 %v3406
    %v3474 = vpop.f32.mrb[0].mxu0
    %v3475 = vadd.f32 0.0, %v3474
    %v3476 = vpop.f32.mrb[0].mxu0
    %3477 = vdwg.mxu0
    %v3479 = vrot.slane %v3475, 2
    %v3481 = vadd.f32 %v3081, %v3479
    %v3482 = vxor.u32 %v3481, 2147483648
    %v3483 = vmul.f32 %v3482, 1.442695
    %v3484 = vpow.pop %v3483
    %v3485 = vadd.f32 %v3484, 1.0
    %v3486 = vrcp.pop %v3485
    %v3487 = vmul.f32 1.0, %v3486
    %v3488 = vtanh.pop %v3481
    %v3490 = vrot.slane %v3395, 6
    %v3492 = vmul.f32 %v3487, %v3490
    %3494 = vrot.lane.b32.xlu0 %v3488, 64
    %v3495 = vpop.permute.xlu0 %3494
    %v3497 = vmul.f32 %v3487, %v3495
    %3499 = vrot.lane.b32.xlu0 %v3497, 32
    %v3500 = vpop.permute.xlu0 %3499
    %v3502 = vadd.f32 %v3492, %v3500
    %v3503 = vtanh.pop %v3502
    %3505 = vrot.lane.b32.xlu0 %v3503, 64
    %v3506 = vpop.permute.xlu0 %3505
    %v3508 = vmul.f32 %v3487, %v3506
    %v3510 = vrot.slane %v3508, 6
    %3511 = vrot.lane.b32.xlu0 %v3510, 32
    %v3512 = vpop.permute.xlu0 %3511
    %v3513 = vsel %vm180, %v3512, 0
    %3515 = vmatprep.subr.mxu0 0.0
    %3516 = vmatpush1.msra.mxu0 %v3090
    %3517 = vmatprep.subr.mxu0 0.0
    %3518 = vmatpush1.msra.mxu0 %v3091
    %3519 = vmatprep.subr.mxu0 0.0
    %3520 = vmatpush1.msra.mxu0 %v3092
    %3521 = vmatprep.subr.mxu0 0.0
    %3522 = vmatpush1.msra.mxu0 %v3093
    %3523 = vmatprep.subr.mxu0 0.0
    %3524 = vmatpush1.msra.mxu0 0.0
    %3525 = vmatprep.subr.mxu0 0.0
    %3526 = vmatpush1.msra.mxu0 0.0
    %3527 = vmatprep.subr.mxu0 0.0
    %3528 = vmatpush1.msra.mxu0 0.0
    %3529 = vmatprep.subr.mxu0 0.0
    %3530 = vmatpush1.msra.mxu0 0.0
    %3531 = vmatprep.subr.mxu0 0.0
    %3532 = vmatpush1.msra.mxu0 0.0
    %3533 = vmatprep.subr.mxu0 0.0
    %3534 = vmatpush1.msra.mxu0 0.0
    %3535 = vmatprep.subr.mxu0 0.0
    %3536 = vmatpush1.msra.mxu0 0.0
    %3537 = vmatprep.subr.mxu0 0.0
    %3538 = vmatpush1.msra.mxu0 0.0
    %3539 = vmatprep.subr.mxu0 0.0
    %3540 = vmatpush1.msra.mxu0 0.0
    %3541 = vmatprep.subr.mxu0 0.0
    %3542 = vmatpush1.msra.mxu0 0.0
    %3543 = vmatprep.subr.mxu0 0.0
    %3544 = vmatpush1.msra.mxu0 0.0
    %3545 = vmatprep.subr.mxu0 0.0
    %3546 = vmatpush1.msra.mxu0 0.0
    %3547 = vmatprep.subr.mxu0 0.0
    %3548 = vmatpush1.msra.mxu0 0.0
    %3549 = vmatprep.subr.mxu0 0.0
    %3550 = vmatpush1.msra.mxu0 0.0
    %3551 = vmatprep.subr.mxu0 0.0
    %3552 = vmatpush1.msra.mxu0 0.0
    %3553 = vmatprep.subr.mxu0 0.0
    %3554 = vmatpush1.msra.mxu0 0.0
    %3555 = vmatprep.subr.mxu0 0.0
    %3556 = vmatpush1.msra.mxu0 0.0
    %3557 = vmatprep.subr.mxu0 0.0
    %3558 = vmatpush1.msra.mxu0 0.0
    %3559 = vmatprep.subr.mxu0 0.0
    %3560 = vmatpush1.msra.mxu0 0.0
    %3561 = vmatprep.subr.mxu0 0.0
    %3562 = vmatpush1.msra.mxu0 0.0
    %3563 = vmatprep.subr.mxu0 0.0
    %3564 = vmatpush1.msra.mxu0 0.0
    %3565 = vmatprep.subr.mxu0 0.0
    %3566 = vmatpush1.msra.mxu0 0.0
    %3567 = vmatprep.subr.mxu0 0.0
    %3568 = vmatpush1.msra.mxu0 0.0
    %3569 = vmatprep.subr.mxu0 0.0
    %3570 = vmatpush1.msra.mxu0 0.0
    %3571 = vmatprep.subr.mxu0 0.0
    %3572 = vmatpush1.msra.mxu0 0.0
    %3573 = vmatprep.subr.mxu0 0.0
    %3574 = vmatpush1.msra.mxu0 0.0
    %3575 = vmatprep.subr.mxu0 0.0
    %3576 = vmatpush1.msra.mxu0 0.0
    %3577 = vmatprep.subr.mxu0 0.0
    %3578 = vmatpush1.msra.mxu0 0.0
    %3579 = vmatprep.mubr.f32.mxu0 0.0
    %3580 = vmatmul.mubr.f32.gmra.mrb[0].mxu0 %v3513
    %v3581 = vpop.f32.mrb[0].mxu0
    %v3582 = vadd.f32 0.0, %v3581
    %v3583 = vpop.f32.mrb[0].mxu0
    %3584 = vdwg.mxu0
    %v3585 = vadd.f32 %v3086, %v3582
    %v3586 = vxor.u32 %v3585, 2147483648
    %v3587 = vmul.f32 %v3586, 1.442695
    %v3588 = vpow.pop %v3587
    %v3589 = vadd.f32 %v3588, 1.0
    %v3590 = vrcp.pop %v3589
    %v3591 = vmul.f32 1.0, %v3590
    %v3592 = vtanh.pop %v3585
    %v3594 = vrot.slane %v3502, 6
    %v3596 = vmul.f32 %v3591, %v3594
    %3598 = vrot.lane.b32.xlu0 %v3592, 64
    %v3599 = vpop.permute.xlu0 %3598
    %v3601 = vmul.f32 %v3591, %v3599
    %3603 = vrot.lane.b32.xlu0 %v3601, 32
    %v3604 = vpop.permute.xlu0 %3603
    %v3606 = vadd.f32 %v3596, %v3604
    %v3607 = vtanh.pop %v3606
    %3609 = vrot.lane.b32.xlu0 %v3607, 64
    %v3610 = vpop.permute.xlu0 %3609
    %v3612 = vmul.f32 %v3591, %v3610
    %3614 = vrot.lane.b32.xlu0 %v3612, 32
    %v3615 = vpop.permute.xlu0 %3614
    %v3616 = vsel %vm180, %v3615, 0
    %3618 = vmatprep.subr.mxu0 0.0
    %3619 = vmatpush1.msra.mxu0 %v3090
    %3620 = vmatprep.subr.mxu0 0.0
    %3621 = vmatpush1.msra.mxu0 %v3091
    %3622 = vmatprep.subr.mxu0 0.0
    %3623 = vmatpush1.msra.mxu0 %v3092
    %3624 = vmatprep.subr.mxu0 0.0
    %3625 = vmatpush1.msra.mxu0 %v3093
    %3626 = vmatprep.subr.mxu0 0.0
    %3627 = vmatpush1.msra.mxu0 0.0
    %3628 = vmatprep.subr.mxu0 0.0
    %3629 = vmatpush1.msra.mxu0 0.0
    %3630 = vmatprep.subr.mxu0 0.0
    %3631 = vmatpush1.msra.mxu0 0.0
    %3632 = vmatprep.subr.mxu0 0.0
    %3633 = vmatpush1.msra.mxu0 0.0
    %3634 = vmatprep.subr.mxu0 0.0
    %3635 = vmatpush1.msra.mxu0 0.0
    %3636 = vmatprep.subr.mxu0 0.0
    %3637 = vmatpush1.msra.mxu0 0.0
    %3638 = vmatprep.subr.mxu0 0.0
    %3639 = vmatpush1.msra.mxu0 0.0
    %3640 = vmatprep.subr.mxu0 0.0
    %3641 = vmatpush1.msra.mxu0 0.0
    %3642 = vmatprep.subr.mxu0 0.0
    %3643 = vmatpush1.msra.mxu0 0.0
    %3644 = vmatprep.subr.mxu0 0.0
    %3645 = vmatpush1.msra.mxu0 0.0
    %3646 = vmatprep.subr.mxu0 0.0
    %3647 = vmatpush1.msra.mxu0 0.0
    %3648 = vmatprep.subr.mxu0 0.0
    %3649 = vmatpush1.msra.mxu0 0.0
    %3650 = vmatprep.subr.mxu0 0.0
    %3651 = vmatpush1.msra.mxu0 0.0
    %3652 = vmatprep.subr.mxu0 0.0
    %3653 = vmatpush1.msra.mxu0 0.0
    %3654 = vmatprep.subr.mxu0 0.0
    %3655 = vmatpush1.msra.mxu0 0.0
    %3656 = vmatprep.subr.mxu0 0.0
    %3657 = vmatpush1.msra.mxu0 0.0
    %3658 = vmatprep.subr.mxu0 0.0
    %3659 = vmatpush1.msra.mxu0 0.0
    %3660 = vmatprep.subr.mxu0 0.0
    %3661 = vmatpush1.msra.mxu0 0.0
    %3662 = vmatprep.subr.mxu0 0.0
    %3663 = vmatpush1.msra.mxu0 0.0
    %3664 = vmatprep.subr.mxu0 0.0
    %3665 = vmatpush1.msra.mxu0 0.0
    %3666 = vmatprep.subr.mxu0 0.0
    %3667 = vmatpush1.msra.mxu0 0.0
    %3668 = vmatprep.subr.mxu0 0.0
    %3669 = vmatpush1.msra.mxu0 0.0
    %3670 = vmatprep.subr.mxu0 0.0
    %3671 = vmatpush1.msra.mxu0 0.0
    %3672 = vmatprep.subr.mxu0 0.0
    %3673 = vmatpush1.msra.mxu0 0.0
    %3674 = vmatprep.subr.mxu0 0.0
    %3675 = vmatpush1.msra.mxu0 0.0
    %3676 = vmatprep.subr.mxu0 0.0
    %3677 = vmatpush1.msra.mxu0 0.0
    %3678 = vmatprep.subr.mxu0 0.0
    %3679 = vmatpush1.msra.mxu0 0.0
    %3680 = vmatprep.subr.mxu0 0.0
    %3681 = vmatpush1.msra.mxu0 0.0
    %3682 = vmatprep.mubr.f32.mxu0 0.0
    %3683 = vmatmul.mubr.f32.gmra.mrb[0].mxu0 %v3616
    %v3684 = vpop.f32.mrb[0].mxu0
    %v3685 = vadd.f32 0.0, %v3684
    %v3686 = vpop.f32.mrb[0].mxu0
    %3687 = vdwg.mxu0
    %v3689 = vrot.slane %v3685, 6
    %v3691 = vadd.f32 %v3086, %v3689
    %v3692 = vxor.u32 %v3691, 2147483648
    %v3693 = vmul.f32 %v3692, 1.442695
    %v3694 = vpow.pop %v3693
    %v3695 = vadd.f32 %v3694, 1.0
    %v3696 = vrcp.pop %v3695
    %v3697 = vmul.f32 1.0, %v3696
    %v3698 = vtanh.pop %v3691
    %v3700 = vrot.slane %v3606, 6
    %v3702 = vmul.f32 %v3697, %v3700
    %3704 = vrot.lane.b32.xlu0 %v3698, 64
    %v3705 = vpop.permute.xlu0 %3704
    %v3707 = vmul.f32 %v3697, %v3705
    %3709 = vrot.lane.b32.xlu0 %v3707, 32
    %v3710 = vpop.permute.xlu0 %3709
    %v3712 = vadd.f32 %v3702, %v3710
    %v3713 = vtanh.pop %v3712
    %3715 = vrot.lane.b32.xlu0 %v3713, 64
    %v3716 = vpop.permute.xlu0 %3715
    %v3718 = vmul.f32 %v3697, %v3716
    %v3720 = vrot.slane %v3718, 2
    %3721 = vrot.lane.b32.xlu0 %v3720, 32
    %v3722 = vpop.permute.xlu0 %3721
    %v3723 = vsel %vm180, %v3722, 0
    %3725 = vmatprep.subr.mxu0 0.0
    %3726 = vmatpush1.msra.mxu0 %v3090
    %3727 = vmatprep.subr.mxu0 0.0
    %3728 = vmatpush1.msra.mxu0 %v3091
    %3729 = vmatprep.subr.mxu0 0.0
    %3730 = vmatpush1.msra.mxu0 %v3092
    %3731 = vmatprep.subr.mxu0 0.0
    %3732 = vmatpush1.msra.mxu0 %v3093
    %3733 = vmatprep.subr.mxu0 0.0
    %3734 = vmatpush1.msra.mxu0 0.0
    %3735 = vmatprep.subr.mxu0 0.0
    %3736 = vmatpush1.msra.mxu0 0.0
    %3737 = vmatprep.subr.mxu0 0.0
    %3738 = vmatpush1.msra.mxu0 0.0
    %3739 = vmatprep.subr.mxu0 0.0
    %3740 = vmatpush1.msra.mxu0 0.0
    %3741 = vmatprep.subr.mxu0 0.0
    %3742 = vmatpush1.msra.mxu0 0.0
    %3743 = vmatprep.subr.mxu0 0.0
    %3744 = vmatpush1.msra.mxu0 0.0
    %3745 = vmatprep.subr.mxu0 0.0
    %3746 = vmatpush1.msra.mxu0 0.0
    %3747 = vmatprep.subr.mxu0 0.0
    %3748 = vmatpush1.msra.mxu0 0.0
    %3749 = vmatprep.subr.mxu0 0.0
    %3750 = vmatpush1.msra.mxu0 0.0
    %3751 = vmatprep.subr.mxu0 0.0
    %3752 = vmatpush1.msra.mxu0 0.0
    %3753 = vmatprep.subr.mxu0 0.0
    %3754 = vmatpush1.msra.mxu0 0.0
    %3755 = vmatprep.subr.mxu0 0.0
    %3756 = vmatpush1.msra.mxu0 0.0
    %3757 = vmatprep.subr.mxu0 0.0
    %3758 = vmatpush1.msra.mxu0 0.0
    %3759 = vmatprep.subr.mxu0 0.0
    %3760 = vmatpush1.msra.mxu0 0.0
    %3761 = vmatprep.subr.mxu0 0.0
    %3762 = vmatpush1.msra.mxu0 0.0
    %3763 = vmatprep.subr.mxu0 0.0
    %3764 = vmatpush1.msra.mxu0 0.0
    %3765 = vmatprep.subr.mxu0 0.0
    %3766 = vmatpush1.msra.mxu0 0.0
    %3767 = vmatprep.subr.mxu0 0.0
    %3768 = vmatpush1.msra.mxu0 0.0
    %3769 = vmatprep.subr.mxu0 0.0
    %3770 = vmatpush1.msra.mxu0 0.0
    %3771 = vmatprep.subr.mxu0 0.0
    %3772 = vmatpush1.msra.mxu0 0.0
    %3773 = vmatprep.subr.mxu0 0.0
    %3774 = vmatpush1.msra.mxu0 0.0
    %3775 = vmatprep.subr.mxu0 0.0
    %3776 = vmatpush1.msra.mxu0 0.0
    %3777 = vmatprep.subr.mxu0 0.0
    %3778 = vmatpush1.msra.mxu0 0.0
    %3779 = vmatprep.subr.mxu0 0.0
    %3780 = vmatpush1.msra.mxu0 0.0
    %3781 = vmatprep.subr.mxu0 0.0
    %3782 = vmatpush1.msra.mxu0 0.0
    %3783 = vmatprep.subr.mxu0 0.0
    %3784 = vmatpush1.msra.mxu0 0.0
    %3785 = vmatprep.subr.mxu0 0.0
    %3786 = vmatpush1.msra.mxu0 0.0
    %3787 = vmatprep.subr.mxu0 0.0
    %3788 = vmatpush1.msra.mxu0 0.0
    %3789 = vmatprep.mubr.f32.mxu0 0.0
    %3790 = vmatmul.mubr.f32.gmra.mrb[0].mxu0 %v3723
    %v3791 = vpop.f32.mrb[0].mxu0
    %v3792 = vadd.f32 0.0, %v3791
    %v3793 = vpop.f32.mrb[0].mxu0
    %3794 = vdwg.mxu0
    %v3796 = vrot.slane %v3792, 4
    %v3798 = vadd.f32 %v3086, %v3796
    %v3799 = vxor.u32 %v3798, 2147483648
    %v3800 = vmul.f32 %v3799, 1.442695
    %v3801 = vpow.pop %v3800
    %v3802 = vadd.f32 %v3801, 1.0
    %v3803 = vrcp.pop %v3802
    %v3804 = vmul.f32 1.0, %v3803
    %v3805 = vtanh.pop %v3798
    %v3807 = vrot.slane %v3712, 6
    %v3809 = vmul.f32 %v3804, %v3807
    %3811 = vrot.lane.b32.xlu0 %v3805, 64
    %v3812 = vpop.permute.xlu0 %3811
    %v3814 = vmul.f32 %v3804, %v3812
    %3816 = vrot.lane.b32.xlu0 %v3814, 32
    %v3817 = vpop.permute.xlu0 %3816
    %v3819 = vadd.f32 %v3809, %v3817
    %v3820 = vtanh.pop %v3819
    %3822 = vrot.lane.b32.xlu0 %v3820, 64
    %v3823 = vpop.permute.xlu0 %3822
    %v3825 = vmul.f32 %v3804, %v3823
    %v3827 = vrot.slane %v3825, 4
    %3828 = vrot.lane.b32.xlu0 %v3827, 32
    %v3829 = vpop.permute.xlu0 %3828
    %v3830 = vsel %vm180, %v3829, 0
    %3832 = vmatprep.subr.mxu0 0.0
    %3833 = vmatpush1.msra.mxu0 %v3090
    %3834 = vmatprep.subr.mxu0 0.0
    %3835 = vmatpush1.msra.mxu0 %v3091
    %3836 = vmatprep.subr.mxu0 0.0
    %3837 = vmatpush1.msra.mxu0 %v3092
    %3838 = vmatprep.subr.mxu0 0.0
    %3839 = vmatpush1.msra.mxu0 %v3093
    %3840 = vmatprep.subr.mxu0 0.0
    %3841 = vmatpush1.msra.mxu0 0.0
    %3842 = vmatprep.subr.mxu0 0.0
    %3843 = vmatpush1.msra.mxu0 0.0
    %3844 = vmatprep.subr.mxu0 0.0
    %3845 = vmatpush1.msra.mxu0 0.0
    %3846 = vmatprep.subr.mxu0 0.0
    %3847 = vmatpush1.msra.mxu0 0.0
    %3848 = vmatprep.subr.mxu0 0.0
    %3849 = vmatpush1.msra.mxu0 0.0
    %3850 = vmatprep.subr.mxu0 0.0
    %3851 = vmatpush1.msra.mxu0 0.0
    %3852 = vmatprep.subr.mxu0 0.0
    %3853 = vmatpush1.msra.mxu0 0.0
    %3854 = vmatprep.subr.mxu0 0.0
    %3855 = vmatpush1.msra.mxu0 0.0
    %3856 = vmatprep.subr.mxu0 0.0
    %3857 = vmatpush1.msra.mxu0 0.0
    %3858 = vmatprep.subr.mxu0 0.0
    %3859 = vmatpush1.msra.mxu0 0.0
    %3860 = vmatprep.subr.mxu0 0.0
    %3861 = vmatpush1.msra.mxu0 0.0
    %3862 = vmatprep.subr.mxu0 0.0
    %3863 = vmatpush1.msra.mxu0 0.0
    %3864 = vmatprep.subr.mxu0 0.0
    %3865 = vmatpush1.msra.mxu0 0.0
    %3866 = vmatprep.subr.mxu0 0.0
    %3867 = vmatpush1.msra.mxu0 0.0
    %3868 = vmatprep.subr.mxu0 0.0
    %3869 = vmatpush1.msra.mxu0 0.0
    %3870 = vmatprep.subr.mxu0 0.0
    %3871 = vmatpush1.msra.mxu0 0.0
    %3872 = vmatprep.subr.mxu0 0.0
    %3873 = vmatpush1.msra.mxu0 0.0
    %3874 = vmatprep.subr.mxu0 0.0
    %3875 = vmatpush1.msra.mxu0 0.0
    %3876 = vmatprep.subr.mxu0 0.0
    %3877 = vmatpush1.msra.mxu0 0.0
    %3878 = vmatprep.subr.mxu0 0.0
    %3879 = vmatpush1.msra.mxu0 0.0
    %3880 = vmatprep.subr.mxu0 0.0
    %3881 = vmatpush1.msra.mxu0 0.0
    %3882 = vmatprep.subr.mxu0 0.0
    %3883 = vmatpush1.msra.mxu0 0.0
    %3884 = vmatprep.subr.mxu0 0.0
    %3885 = vmatpush1.msra.mxu0 0.0
    %3886 = vmatprep.subr.mxu0 0.0
    %3887 = vmatpush1.msra.mxu0 0.0
    %3888 = vmatprep.subr.mxu0 0.0
    %3889 = vmatpush1.msra.mxu0 0.0
    %3890 = vmatprep.subr.mxu0 0.0
    %3891 = vmatpush1.msra.mxu0 0.0
    %3892 = vmatprep.subr.mxu0 0.0
    %3893 = vmatpush1.msra.mxu0 0.0
    %3894 = vmatprep.subr.mxu0 0.0
    %3895 = vmatpush1.msra.mxu0 0.0
    %3896 = vmatprep.mubr.f32.mxu0 0.0
    %3897 = vmatmul.mubr.f32.gmra.mrb[0].mxu0 %v3830
    %v3898 = vpop.f32.mrb[0].mxu0
    %v3899 = vadd.f32 0.0, %v3898
    %v3900 = vpop.f32.mrb[0].mxu0
    %3901 = vdwg.mxu0
    %v3903 = vrot.slane %v3899, 2
    %v3905 = vadd.f32 %v3086, %v3903
    %v3906 = vxor.u32 %v3905, 2147483648
    %v3907 = vmul.f32 %v3906, 1.442695
    %v3908 = vpow.pop %v3907
    %v3909 = vadd.f32 %v3908, 1.0
    %v3910 = vrcp.pop %v3909
    %v3911 = vmul.f32 1.0, %v3910
    %v3912 = vtanh.pop %v3905
    %v3914 = vrot.slane %v3819, 6
    %v3916 = vmul.f32 %v3911, %v3914
    %3918 = vrot.lane.b32.xlu0 %v3912, 64
    %v3919 = vpop.permute.xlu0 %3918
    %v3921 = vmul.f32 %v3911, %v3919
    %3923 = vrot.lane.b32.xlu0 %v3921, 32
    %v3924 = vpop.permute.xlu0 %3923
    %v3926 = vadd.f32 %v3916, %v3924
    %v3927 = vtanh.pop %v3926
    %3929 = vrot.lane.b32.xlu0 %v3927, 64
    %v3930 = vpop.permute.xlu0 %3929
    %v3932 = vmul.f32 %v3911, %v3930
    %v3933 = vld [vmem:[%s5] sm:$0x1]
    %v3935 = vlaneseq
    %v3936 = vshrl.u32 %v3935, 7
    %v3937 = vsub.s32 0, %v3936
    %v3938 = vrot.slane %v3933, %v3937
    %3939 = vrot.lane.b32.xlu0 %v3938, 96
    %v3940 = vpop.permute.xlu0 %3939
    %v3942 = vmul.f32 %v3932, %v3940
    %3944 = vrot.lane.b32.xlu0 %v3942, 32
    %v3945 = vpop.permute.xlu0 %3944
    %v3947 = vsel %vm616, %v3945, 0.0
    %3948 = vadd.xlane.f32.xlu0 %v3947
    %v3949 = vpop.xlane.xlu0 %3948
    %v3950 = vld [vmem:[#allocation3] sm:$0x1]
    %v3952 = vlaneseq
    %v3953 = vshrl.u32 %v3952, 7
    %v3954 = vsub.s32 0, %v3953
    %v3955 = vrot.slane %v3950, %v3954
    %v3957 = vadd.f32 %v3949, %v3955
    %vm3958 = vcmask 7174
    %3959 = vst.msk [vmem:[%s7 - $0x6] sm:$0xc0] %vm3958, %v3957
    // Predicated region
    $region46: #{tpu_custom_call.1} parent=1 // pred_check
      _
    $region47: #{tpu_custom_call.1} parent=1 // pred_check_branch
      %3961 = sbr.rel (0) target = $region49
    $region48: #{tpu_custom_call.1} parent=1 // pred_region
      _
    $region49: #{tpu_custom_call.1} parent=1 // pred_fallthru
      _
    // Predicated region
    $region50: #{tpu_custom_call.1} parent=1 // pred_check
      _
    $region51: #{tpu_custom_call.1} parent=1 // pred_check_branch
      %3963 = sbr.rel (0) target = $region53
    $region52: #{tpu_custom_call.1} parent=1 // pred_region
      _
    $region53: #{tpu_custom_call.1} parent=1 // pred_fallthru
      _
    %3964 = vsyncpa [#allocation5], 1
    %3965 = vsyncpa [#allocation7], 1
    %3966 = vsyncpa [#allocation10], 1

</llo_original>
